<compile_context>
chip_gen: v6e
topology: v6e:2x2x1
jax: 0.10.0
libtpu: 0.0.40
codegen_flags: <defaults>
</compile_context>

<pallas_src>
import math

import jax
import jax.numpy as jnp
import numpy as np
from jax import lax
from jax.experimental import pallas as pl
from jax.experimental.pallas import tpu as pltpu


# ---------------------------------------------------------------------------
# Kernel helpers
# ---------------------------------------------------------------------------
def _row(a, i):
    # static (1, N) slice of a packed parameter stack
    return a[i:i + 1]


def _layernorm(h, gamma, beta, eps=1e-5):
    mu = jnp.mean(h, axis=-1, keepdims=True)
    var = jnp.mean(jnp.square(h - mu), axis=-1, keepdims=True)
    return (h - mu) * lax.rsqrt(var + eps) * gamma + beta


def _ff(h, gamma, beta, w1, b1, w2, b2):
    # LayerNorm -> Linear -> ReLU -> Linear; bf16 MXU inputs, f32 accumulation.
    hn = _layernorm(h, gamma, beta)
    hid = jnp.dot(hn.astype(jnp.bfloat16), w1,
                  preferred_element_type=jnp.float32) + b1
    # cast right after bias+ReLU: only the bf16 copy stays live for matmul #2
    hid = jnp.maximum(hid, 0.0).astype(jnp.bfloat16)
    return jnp.dot(hid, w2, preferred_element_type=jnp.float32) + b2


# ---------------------------------------------------------------------------
# Pallas kernel: full encoder forward for one batch tile (TB sequences).
# ---------------------------------------------------------------------------
def _make_kernel(return_scores):
    def kernel(x_ref, ln_ref, dbias_ref, fbias_ref, bqkv_ref,
               w_pre1_ref, w_pre2_ref, wqkv_ref, wo_ref,
               w_post1_ref, w_post2_ref, *out_refs):
        if return_scores:
            out_ref, score_ref = out_refs
        else:
            (out_ref,) = out_refs

        TB, S, D = x_ref.shape
        R = TB * S

        ln = ln_ref[...]        # (8, D) [g_pre,b_pre,g_att,b_att,g_post,b_post,g_fin,b_fin]
        dbias = dbias_ref[...]  # (3, D) [b_pre2, b_attn_out, b_post2]
        fbias = fbias_ref[...]  # (2, F) [b_pre1, b_post1]
        bqkv = bqkv_ref[...]    # (1, 3D) fused  or  (3, D) stacked

        # Flatten the batch tile so every matmul sees TB*S rows.
        x = x_ref[...].astype(jnp.float32).reshape(R, D)

        # ---- pre feed-forward sublayer ----
        x = _ff(x, _row(ln, 0), _row(ln, 1),
                w_pre1_ref[...], _row(fbias, 0),
                w_pre2_ref[...], _row(dbias, 0))

        # ---- single-head attention sublayer ----
        hn = _layernorm(x, _row(ln, 2), _row(ln, 3))
        hb = hn.astype(jnp.bfloat16)

        if len(wqkv_ref.shape) == 3:
            # (3, D, D) layout: D not a multiple of 128 -> avoid lane-misaligned
            # slicing of a fused (R, 3D) result; use three aligned dots.
            q = (jnp.dot(hb, wqkv_ref[0], preferred_element_type=jnp.float32)
                 + bqkv[0:1]).reshape(TB, S, D)
            k = (jnp.dot(hb, wqkv_ref[1], preferred_element_type=jnp.float32)
                 + bqkv[1:2]).reshape(TB, S, D)
            v = (jnp.dot(hb, wqkv_ref[2], preferred_element_type=jnp.float32)
                 + bqkv[2:3]).reshape(TB, S, D)
        else:
            # fused (D, 3D) projection; D % 128 == 0 so slices are lane-aligned.
            qkv = jnp.dot(hb, wqkv_ref[...],
                          preferred_element_type=jnp.float32) + bqkv   # (R, 3D)
            q = qkv[:, :D].reshape(TB, S, D)
            k = qkv[:, D:2 * D].reshape(TB, S, D)
            v = qkv[:, 2 * D:].reshape(TB, S, D)

        # NOTE: 1/sqrt(D) is pre-folded into Wq / bq at pack time.
        scores = jnp.einsum('bqd,bkd->bqk',
                            q.astype(jnp.bfloat16), k.astype(jnp.bfloat16),
                            preferred_element_type=jnp.float32)
        scores = scores - jnp.max(scores, axis=-1, keepdims=True)
        p = jnp.exp(scores)
        p = p * pl.reciprocal(jnp.sum(p, axis=-1, keepdims=True), approx=True)

        if return_scores:
            # store early: the f32 (TB,S,S) tensor is not live past this point
            score_ref[...] = p.astype(score_ref.dtype)

        ctx = jnp.einsum('bqk,bkd->bqd',
                         p.astype(jnp.bfloat16), v.astype(jnp.bfloat16),
                         preferred_element_type=jnp.float32).reshape(R, D)
        x = jnp.dot(ctx.astype(jnp.bfloat16), wo_ref[...],
                    preferred_element_type=jnp.float32) + _row(dbias, 1)

        # ---- post feed-forward sublayer ----
        x = _ff(x, _row(ln, 4), _row(ln, 5),
                w_post1_ref[...], _row(fbias, 1),
                w_post2_ref[...], _row(dbias, 2))

        # ---- final LayerNorm ----
        x = _layernorm(x, _row(ln, 6), _row(ln, 7))

        out_ref[...] = x.reshape(TB, S, D).astype(out_ref.dtype)

    return kernel


# ---------------------------------------------------------------------------
# Parameter packing (do this ONCE, outside the per-step path)
# ---------------------------------------------------------------------------
def pack_kule_params(params, *, weight_dtype=jnp.bfloat16):
    (g_pre, be_pre, w_pre1, b_pre1, w_pre2, b_pre2,
     g_att, be_att, wq, bq, wk, bk, wv, bv, wo, bo,
     g_post, be_post, w_post1, b_post1, w_post2, b_post2,
     g_fin, be_fin) = params
    D = wq.shape[0]
    scale = 1.0 / math.sqrt(D)   # 1 head => head_dim == d_model

    ln_pack = jnp.concatenate(
        [g_pre, be_pre, g_att, be_att, g_post, be_post, g_fin, be_fin], axis=0)
    dbias_pack = jnp.concatenate([b_pre2, bo, b_post2], axis=0)
    fbias_pack = jnp.concatenate([b_pre1, b_post1], axis=0)

    # fold the softmax scale into the Q projection
    wq_s, bq_s = wq * scale, bq * scale
    if D % 128 == 0:
        wqkv = jnp.concatenate([wq_s, wk, wv], axis=1).astype(weight_dtype)  # (D, 3D)
        bqkv = jnp.concatenate([bq_s, bk, bv], axis=1)                       # (1, 3D) f32
    else:
        wqkv = jnp.stack([wq_s, wk, wv], axis=0).astype(weight_dtype)        # (3, D, D)
        bqkv = jnp.concatenate([bq_s, bk, bv], axis=0)                       # (3, D) f32

    return (ln_pack, dbias_pack, fbias_pack, bqkv,
            w_pre1.astype(weight_dtype), w_pre2.astype(weight_dtype),
            wqkv, wo.astype(weight_dtype),
            w_post1.astype(weight_dtype), w_post2.astype(weight_dtype))


# ---------------------------------------------------------------------------
# Tile sizing from a per-generation VMEM budget
# ---------------------------------------------------------------------------
def _estimate_vmem_bytes(TB, S, D, F, param_bytes,
                         x_isize, out_isize, score_isize, return_scores):
    f32 = 4
    R = TB * S
    io = 2 * TB * S * D * (x_isize + out_isize)          # double-buffered I/O blocks
    if return_scores:
        io += 2 * TB * S * S * score_isize
    work = f32 * R * 7 * D                               # x/hn/qkv/ctx f32 buffers
    work += R * F * (f32 + 2)                            # f32 hidden + bf16 copy
    work += R * S * (2 * f32 + 2)                        # scores + p (f32) + bf16 p
    return param_bytes + io + work + (2 << 20)           # + internal scratch headroom


def _pick_batch_tile(B, S, D, F, param_bytes, budget,
                     x_isize, out_isize, score_isize, return_scores, max_rows):
    """Largest divisor of B whose estimated VMEM need fits the budget.

    Keeps >= 2 grid steps when B >= 2 so both v7x TensorCores get work.
    """
    cap = max(1, B // 2) if B >= 2 else 1
    best = 1
    for d in range(1, B + 1):
        if B % d or d > cap or d * S > max_rows:
            continue
        if _estimate_vmem_bytes(d, S, D, F, param_bytes,
                                x_isize, out_isize, score_isize,
                                return_scores) <= budget:
            best = d
    return best


# ---------------------------------------------------------------------------
# Wrapper
# ---------------------------------------------------------------------------
def kule_encoder(x, params, *, score_dtype=jnp.bfloat16, return_scores=True,
                 max_rows=2048):
    B, S, D = x.shape
    if len(params) == 24:
        # Convenience path; prefer calling pack_kule_params() once up front so
        # the f32->bf16 casts / concats are not re-run every call.
        params = pack_kule_params(params)
    (ln_pack, dbias_pack, fbias_pack, bqkv,
     w_pre1b, w_pre2b, wqkv, wob, w_post1b, w_post2b) = params
    F = w_pre1b.shape[1]

    param_arrays = [ln_pack, dbias_pack, fbias_pack, bqkv,
                    w_pre1b, w_pre2b, wqkv, wob, w_post1b, w_post2b]
    param_bytes = sum(int(np.prod(a.shape)) * jnp.dtype(a.dtype).itemsize
                      for a in param_arrays)

    # Per-generation VMEM budget (v5e/v6e: 128 MiB, v7x: 64 MiB physical) with
    # ~20% headroom -- no fixed 48 MiB clamp, no double hedging.
    try:
        phys_vmem = int(pltpu.get_tpu_info().vmem_capacity_bytes)
    except Exception:
        phys_vmem = 64 * 2**20
    budget = int(phys_vmem * 0.8)

    x_isize = jnp.dtype(x.dtype).itemsize
    out_isize = x_isize
    score_isize = jnp.dtype(score_dtype).itemsize if return_scores else 0

    TB = _pick_batch_tile(B, S, D, F, param_bytes, budget,
                          x_isize, out_isize, score_isize, return_scores,
                          max_rows)
    grid = (B // TB,)

    kernel = _make_kernel(return_scores)

    if return_scores:
        out_shape = (jax.ShapeDtypeStruct((B, S, D), x.dtype),
                     jax.ShapeDtypeStruct((B, S, S), score_dtype))
    else:
        out_shape = jax.ShapeDtypeStruct((B, S, D), x.dtype)

    def build(param_buffer_count):
        def _full(shape):
            n = len(shape)
            if param_buffer_count == 1:
                # grid-invariant block -> single buffer (DMA'd once)
                return pl.BlockSpec(shape, lambda b, n=n: (0,) * n,
                                    pipeline_mode=pl.Buffered(1))
            return pl.BlockSpec(shape, lambda b, n=n: (0,) * n)

        in_specs = [pl.BlockSpec((TB, S, D), lambda b: (b, 0, 0))]
        in_specs += [_full(p.shape) for p in param_arrays]

        if return_scores:
            out_specs = (pl.BlockSpec((TB, S, D), lambda b: (b, 0, 0)),
                         pl.BlockSpec((TB, S, S), lambda b: (b, 0, 0)))
        else:
            out_specs = pl.BlockSpec((TB, S, D), lambda b: (b, 0, 0))

        return pl.pallas_call(
            kernel,
            out_shape=out_shape,
            grid_spec=pltpu.PrefetchScalarGridSpec(
                num_scalar_prefetch=0,
                grid=grid,
                in_specs=in_specs,
                out_specs=out_specs,
            ),
            compiler_params=pltpu.CompilerParams(
                dimension_semantics=("parallel",),
                vmem_limit_bytes=budget,
            ),
        )

    try:
        return build(1)(x, *param_arrays)
    except Exception:
        # Fallback: this jax build does not accept Buffered(1) on pallas_call
        # block specs; run with default double-buffered parameter blocks.
        return build(2)(x, *param_arrays)


# ---------------------------------------------------------------------------
# Pure-JAX f32 reference (same math as the PyTorch module) for a sanity check.
# ---------------------------------------------------------------------------
def kule_encoder_ref(x, params):
    (g_pre, be_pre, w_pre1, b_pre1, w_pre2, b_pre2,
     g_att, be_att, wq, bq, wk, bk, wv, bv, wo, bo,
     g_post, be_post, w_post1, b_post1, w_post2, b_post2,
     g_fin, be_fin) = params
    D = x.shape[-1]

    def ln(h, g, b):
        mu = jnp.mean(h, -1, keepdims=True)
        var = jnp.mean(jnp.square(h - mu), -1, keepdims=True)
        return (h - mu) / jnp.sqrt(var + 1e-5) * g + b

    def ff(h, g, b, w1, b1, w2, b2):
        return jnp.maximum(ln(h, g, b) @ w1 + b1, 0.0) @ w2 + b2

    x = ff(x, g_pre, be_pre, w_pre1, b_pre1, w_pre2, b_pre2)
    hn = ln(x, g_att, be_att)
    q, k, v = hn @ wq + bq, hn @ wk + bk, hn @ wv + bv
    s = jnp.einsum("bqd,bkd->bqk", q, k) / math.sqrt(D)
    p = jax.nn.softmax(s, axis=-1)
    x = jnp.einsum("bqk,bkd->bqd", p, v) @ wo + bo
    x = ff(x, g_post, be_post, w_post1, b_post1, w_post2, b_post2)
    x = ln(x, g_fin, be_fin)
    return x, p


# ---------------------------------------------------------------------------
def make_params(key, d_model, dim_ff):
    keys = jax.random.split(key, 10)
    scale = 0.02

    def w(k, shape):
        return (scale * jax.random.normal(k, shape)).astype(jnp.float32)

    ones_d = jnp.ones((1, d_model), jnp.float32)
    zeros_d = jnp.zeros((1, d_model), jnp.float32)
    zeros_f = jnp.zeros((1, dim_ff), jnp.float32)

    params = [
        # pre feed-forward
        ones_d, zeros_d,
        w(keys[0], (d_model, dim_ff)), zeros_f,
        w(keys[1], (dim_ff, d_model)), zeros_d,
        # attention
        ones_d, zeros_d,
        w(keys[2], (d_model, d_model)), zeros_d,   # Wq, bq
        w(keys[3], (d_model, d_model)), zeros_d,   # Wk, bk
        w(keys[4], (d_model, d_model)), zeros_d,   # Wv, bv
        w(keys[5], (d_model, d_model)), zeros_d,   # Wo, bo
        # post feed-forward
        ones_d, zeros_d,
        w(keys[6], (d_model, dim_ff)), zeros_f,
        w(keys[7], (dim_ff, d_model)), zeros_d,
        # final LayerNorm
        ones_d, zeros_d,
    ]
    return params


if __name__ == "__main__":
    B, S, D, F = 2, 8, 32, 64
    key = jax.random.PRNGKey(0)
    k_x, k_p = jax.random.split(key)

    x = jax.random.normal(k_x, (B, S, D), dtype=jnp.float32)
    params = make_params(k_p, D, F)

    # pack / cast weights once (outside any per-step loop)
    packed = pack_kule_params(params)

    out, score = kule_encoder(x, packed)
    out = jax.block_until_ready(out)
    score = jax.block_until_ready(score)

    ref_out, ref_score = kule_encoder_ref(x, params)
    # Kernel uses bf16 MXU inputs (f32 accumulation) + bf16 score output;
    # reference is pure f32, and chained LayerNorms amplify relative error,
    # so tolerances are wider than a bit-matched f32 comparison would use.
    np.testing.assert_allclose(np.asarray(out), np.asarray(ref_out),
                               rtol=5e-2, atol=5e-2)
    np.testing.assert_allclose(np.asarray(score.astype(jnp.float32)),
                               np.asarray(ref_score),
                               rtol=2e-2, atol=2e-2)

    print("KERNEL_OK")
</pallas_src>

<mosaic_0001>
module attributes {stable_mosaic.version = 11 : i64} {
  func.func @kernel(%arg0: i32, %arg1: memref<1x8x32xf32, #tpu.memory_space<vmem>>, %arg2: memref<8x32xf32, #tpu.memory_space<vmem>>, %arg3: memref<3x32xf32, #tpu.memory_space<vmem>>, %arg4: memref<2x64xf32, #tpu.memory_space<vmem>>, %arg5: memref<3x32xf32, #tpu.memory_space<vmem>>, %arg6: memref<32x64xbf16, #tpu.memory_space<vmem>>, %arg7: memref<64x32xbf16, #tpu.memory_space<vmem>>, %arg8: memref<3x32x32xbf16, #tpu.memory_space<vmem>>, %arg9: memref<32x32xbf16, #tpu.memory_space<vmem>>, %arg10: memref<32x64xbf16, #tpu.memory_space<vmem>>, %arg11: memref<64x32xbf16, #tpu.memory_space<vmem>>, %arg12: memref<1x8x32xf32, #tpu.memory_space<vmem>>, %arg13: memref<1x8x8xbf16, #tpu.memory_space<vmem>>) attributes {dimension_semantics = [#tpu.dimension_semantics<parallel>], iteration_bounds = array<i64: 2>, scalar_prefetch = 0 : i64, scratch_operands = 0 : i64, tpu.core_type = #tpu.core_type<tc>, window_params = [{transform_indices = @transform_0, window_bounds = array<i64: 1, 8, 32>}, {pipeline_mode = #tpu.pipeline_mode<synchronous>, transform_indices = @transform_1, window_bounds = array<i64: 8, 32>}, {pipeline_mode = #tpu.pipeline_mode<synchronous>, transform_indices = @transform_2, window_bounds = array<i64: 3, 32>}, {pipeline_mode = #tpu.pipeline_mode<synchronous>, transform_indices = @transform_3, window_bounds = array<i64: 2, 64>}, {pipeline_mode = #tpu.pipeline_mode<synchronous>, transform_indices = @transform_4, window_bounds = array<i64: 3, 32>}, {pipeline_mode = #tpu.pipeline_mode<synchronous>, transform_indices = @transform_5, window_bounds = array<i64: 32, 64>}, {pipeline_mode = #tpu.pipeline_mode<synchronous>, transform_indices = @transform_6, window_bounds = array<i64: 64, 32>}, {pipeline_mode = #tpu.pipeline_mode<synchronous>, transform_indices = @transform_7, window_bounds = array<i64: 3, 32, 32>}, {pipeline_mode = #tpu.pipeline_mode<synchronous>, transform_indices = @transform_8, window_bounds = array<i64: 32, 32>}, {pipeline_mode = #tpu.pipeline_mode<synchronous>, transform_indices = @transform_9, window_bounds = array<i64: 32, 64>}, {pipeline_mode = #tpu.pipeline_mode<synchronous>, transform_indices = @transform_10, window_bounds = array<i64: 64, 32>}, {transform_indices = @transform_11, window_bounds = array<i64: 1, 8, 32>}, {transform_indices = @transform_12, window_bounds = array<i64: 1, 8, 8>}]} {
    %c0 = arith.constant 0 : index
    %c0_0 = arith.constant 0 : index
    %0 = vector.load %arg2[%c0, %c0_0] : memref<8x32xf32, #tpu.memory_space<vmem>>, vector<8x32xf32>
    %c0_1 = arith.constant 0 : index
    %c0_2 = arith.constant 0 : index
    %1 = vector.load %arg3[%c0_1, %c0_2] : memref<3x32xf32, #tpu.memory_space<vmem>>, vector<3x32xf32>
    %c0_3 = arith.constant 0 : index
    %c0_4 = arith.constant 0 : index
    %2 = vector.load %arg4[%c0_3, %c0_4] : memref<2x64xf32, #tpu.memory_space<vmem>>, vector<2x64xf32>
    %c0_5 = arith.constant 0 : index
    %c0_6 = arith.constant 0 : index
    %3 = vector.load %arg5[%c0_5, %c0_6] : memref<3x32xf32, #tpu.memory_space<vmem>>, vector<3x32xf32>
    %c0_7 = arith.constant 0 : index
    %c0_8 = arith.constant 0 : index
    %c0_9 = arith.constant 0 : index
    %4 = vector.load %arg1[%c0_7, %c0_8, %c0_9] : memref<1x8x32xf32, #tpu.memory_space<vmem>>, vector<1x8x32xf32>
    %5 = vector.shape_cast %4 : vector<1x8x32xf32> to vector<8x32xf32>
    %6 = vector.extract_strided_slice %0 {offsets = [0, 0], sizes = [1, 32], strides = [1, 1]} : vector<8x32xf32> to vector<1x32xf32>
    %7 = vector.extract_strided_slice %0 {offsets = [1, 0], sizes = [1, 32], strides = [1, 1]} : vector<8x32xf32> to vector<1x32xf32>
    %c0_10 = arith.constant 0 : index
    %c0_11 = arith.constant 0 : index
    %8 = vector.load %arg6[%c0_10, %c0_11] : memref<32x64xbf16, #tpu.memory_space<vmem>>, vector<32x64xbf16>
    %9 = vector.extract_strided_slice %2 {offsets = [0, 0], sizes = [1, 64], strides = [1, 1]} : vector<2x64xf32> to vector<1x64xf32>
    %c0_12 = arith.constant 0 : index
    %c0_13 = arith.constant 0 : index
    %10 = vector.load %arg7[%c0_12, %c0_13] : memref<64x32xbf16, #tpu.memory_space<vmem>>, vector<64x32xbf16>
    %11 = vector.extract_strided_slice %1 {offsets = [0, 0], sizes = [1, 32], strides = [1, 1]} : vector<3x32xf32> to vector<1x32xf32>
    %cst = arith.constant dense<0.000000e+00> : vector<8xf32>
    %12 = vector.multi_reduction <add>, %5, %cst [1] : vector<8x32xf32> to vector<8xf32>
    %13 = vector.shape_cast %12 : vector<8xf32> to vector<8x1xf32>
    %cst_14 = arith.constant 3.200000e+01 : f32
    %14 = vector.broadcast %cst_14 : f32 to vector<8x1xf32>
    %15 = arith.divf %13, %14 : vector<8x1xf32>
    %16 = vector.broadcast %15 : vector<8x1xf32> to vector<8x32xf32>
    %17 = arith.subf %5, %16 : vector<8x32xf32>
    %18 = arith.mulf %17, %17 : vector<8x32xf32>
    %cst_15 = arith.constant dense<0.000000e+00> : vector<8xf32>
    %19 = vector.multi_reduction <add>, %18, %cst_15 [1] : vector<8x32xf32> to vector<8xf32>
    %20 = vector.shape_cast %19 : vector<8xf32> to vector<8x1xf32>
    %cst_16 = arith.constant 3.200000e+01 : f32
    %21 = vector.broadcast %cst_16 : f32 to vector<8x1xf32>
    %22 = arith.divf %20, %21 : vector<8x1xf32>
    %23 = vector.broadcast %15 : vector<8x1xf32> to vector<8x32xf32>
    %24 = arith.subf %5, %23 : vector<8x32xf32>
    %cst_17 = arith.constant 9.99999974E-6 : f32
    %25 = vector.broadcast %cst_17 : f32 to vector<8x1xf32>
    %26 = arith.addf %22, %25 : vector<8x1xf32>
    %27 = math.rsqrt %26 : vector<8x1xf32>
    %28 = vector.broadcast %27 : vector<8x1xf32> to vector<8x32xf32>
    %29 = arith.mulf %24, %28 : vector<8x32xf32>
    %30 = vector.broadcast %6 : vector<1x32xf32> to vector<8x32xf32>
    %31 = arith.mulf %29, %30 : vector<8x32xf32>
    %32 = vector.broadcast %7 : vector<1x32xf32> to vector<8x32xf32>
    %33 = arith.addf %31, %32 : vector<8x32xf32>
    %34 = arith.truncf %33 : vector<8x32xf32> to vector<8x32xbf16>
    %cst_18 = arith.constant dense<0.000000e+00> : vector<8x64xf32>
    %35 = tpu.matmul %34, %8, %cst_18 {dimension_numbers = #tpu.dot_dimension_numbers<[1], [0], [0], [1], [0, 0, 1, 1], [], []>} : vector<8x32xbf16>, vector<32x64xbf16>, vector<8x64xf32> -> vector<8x64xf32>
    %36 = vector.broadcast %9 : vector<1x64xf32> to vector<8x64xf32>
    %37 = arith.addf %35, %36 : vector<8x64xf32>
    %cst_19 = arith.constant 0.000000e+00 : f32
    %38 = vector.broadcast %cst_19 : f32 to vector<8x64xf32>
    %39 = arith.maximumf %37, %38 : vector<8x64xf32>
    %40 = arith.truncf %39 : vector<8x64xf32> to vector<8x64xbf16>
    %cst_20 = arith.constant dense<0.000000e+00> : vector<8x32xf32>
    %41 = tpu.matmul %40, %10, %cst_20 {dimension_numbers = #tpu.dot_dimension_numbers<[1], [0], [0], [1], [0, 0, 1, 1], [], []>} : vector<8x64xbf16>, vector<64x32xbf16>, vector<8x32xf32> -> vector<8x32xf32>
    %42 = vector.broadcast %11 : vector<1x32xf32> to vector<8x32xf32>
    %43 = arith.addf %41, %42 : vector<8x32xf32>
    %44 = vector.extract_strided_slice %0 {offsets = [2, 0], sizes = [1, 32], strides = [1, 1]} : vector<8x32xf32> to vector<1x32xf32>
    %45 = vector.extract_strided_slice %0 {offsets = [3, 0], sizes = [1, 32], strides = [1, 1]} : vector<8x32xf32> to vector<1x32xf32>
    %cst_21 = arith.constant dense<0.000000e+00> : vector<8xf32>
    %46 = vector.multi_reduction <add>, %43, %cst_21 [1] : vector<8x32xf32> to vector<8xf32>
    %47 = vector.shape_cast %46 : vector<8xf32> to vector<8x1xf32>
    %cst_22 = arith.constant 3.200000e+01 : f32
    %48 = vector.broadcast %cst_22 : f32 to vector<8x1xf32>
    %49 = arith.divf %47, %48 : vector<8x1xf32>
    %50 = vector.broadcast %49 : vector<8x1xf32> to vector<8x32xf32>
    %51 = arith.subf %43, %50 : vector<8x32xf32>
    %52 = arith.mulf %51, %51 : vector<8x32xf32>
    %cst_23 = arith.constant dense<0.000000e+00> : vector<8xf32>
    %53 = vector.multi_reduction <add>, %52, %cst_23 [1] : vector<8x32xf32> to vector<8xf32>
    %54 = vector.shape_cast %53 : vector<8xf32> to vector<8x1xf32>
    %cst_24 = arith.constant 3.200000e+01 : f32
    %55 = vector.broadcast %cst_24 : f32 to vector<8x1xf32>
    %56 = arith.divf %54, %55 : vector<8x1xf32>
    %57 = vector.broadcast %49 : vector<8x1xf32> to vector<8x32xf32>
    %58 = arith.subf %43, %57 : vector<8x32xf32>
    %cst_25 = arith.constant 9.99999974E-6 : f32
    %59 = vector.broadcast %cst_25 : f32 to vector<8x1xf32>
    %60 = arith.addf %56, %59 : vector<8x1xf32>
    %61 = math.rsqrt %60 : vector<8x1xf32>
    %62 = vector.broadcast %61 : vector<8x1xf32> to vector<8x32xf32>
    %63 = arith.mulf %58, %62 : vector<8x32xf32>
    %64 = vector.broadcast %44 : vector<1x32xf32> to vector<8x32xf32>
    %65 = arith.mulf %63, %64 : vector<8x32xf32>
    %66 = vector.broadcast %45 : vector<1x32xf32> to vector<8x32xf32>
    %67 = arith.addf %65, %66 : vector<8x32xf32>
    %68 = arith.truncf %67 : vector<8x32xf32> to vector<8x32xbf16>
    %c0_26 = arith.constant 0 : index
    %c0_27 = arith.constant 0 : index
    %c0_28 = arith.constant 0 : index
    %69 = vector.load %arg8[%c0_26, %c0_27, %c0_28] : memref<3x32x32xbf16, #tpu.memory_space<vmem>>, vector<1x32x32xbf16>
    %70 = vector.shape_cast %69 : vector<1x32x32xbf16> to vector<32x32xbf16>
    %cst_29 = arith.constant dense<0.000000e+00> : vector<8x32xf32>
    %71 = tpu.matmul %68, %70, %cst_29 {dimension_numbers = #tpu.dot_dimension_numbers<[1], [0], [0], [1], [0, 0, 1, 1], [], []>} : vector<8x32xbf16>, vector<32x32xbf16>, vector<8x32xf32> -> vector<8x32xf32>
    %72 = vector.extract_strided_slice %3 {offsets = [0, 0], sizes = [1, 32], strides = [1, 1]} : vector<3x32xf32> to vector<1x32xf32>
    %73 = vector.broadcast %72 : vector<1x32xf32> to vector<8x32xf32>
    %74 = arith.addf %71, %73 : vector<8x32xf32>
    %75 = vector.shape_cast %74 : vector<8x32xf32> to vector<1x8x32xf32>
    %c1 = arith.constant 1 : index
    %c0_30 = arith.constant 0 : index
    %c0_31 = arith.constant 0 : index
    %76 = vector.load %arg8[%c1, %c0_30, %c0_31] : memref<3x32x32xbf16, #tpu.memory_space<vmem>>, vector<1x32x32xbf16>
    %77 = vector.shape_cast %76 : vector<1x32x32xbf16> to vector<32x32xbf16>
    %cst_32 = arith.constant dense<0.000000e+00> : vector<8x32xf32>
    %78 = tpu.matmul %68, %77, %cst_32 {dimension_numbers = #tpu.dot_dimension_numbers<[1], [0], [0], [1], [0, 0, 1, 1], [], []>} : vector<8x32xbf16>, vector<32x32xbf16>, vector<8x32xf32> -> vector<8x32xf32>
    %79 = vector.extract_strided_slice %3 {offsets = [1, 0], sizes = [1, 32], strides = [1, 1]} : vector<3x32xf32> to vector<1x32xf32>
    %80 = vector.broadcast %79 : vector<1x32xf32> to vector<8x32xf32>
    %81 = arith.addf %78, %80 : vector<8x32xf32>
    %82 = vector.shape_cast %81 : vector<8x32xf32> to vector<1x8x32xf32>
    %c2 = arith.constant 2 : index
    %c0_33 = arith.constant 0 : index
    %c0_34 = arith.constant 0 : index
    %83 = vector.load %arg8[%c2, %c0_33, %c0_34] : memref<3x32x32xbf16, #tpu.memory_space<vmem>>, vector<1x32x32xbf16>
    %84 = vector.shape_cast %83 : vector<1x32x32xbf16> to vector<32x32xbf16>
    %cst_35 = arith.constant dense<0.000000e+00> : vector<8x32xf32>
    %85 = tpu.matmul %68, %84, %cst_35 {dimension_numbers = #tpu.dot_dimension_numbers<[1], [0], [0], [1], [0, 0, 1, 1], [], []>} : vector<8x32xbf16>, vector<32x32xbf16>, vector<8x32xf32> -> vector<8x32xf32>
    %86 = vector.extract_strided_slice %3 {offsets = [2, 0], sizes = [1, 32], strides = [1, 1]} : vector<3x32xf32> to vector<1x32xf32>
    %87 = vector.broadcast %86 : vector<1x32xf32> to vector<8x32xf32>
    %88 = arith.addf %85, %87 : vector<8x32xf32>
    %89 = vector.shape_cast %88 : vector<8x32xf32> to vector<1x8x32xf32>
    %90 = arith.truncf %75 : vector<1x8x32xf32> to vector<1x8x32xbf16>
    %91 = arith.truncf %82 : vector<1x8x32xf32> to vector<1x8x32xbf16>
    "tpu.trace_start"() <{level = 10 : i32, message = "bqd,bkd->bqk"}> : () -> ()
    %cst_36 = arith.constant dense<0.000000e+00> : vector<1x8x8xf32>
    %92 = tpu.matmul %90, %91, %cst_36 {dimension_numbers = #tpu.dot_dimension_numbers<[2], [2], [1], [1], [0, 0, 0, 1, 1, 1], [0], [0]>} : vector<1x8x32xbf16>, vector<1x8x32xbf16>, vector<1x8x8xf32> -> vector<1x8x8xf32>
    "tpu.trace_stop"() : () -> ()
    %cst_37 = arith.constant dense<0xFF800000> : vector<1x8xf32>
    %93 = vector.multi_reduction <maximumf>, %92, %cst_37 [2] : vector<1x8x8xf32> to vector<1x8xf32>
    %94 = vector.shape_cast %93 : vector<1x8xf32> to vector<1x8x1xf32>
    %95 = vector.broadcast %94 : vector<1x8x1xf32> to vector<1x8x8xf32>
    %96 = arith.subf %92, %95 : vector<1x8x8xf32>
    %97 = math.exp %96 : vector<1x8x8xf32>
    %cst_38 = arith.constant dense<0.000000e+00> : vector<1x8xf32>
    %98 = vector.multi_reduction <add>, %97, %cst_38 [2] : vector<1x8x8xf32> to vector<1x8xf32>
    %99 = vector.shape_cast %98 : vector<1x8xf32> to vector<1x8x1xf32>
    %100 = tpu.reciprocal %99 {approx = true} : vector<1x8x1xf32> -> vector<1x8x1xf32>
    %101 = vector.broadcast %100 : vector<1x8x1xf32> to vector<1x8x8xf32>
    %102 = arith.mulf %97, %101 : vector<1x8x8xf32>
    %103 = arith.truncf %102 : vector<1x8x8xf32> to vector<1x8x8xbf16>
    %c0_39 = arith.constant 0 : index
    %c0_40 = arith.constant 0 : index
    %c0_41 = arith.constant 0 : index
    %104 = vector.load %arg13[%c0_39, %c0_40, %c0_41] : memref<1x8x8xbf16, #tpu.memory_space<vmem>>, vector<1x8x8xbf16>
    tpu.vector_store %arg13[%c0_39, %c0_40, %c0_41], %103 {strides = array<i32>} : memref<1x8x8xbf16, #tpu.memory_space<vmem>>, vector<1x8x8xbf16>,
    %105 = arith.truncf %102 : vector<1x8x8xf32> to vector<1x8x8xbf16>
    %106 = arith.truncf %89 : vector<1x8x32xf32> to vector<1x8x32xbf16>
    "tpu.trace_start"() <{level = 10 : i32, message = "bqk,bkd->bqd"}> : () -> ()
    %cst_42 = arith.constant dense<0.000000e+00> : vector<1x8x32xf32>
    %107 = tpu.matmul %105, %106, %cst_42 {dimension_numbers = #tpu.dot_dimension_numbers<[2], [1], [1], [2], [0, 0, 0, 1, 1, 2], [0], [0]>} : vector<1x8x8xbf16>, vector<1x8x32xbf16>, vector<1x8x32xf32> -> vector<1x8x32xf32>
    "tpu.trace_stop"() : () -> ()
    %108 = vector.shape_cast %107 : vector<1x8x32xf32> to vector<8x32xf32>
    %109 = arith.truncf %108 : vector<8x32xf32> to vector<8x32xbf16>
    %c0_43 = arith.constant 0 : index
    %c0_44 = arith.constant 0 : index
    %110 = vector.load %arg9[%c0_43, %c0_44] : memref<32x32xbf16, #tpu.memory_space<vmem>>, vector<32x32xbf16>
    %cst_45 = arith.constant dense<0.000000e+00> : vector<8x32xf32>
    %111 = tpu.matmul %109, %110, %cst_45 {dimension_numbers = #tpu.dot_dimension_numbers<[1], [0], [0], [1], [0, 0, 1, 1], [], []>} : vector<8x32xbf16>, vector<32x32xbf16>, vector<8x32xf32> -> vector<8x32xf32>
    %112 = vector.extract_strided_slice %1 {offsets = [1, 0], sizes = [1, 32], strides = [1, 1]} : vector<3x32xf32> to vector<1x32xf32>
    %113 = vector.broadcast %112 : vector<1x32xf32> to vector<8x32xf32>
    %114 = arith.addf %111, %113 : vector<8x32xf32>
    %115 = vector.extract_strided_slice %0 {offsets = [4, 0], sizes = [1, 32], strides = [1, 1]} : vector<8x32xf32> to vector<1x32xf32>
    %116 = vector.extract_strided_slice %0 {offsets = [5, 0], sizes = [1, 32], strides = [1, 1]} : vector<8x32xf32> to vector<1x32xf32>
    %c0_46 = arith.constant 0 : index
    %c0_47 = arith.constant 0 : index
    %117 = vector.load %arg10[%c0_46, %c0_47] : memref<32x64xbf16, #tpu.memory_space<vmem>>, vector<32x64xbf16>
    %118 = vector.extract_strided_slice %2 {offsets = [1, 0], sizes = [1, 64], strides = [1, 1]} : vector<2x64xf32> to vector<1x64xf32>
    %c0_48 = arith.constant 0 : index
    %c0_49 = arith.constant 0 : index
    %119 = vector.load %arg11[%c0_48, %c0_49] : memref<64x32xbf16, #tpu.memory_space<vmem>>, vector<64x32xbf16>
    %120 = vector.extract_strided_slice %1 {offsets = [2, 0], sizes = [1, 32], strides = [1, 1]} : vector<3x32xf32> to vector<1x32xf32>
    %cst_50 = arith.constant dense<0.000000e+00> : vector<8xf32>
    %121 = vector.multi_reduction <add>, %114, %cst_50 [1] : vector<8x32xf32> to vector<8xf32>
    %122 = vector.shape_cast %121 : vector<8xf32> to vector<8x1xf32>
    %cst_51 = arith.constant 3.200000e+01 : f32
    %123 = vector.broadcast %cst_51 : f32 to vector<8x1xf32>
    %124 = arith.divf %122, %123 : vector<8x1xf32>
    %125 = vector.broadcast %124 : vector<8x1xf32> to vector<8x32xf32>
    %126 = arith.subf %114, %125 : vector<8x32xf32>
    %127 = arith.mulf %126, %126 : vector<8x32xf32>
    %cst_52 = arith.constant dense<0.000000e+00> : vector<8xf32>
    %128 = vector.multi_reduction <add>, %127, %cst_52 [1] : vector<8x32xf32> to vector<8xf32>
    %129 = vector.shape_cast %128 : vector<8xf32> to vector<8x1xf32>
    %cst_53 = arith.constant 3.200000e+01 : f32
    %130 = vector.broadcast %cst_53 : f32 to vector<8x1xf32>
    %131 = arith.divf %129, %130 : vector<8x1xf32>
    %132 = vector.broadcast %124 : vector<8x1xf32> to vector<8x32xf32>
    %133 = arith.subf %114, %132 : vector<8x32xf32>
    %cst_54 = arith.constant 9.99999974E-6 : f32
    %134 = vector.broadcast %cst_54 : f32 to vector<8x1xf32>
    %135 = arith.addf %131, %134 : vector<8x1xf32>
    %136 = math.rsqrt %135 : vector<8x1xf32>
    %137 = vector.broadcast %136 : vector<8x1xf32> to vector<8x32xf32>
    %138 = arith.mulf %133, %137 : vector<8x32xf32>
    %139 = vector.broadcast %115 : vector<1x32xf32> to vector<8x32xf32>
    %140 = arith.mulf %138, %139 : vector<8x32xf32>
    %141 = vector.broadcast %116 : vector<1x32xf32> to vector<8x32xf32>
    %142 = arith.addf %140, %141 : vector<8x32xf32>
    %143 = arith.truncf %142 : vector<8x32xf32> to vector<8x32xbf16>
    %cst_55 = arith.constant dense<0.000000e+00> : vector<8x64xf32>
    %144 = tpu.matmul %143, %117, %cst_55 {dimension_numbers = #tpu.dot_dimension_numbers<[1], [0], [0], [1], [0, 0, 1, 1], [], []>} : vector<8x32xbf16>, vector<32x64xbf16>, vector<8x64xf32> -> vector<8x64xf32>
    %145 = vector.broadcast %118 : vector<1x64xf32> to vector<8x64xf32>
    %146 = arith.addf %144, %145 : vector<8x64xf32>
    %cst_56 = arith.constant 0.000000e+00 : f32
    %147 = vector.broadcast %cst_56 : f32 to vector<8x64xf32>
    %148 = arith.maximumf %146, %147 : vector<8x64xf32>
    %149 = arith.truncf %148 : vector<8x64xf32> to vector<8x64xbf16>
    %cst_57 = arith.constant dense<0.000000e+00> : vector<8x32xf32>
    %150 = tpu.matmul %149, %119, %cst_57 {dimension_numbers = #tpu.dot_dimension_numbers<[1], [0], [0], [1], [0, 0, 1, 1], [], []>} : vector<8x64xbf16>, vector<64x32xbf16>, vector<8x32xf32> -> vector<8x32xf32>
    %151 = vector.broadcast %120 : vector<1x32xf32> to vector<8x32xf32>
    %152 = arith.addf %150, %151 : vector<8x32xf32>
    %153 = vector.extract_strided_slice %0 {offsets = [6, 0], sizes = [1, 32], strides = [1, 1]} : vector<8x32xf32> to vector<1x32xf32>
    %154 = vector.extract_strided_slice %0 {offsets = [7, 0], sizes = [1, 32], strides = [1, 1]} : vector<8x32xf32> to vector<1x32xf32>
    %cst_58 = arith.constant dense<0.000000e+00> : vector<8xf32>
    %155 = vector.multi_reduction <add>, %152, %cst_58 [1] : vector<8x32xf32> to vector<8xf32>
    %156 = vector.shape_cast %155 : vector<8xf32> to vector<8x1xf32>
    %cst_59 = arith.constant 3.200000e+01 : f32
    %157 = vector.broadcast %cst_59 : f32 to vector<8x1xf32>
    %158 = arith.divf %156, %157 : vector<8x1xf32>
    %159 = vector.broadcast %158 : vector<8x1xf32> to vector<8x32xf32>
    %160 = arith.subf %152, %159 : vector<8x32xf32>
    %161 = arith.mulf %160, %160 : vector<8x32xf32>
    %cst_60 = arith.constant dense<0.000000e+00> : vector<8xf32>
    %162 = vector.multi_reduction <add>, %161, %cst_60 [1] : vector<8x32xf32> to vector<8xf32>
    %163 = vector.shape_cast %162 : vector<8xf32> to vector<8x1xf32>
    %cst_61 = arith.constant 3.200000e+01 : f32
    %164 = vector.broadcast %cst_61 : f32 to vector<8x1xf32>
    %165 = arith.divf %163, %164 : vector<8x1xf32>
    %166 = vector.broadcast %158 : vector<8x1xf32> to vector<8x32xf32>
    %167 = arith.subf %152, %166 : vector<8x32xf32>
    %cst_62 = arith.constant 9.99999974E-6 : f32
    %168 = vector.broadcast %cst_62 : f32 to vector<8x1xf32>
    %169 = arith.addf %165, %168 : vector<8x1xf32>
    %170 = math.rsqrt %169 : vector<8x1xf32>
    %171 = vector.broadcast %170 : vector<8x1xf32> to vector<8x32xf32>
    %172 = arith.mulf %167, %171 : vector<8x32xf32>
    %173 = vector.broadcast %153 : vector<1x32xf32> to vector<8x32xf32>
    %174 = arith.mulf %172, %173 : vector<8x32xf32>
    %175 = vector.broadcast %154 : vector<1x32xf32> to vector<8x32xf32>
    %176 = arith.addf %174, %175 : vector<8x32xf32>
    %177 = vector.shape_cast %176 : vector<8x32xf32> to vector<1x8x32xf32>
    %c0_63 = arith.constant 0 : index
    %c0_64 = arith.constant 0 : index
    %c0_65 = arith.constant 0 : index
    %178 = vector.load %arg12[%c0_63, %c0_64, %c0_65] : memref<1x8x32xf32, #tpu.memory_space<vmem>>, vector<1x8x32xf32>
    tpu.vector_store %arg12[%c0_63, %c0_64, %c0_65], %177 {strides = array<i32>} : memref<1x8x32xf32, #tpu.memory_space<vmem>>, vector<1x8x32xf32>,
    return
  }
  func.func @transform_0(%arg0: i32) -> (i32, i32, i32) {
    %c0_i32 = arith.constant 0 : i32
    %c0_i32_0 = arith.constant 0 : i32
    %c0_i32_1 = arith.constant 0 : i32
    return %arg0, %c0_i32, %c0_i32_0 : i32, i32, i32
  }
  func.func @transform_1(%arg0: i32) -> (i32, i32) {
    %c0_i32 = arith.constant 0 : i32
    %c0_i32_0 = arith.constant 0 : i32
    %c0_i32_1 = arith.constant 0 : i32
    return %c0_i32, %c0_i32_0 : i32, i32
  }
  func.func @transform_2(%arg0: i32) -> (i32, i32) {
    %c0_i32 = arith.constant 0 : i32
    %c0_i32_0 = arith.constant 0 : i32
    %c0_i32_1 = arith.constant 0 : i32
    return %c0_i32, %c0_i32_0 : i32, i32
  }
  func.func @transform_3(%arg0: i32) -> (i32, i32) {
    %c0_i32 = arith.constant 0 : i32
    %c0_i32_0 = arith.constant 0 : i32
    %c0_i32_1 = arith.constant 0 : i32
    return %c0_i32, %c0_i32_0 : i32, i32
  }
  func.func @transform_4(%arg0: i32) -> (i32, i32) {
    %c0_i32 = arith.constant 0 : i32
    %c0_i32_0 = arith.constant 0 : i32
    %c0_i32_1 = arith.constant 0 : i32
    return %c0_i32, %c0_i32_0 : i32, i32
  }
  func.func @transform_5(%arg0: i32) -> (i32, i32) {
    %c0_i32 = arith.constant 0 : i32
    %c0_i32_0 = arith.constant 0 : i32
    %c0_i32_1 = arith.constant 0 : i32
    return %c0_i32, %c0_i32_0 : i32, i32
  }
  func.func @transform_6(%arg0: i32) -> (i32, i32) {
    %c0_i32 = arith.constant 0 : i32
    %c0_i32_0 = arith.constant 0 : i32
    %c0_i32_1 = arith.constant 0 : i32
    return %c0_i32, %c0_i32_0 : i32, i32
  }
  func.func @transform_7(%arg0: i32) -> (i32, i32, i32) {
    %c0_i32 = arith.constant 0 : i32
    %c0_i32_0 = arith.constant 0 : i32
    %c0_i32_1 = arith.constant 0 : i32
    %c0_i32_2 = arith.constant 0 : i32
    return %c0_i32, %c0_i32_0, %c0_i32_1 : i32, i32, i32
  }
  func.func @transform_8(%arg0: i32) -> (i32, i32) {
    %c0_i32 = arith.constant 0 : i32
    %c0_i32_0 = arith.constant 0 : i32
    %c0_i32_1 = arith.constant 0 : i32
    return %c0_i32, %c0_i32_0 : i32, i32
  }
  func.func @transform_9(%arg0: i32) -> (i32, i32) {
    %c0_i32 = arith.constant 0 : i32
    %c0_i32_0 = arith.constant 0 : i32
    %c0_i32_1 = arith.constant 0 : i32
    return %c0_i32, %c0_i32_0 : i32, i32
  }
  func.func @transform_10(%arg0: i32) -> (i32, i32) {
    %c0_i32 = arith.constant 0 : i32
    %c0_i32_0 = arith.constant 0 : i32
    %c0_i32_1 = arith.constant 0 : i32
    return %c0_i32, %c0_i32_0 : i32, i32
  }
  func.func @transform_11(%arg0: i32) -> (i32, i32, i32) {
    %c0_i32 = arith.constant 0 : i32
    %c0_i32_0 = arith.constant 0 : i32
    %c0_i32_1 = arith.constant 0 : i32
    return %arg0, %c0_i32, %c0_i32_0 : i32, i32, i32
  }
  func.func @transform_12(%arg0: i32) -> (i32, i32, i32) {
    %c0_i32 = arith.constant 0 : i32
    %c0_i32_0 = arith.constant 0 : i32
    %c0_i32_1 = arith.constant 0 : i32
    return %arg0, %c0_i32, %c0_i32_0 : i32, i32, i32
  }
}

module attributes {stable_mosaic.version = 11 : i64} {
  func.func @kernel(%arg0: i32, %arg1: memref<1x8x32xf32, #tpu.memory_space<vmem>>, %arg2: memref<8x32xf32, #tpu.memory_space<vmem>>, %arg3: memref<3x32xf32, #tpu.memory_space<vmem>>, %arg4: memref<2x64xf32, #tpu.memory_space<vmem>>, %arg5: memref<3x32xf32, #tpu.memory_space<vmem>>, %arg6: memref<32x64xbf16, #tpu.memory_space<vmem>>, %arg7: memref<64x32xbf16, #tpu.memory_space<vmem>>, %arg8: memref<3x32x32xbf16, #tpu.memory_space<vmem>>, %arg9: memref<32x32xbf16, #tpu.memory_space<vmem>>, %arg10: memref<32x64xbf16, #tpu.memory_space<vmem>>, %arg11: memref<64x32xbf16, #tpu.memory_space<vmem>>, %arg12: memref<1x8x32xf32, #tpu.memory_space<vmem>>, %arg13: memref<1x8x8xbf16, #tpu.memory_space<vmem>>) attributes {dimension_semantics = [#tpu.dimension_semantics<parallel>], iteration_bounds = array<i64: 2>, scalar_prefetch = 0 : i64, scratch_operands = 0 : i64, tpu.core_type = #tpu.core_type<tc>, window_params = [{transform_indices = @transform_0, window_bounds = array<i64: 1, 8, 32>}, {pipeline_mode = #tpu.pipeline_mode<synchronous>, transform_indices = @transform_1, window_bounds = array<i64: 8, 32>}, {pipeline_mode = #tpu.pipeline_mode<synchronous>, transform_indices = @transform_2, window_bounds = array<i64: 3, 32>}, {pipeline_mode = #tpu.pipeline_mode<synchronous>, transform_indices = @transform_3, window_bounds = array<i64: 2, 64>}, {pipeline_mode = #tpu.pipeline_mode<synchronous>, transform_indices = @transform_4, window_bounds = array<i64: 3, 32>}, {pipeline_mode = #tpu.pipeline_mode<synchronous>, transform_indices = @transform_5, window_bounds = array<i64: 32, 64>}, {pipeline_mode = #tpu.pipeline_mode<synchronous>, transform_indices = @transform_6, window_bounds = array<i64: 64, 32>}, {pipeline_mode = #tpu.pipeline_mode<synchronous>, transform_indices = @transform_7, window_bounds = array<i64: 3, 32, 32>}, {pipeline_mode = #tpu.pipeline_mode<synchronous>, transform_indices = @transform_8, window_bounds = array<i64: 32, 32>}, {pipeline_mode = #tpu.pipeline_mode<synchronous>, transform_indices = @transform_9, window_bounds = array<i64: 32, 64>}, {pipeline_mode = #tpu.pipeline_mode<synchronous>, transform_indices = @transform_10, window_bounds = array<i64: 64, 32>}, {transform_indices = @transform_11, window_bounds = array<i64: 1, 8, 32>}, {transform_indices = @transform_12, window_bounds = array<i64: 1, 8, 8>}]} {
    %c0 = arith.constant 0 : index
    %c0_0 = arith.constant 0 : index
    %0 = vector.load %arg2[%c0, %c0_0] : memref<8x32xf32, #tpu.memory_space<vmem>>, vector<8x32xf32>
    %c0_1 = arith.constant 0 : index
    %c0_2 = arith.constant 0 : index
    %1 = vector.load %arg3[%c0_1, %c0_2] : memref<3x32xf32, #tpu.memory_space<vmem>>, vector<3x32xf32>
    %c0_3 = arith.constant 0 : index
    %c0_4 = arith.constant 0 : index
    %2 = vector.load %arg4[%c0_3, %c0_4] : memref<2x64xf32, #tpu.memory_space<vmem>>, vector<2x64xf32>
    %c0_5 = arith.constant 0 : index
    %c0_6 = arith.constant 0 : index
    %3 = vector.load %arg5[%c0_5, %c0_6] : memref<3x32xf32, #tpu.memory_space<vmem>>, vector<3x32xf32>
    %c0_7 = arith.constant 0 : index
    %c0_8 = arith.constant 0 : index
    %c0_9 = arith.constant 0 : index
    %4 = vector.load %arg1[%c0_7, %c0_8, %c0_9] : memref<1x8x32xf32, #tpu.memory_space<vmem>>, vector<1x8x32xf32>
    %5 = vector.shape_cast %4 : vector<1x8x32xf32> to vector<8x32xf32>
    %6 = vector.extract_strided_slice %0 {offsets = [0, 0], sizes = [1, 32], strides = [1, 1]} : vector<8x32xf32> to vector<1x32xf32>
    %7 = vector.extract_strided_slice %0 {offsets = [1, 0], sizes = [1, 32], strides = [1, 1]} : vector<8x32xf32> to vector<1x32xf32>
    %c0_10 = arith.constant 0 : index
    %c0_11 = arith.constant 0 : index
    %8 = vector.load %arg6[%c0_10, %c0_11] : memref<32x64xbf16, #tpu.memory_space<vmem>>, vector<32x64xbf16>
    %9 = vector.extract_strided_slice %2 {offsets = [0, 0], sizes = [1, 64], strides = [1, 1]} : vector<2x64xf32> to vector<1x64xf32>
    %c0_12 = arith.constant 0 : index
    %c0_13 = arith.constant 0 : index
    %10 = vector.load %arg7[%c0_12, %c0_13] : memref<64x32xbf16, #tpu.memory_space<vmem>>, vector<64x32xbf16>
    %11 = vector.extract_strided_slice %1 {offsets = [0, 0], sizes = [1, 32], strides = [1, 1]} : vector<3x32xf32> to vector<1x32xf32>
    %cst = arith.constant dense<0.000000e+00> : vector<8xf32>
    %12 = vector.multi_reduction <add>, %5, %cst [1] : vector<8x32xf32> to vector<8xf32>
    %13 = vector.shape_cast %12 : vector<8xf32> to vector<8x1xf32>
    %cst_14 = arith.constant 3.200000e+01 : f32
    %14 = vector.broadcast %cst_14 : f32 to vector<8x1xf32>
    %15 = arith.divf %13, %14 : vector<8x1xf32>
    %16 = vector.broadcast %15 : vector<8x1xf32> to vector<8x32xf32>
    %17 = arith.subf %5, %16 : vector<8x32xf32>
    %18 = arith.mulf %17, %17 : vector<8x32xf32>
    %cst_15 = arith.constant dense<0.000000e+00> : vector<8xf32>
    %19 = vector.multi_reduction <add>, %18, %cst_15 [1] : vector<8x32xf32> to vector<8xf32>
    %20 = vector.shape_cast %19 : vector<8xf32> to vector<8x1xf32>
    %cst_16 = arith.constant 3.200000e+01 : f32
    %21 = vector.broadcast %cst_16 : f32 to vector<8x1xf32>
    %22 = arith.divf %20, %21 : vector<8x1xf32>
    %23 = vector.broadcast %15 : vector<8x1xf32> to vector<8x32xf32>
    %24 = arith.subf %5, %23 : vector<8x32xf32>
    %cst_17 = arith.constant 9.99999974E-6 : f32
    %25 = vector.broadcast %cst_17 : f32 to vector<8x1xf32>
    %26 = arith.addf %22, %25 : vector<8x1xf32>
    %27 = math.rsqrt %26 : vector<8x1xf32>
    %28 = vector.broadcast %27 : vector<8x1xf32> to vector<8x32xf32>
    %29 = arith.mulf %24, %28 : vector<8x32xf32>
    %30 = vector.broadcast %6 : vector<1x32xf32> to vector<8x32xf32>
    %31 = arith.mulf %29, %30 : vector<8x32xf32>
    %32 = vector.broadcast %7 : vector<1x32xf32> to vector<8x32xf32>
    %33 = arith.addf %31, %32 : vector<8x32xf32>
    %34 = arith.truncf %33 : vector<8x32xf32> to vector<8x32xbf16>
    %cst_18 = arith.constant dense<0.000000e+00> : vector<8x64xf32>
    %35 = tpu.matmul %34, %8, %cst_18 {dimension_numbers = #tpu.dot_dimension_numbers<[1], [0], [0], [1], [0, 0, 1, 1], [], []>} : vector<8x32xbf16>, vector<32x64xbf16>, vector<8x64xf32> -> vector<8x64xf32>
    %36 = vector.broadcast %9 : vector<1x64xf32> to vector<8x64xf32>
    %37 = arith.addf %35, %36 : vector<8x64xf32>
    %cst_19 = arith.constant 0.000000e+00 : f32
    %38 = vector.broadcast %cst_19 : f32 to vector<8x64xf32>
    %39 = arith.maximumf %37, %38 : vector<8x64xf32>
    %40 = arith.truncf %39 : vector<8x64xf32> to vector<8x64xbf16>
    %cst_20 = arith.constant dense<0.000000e+00> : vector<8x32xf32>
    %41 = tpu.matmul %40, %10, %cst_20 {dimension_numbers = #tpu.dot_dimension_numbers<[1], [0], [0], [1], [0, 0, 1, 1], [], []>} : vector<8x64xbf16>, vector<64x32xbf16>, vector<8x32xf32> -> vector<8x32xf32>
    %42 = vector.broadcast %11 : vector<1x32xf32> to vector<8x32xf32>
    %43 = arith.addf %41, %42 : vector<8x32xf32>
    %44 = vector.extract_strided_slice %0 {offsets = [2, 0], sizes = [1, 32], strides = [1, 1]} : vector<8x32xf32> to vector<1x32xf32>
    %45 = vector.extract_strided_slice %0 {offsets = [3, 0], sizes = [1, 32], strides = [1, 1]} : vector<8x32xf32> to vector<1x32xf32>
    %cst_21 = arith.constant dense<0.000000e+00> : vector<8xf32>
    %46 = vector.multi_reduction <add>, %43, %cst_21 [1] : vector<8x32xf32> to vector<8xf32>
    %47 = vector.shape_cast %46 : vector<8xf32> to vector<8x1xf32>
    %cst_22 = arith.constant 3.200000e+01 : f32
    %48 = vector.broadcast %cst_22 : f32 to vector<8x1xf32>
    %49 = arith.divf %47, %48 : vector<8x1xf32>
    %50 = vector.broadcast %49 : vector<8x1xf32> to vector<8x32xf32>
    %51 = arith.subf %43, %50 : vector<8x32xf32>
    %52 = arith.mulf %51, %51 : vector<8x32xf32>
    %cst_23 = arith.constant dense<0.000000e+00> : vector<8xf32>
    %53 = vector.multi_reduction <add>, %52, %cst_23 [1] : vector<8x32xf32> to vector<8xf32>
    %54 = vector.shape_cast %53 : vector<8xf32> to vector<8x1xf32>
    %cst_24 = arith.constant 3.200000e+01 : f32
    %55 = vector.broadcast %cst_24 : f32 to vector<8x1xf32>
    %56 = arith.divf %54, %55 : vector<8x1xf32>
    %57 = vector.broadcast %49 : vector<8x1xf32> to vector<8x32xf32>
    %58 = arith.subf %43, %57 : vector<8x32xf32>
    %cst_25 = arith.constant 9.99999974E-6 : f32
    %59 = vector.broadcast %cst_25 : f32 to vector<8x1xf32>
    %60 = arith.addf %56, %59 : vector<8x1xf32>
    %61 = math.rsqrt %60 : vector<8x1xf32>
    %62 = vector.broadcast %61 : vector<8x1xf32> to vector<8x32xf32>
    %63 = arith.mulf %58, %62 : vector<8x32xf32>
    %64 = vector.broadcast %44 : vector<1x32xf32> to vector<8x32xf32>
    %65 = arith.mulf %63, %64 : vector<8x32xf32>
    %66 = vector.broadcast %45 : vector<1x32xf32> to vector<8x32xf32>
    %67 = arith.addf %65, %66 : vector<8x32xf32>
    %68 = arith.truncf %67 : vector<8x32xf32> to vector<8x32xbf16>
    %c0_26 = arith.constant 0 : index
    %c0_27 = arith.constant 0 : index
    %c0_28 = arith.constant 0 : index
    %69 = vector.load %arg8[%c0_26, %c0_27, %c0_28] : memref<3x32x32xbf16, #tpu.memory_space<vmem>>, vector<1x32x32xbf16>
    %70 = vector.shape_cast %69 : vector<1x32x32xbf16> to vector<32x32xbf16>
    %cst_29 = arith.constant dense<0.000000e+00> : vector<8x32xf32>
    %71 = tpu.matmul %68, %70, %cst_29 {dimension_numbers = #tpu.dot_dimension_numbers<[1], [0], [0], [1], [0, 0, 1, 1], [], []>} : vector<8x32xbf16>, vector<32x32xbf16>, vector<8x32xf32> -> vector<8x32xf32>
    %72 = vector.extract_strided_slice %3 {offsets = [0, 0], sizes = [1, 32], strides = [1, 1]} : vector<3x32xf32> to vector<1x32xf32>
    %73 = vector.broadcast %72 : vector<1x32xf32> to vector<8x32xf32>
    %74 = arith.addf %71, %73 : vector<8x32xf32>
    %75 = vector.shape_cast %74 : vector<8x32xf32> to vector<1x8x32xf32>
    %c1 = arith.constant 1 : index
    %c0_30 = arith.constant 0 : index
    %c0_31 = arith.constant 0 : index
    %76 = vector.load %arg8[%c1, %c0_30, %c0_31] : memref<3x32x32xbf16, #tpu.memory_space<vmem>>, vector<1x32x32xbf16>
    %77 = vector.shape_cast %76 : vector<1x32x32xbf16> to vector<32x32xbf16>
    %cst_32 = arith.constant dense<0.000000e+00> : vector<8x32xf32>
    %78 = tpu.matmul %68, %77, %cst_32 {dimension_numbers = #tpu.dot_dimension_numbers<[1], [0], [0], [1], [0, 0, 1, 1], [], []>} : vector<8x32xbf16>, vector<32x32xbf16>, vector<8x32xf32> -> vector<8x32xf32>
    %79 = vector.extract_strided_slice %3 {offsets = [1, 0], sizes = [1, 32], strides = [1, 1]} : vector<3x32xf32> to vector<1x32xf32>
    %80 = vector.broadcast %79 : vector<1x32xf32> to vector<8x32xf32>
    %81 = arith.addf %78, %80 : vector<8x32xf32>
    %82 = vector.shape_cast %81 : vector<8x32xf32> to vector<1x8x32xf32>
    %c2 = arith.constant 2 : index
    %c0_33 = arith.constant 0 : index
    %c0_34 = arith.constant 0 : index
    %83 = vector.load %arg8[%c2, %c0_33, %c0_34] : memref<3x32x32xbf16, #tpu.memory_space<vmem>>, vector<1x32x32xbf16>
    %84 = vector.shape_cast %83 : vector<1x32x32xbf16> to vector<32x32xbf16>
    %cst_35 = arith.constant dense<0.000000e+00> : vector<8x32xf32>
    %85 = tpu.matmul %68, %84, %cst_35 {dimension_numbers = #tpu.dot_dimension_numbers<[1], [0], [0], [1], [0, 0, 1, 1], [], []>} : vector<8x32xbf16>, vector<32x32xbf16>, vector<8x32xf32> -> vector<8x32xf32>
    %86 = vector.extract_strided_slice %3 {offsets = [2, 0], sizes = [1, 32], strides = [1, 1]} : vector<3x32xf32> to vector<1x32xf32>
    %87 = vector.broadcast %86 : vector<1x32xf32> to vector<8x32xf32>
    %88 = arith.addf %85, %87 : vector<8x32xf32>
    %89 = vector.shape_cast %88 : vector<8x32xf32> to vector<1x8x32xf32>
    %90 = arith.truncf %75 : vector<1x8x32xf32> to vector<1x8x32xbf16>
    %91 = arith.truncf %82 : vector<1x8x32xf32> to vector<1x8x32xbf16>
    "tpu.trace_start"() <{level = 10 : i32, message = "bqd,bkd->bqk"}> : () -> ()
    %cst_36 = arith.constant dense<0.000000e+00> : vector<1x8x8xf32>
    %92 = tpu.matmul %90, %91, %cst_36 {dimension_numbers = #tpu.dot_dimension_numbers<[2], [2], [1], [1], [0, 0, 0, 1, 1, 1], [0], [0]>} : vector<1x8x32xbf16>, vector<1x8x32xbf16>, vector<1x8x8xf32> -> vector<1x8x8xf32>
    "tpu.trace_stop"() : () -> ()
    %cst_37 = arith.constant dense<0xFF800000> : vector<1x8xf32>
    %93 = vector.multi_reduction <maximumf>, %92, %cst_37 [2] : vector<1x8x8xf32> to vector<1x8xf32>
    %94 = vector.shape_cast %93 : vector<1x8xf32> to vector<1x8x1xf32>
    %95 = vector.broadcast %94 : vector<1x8x1xf32> to vector<1x8x8xf32>
    %96 = arith.subf %92, %95 : vector<1x8x8xf32>
    %97 = math.exp %96 : vector<1x8x8xf32>
    %cst_38 = arith.constant dense<0.000000e+00> : vector<1x8xf32>
    %98 = vector.multi_reduction <add>, %97, %cst_38 [2] : vector<1x8x8xf32> to vector<1x8xf32>
    %99 = vector.shape_cast %98 : vector<1x8xf32> to vector<1x8x1xf32>
    %100 = tpu.reciprocal %99 {approx = true} : vector<1x8x1xf32> -> vector<1x8x1xf32>
    %101 = vector.broadcast %100 : vector<1x8x1xf32> to vector<1x8x8xf32>
    %102 = arith.mulf %97, %101 : vector<1x8x8xf32>
    %103 = arith.truncf %102 : vector<1x8x8xf32> to vector<1x8x8xbf16>
    %c0_39 = arith.constant 0 : index
    %c0_40 = arith.constant 0 : index
    %c0_41 = arith.constant 0 : index
    %104 = vector.load %arg13[%c0_39, %c0_40, %c0_41] : memref<1x8x8xbf16, #tpu.memory_space<vmem>>, vector<1x8x8xbf16>
    tpu.vector_store %arg13[%c0_39, %c0_40, %c0_41], %103 {strides = array<i32>} : memref<1x8x8xbf16, #tpu.memory_space<vmem>>, vector<1x8x8xbf16>,
    %105 = arith.truncf %102 : vector<1x8x8xf32> to vector<1x8x8xbf16>
    %106 = arith.truncf %89 : vector<1x8x32xf32> to vector<1x8x32xbf16>
    "tpu.trace_start"() <{level = 10 : i32, message = "bqk,bkd->bqd"}> : () -> ()
    %cst_42 = arith.constant dense<0.000000e+00> : vector<1x8x32xf32>
    %107 = tpu.matmul %105, %106, %cst_42 {dimension_numbers = #tpu.dot_dimension_numbers<[2], [1], [1], [2], [0, 0, 0, 1, 1, 2], [0], [0]>} : vector<1x8x8xbf16>, vector<1x8x32xbf16>, vector<1x8x32xf32> -> vector<1x8x32xf32>
    "tpu.trace_stop"() : () -> ()
    %108 = vector.shape_cast %107 : vector<1x8x32xf32> to vector<8x32xf32>
    %109 = arith.truncf %108 : vector<8x32xf32> to vector<8x32xbf16>
    %c0_43 = arith.constant 0 : index
    %c0_44 = arith.constant 0 : index
    %110 = vector.load %arg9[%c0_43, %c0_44] : memref<32x32xbf16, #tpu.memory_space<vmem>>, vector<32x32xbf16>
    %cst_45 = arith.constant dense<0.000000e+00> : vector<8x32xf32>
    %111 = tpu.matmul %109, %110, %cst_45 {dimension_numbers = #tpu.dot_dimension_numbers<[1], [0], [0], [1], [0, 0, 1, 1], [], []>} : vector<8x32xbf16>, vector<32x32xbf16>, vector<8x32xf32> -> vector<8x32xf32>
    %112 = vector.extract_strided_slice %1 {offsets = [1, 0], sizes = [1, 32], strides = [1, 1]} : vector<3x32xf32> to vector<1x32xf32>
    %113 = vector.broadcast %112 : vector<1x32xf32> to vector<8x32xf32>
    %114 = arith.addf %111, %113 : vector<8x32xf32>
    %115 = vector.extract_strided_slice %0 {offsets = [4, 0], sizes = [1, 32], strides = [1, 1]} : vector<8x32xf32> to vector<1x32xf32>
    %116 = vector.extract_strided_slice %0 {offsets = [5, 0], sizes = [1, 32], strides = [1, 1]} : vector<8x32xf32> to vector<1x32xf32>
    %c0_46 = arith.constant 0 : index
    %c0_47 = arith.constant 0 : index
    %117 = vector.load %arg10[%c0_46, %c0_47] : memref<32x64xbf16, #tpu.memory_space<vmem>>, vector<32x64xbf16>
    %118 = vector.extract_strided_slice %2 {offsets = [1, 0], sizes = [1, 64], strides = [1, 1]} : vector<2x64xf32> to vector<1x64xf32>
    %c0_48 = arith.constant 0 : index
    %c0_49 = arith.constant 0 : index
    %119 = vector.load %arg11[%c0_48, %c0_49] : memref<64x32xbf16, #tpu.memory_space<vmem>>, vector<64x32xbf16>
    %120 = vector.extract_strided_slice %1 {offsets = [2, 0], sizes = [1, 32], strides = [1, 1]} : vector<3x32xf32> to vector<1x32xf32>
    %cst_50 = arith.constant dense<0.000000e+00> : vector<8xf32>
    %121 = vector.multi_reduction <add>, %114, %cst_50 [1] : vector<8x32xf32> to vector<8xf32>
    %122 = vector.shape_cast %121 : vector<8xf32> to vector<8x1xf32>
    %cst_51 = arith.constant 3.200000e+01 : f32
    %123 = vector.broadcast %cst_51 : f32 to vector<8x1xf32>
    %124 = arith.divf %122, %123 : vector<8x1xf32>
    %125 = vector.broadcast %124 : vector<8x1xf32> to vector<8x32xf32>
    %126 = arith.subf %114, %125 : vector<8x32xf32>
    %127 = arith.mulf %126, %126 : vector<8x32xf32>
    %cst_52 = arith.constant dense<0.000000e+00> : vector<8xf32>
    %128 = vector.multi_reduction <add>, %127, %cst_52 [1] : vector<8x32xf32> to vector<8xf32>
    %129 = vector.shape_cast %128 : vector<8xf32> to vector<8x1xf32>
    %cst_53 = arith.constant 3.200000e+01 : f32
    %130 = vector.broadcast %cst_53 : f32 to vector<8x1xf32>
    %131 = arith.divf %129, %130 : vector<8x1xf32>
    %132 = vector.broadcast %124 : vector<8x1xf32> to vector<8x32xf32>
    %133 = arith.subf %114, %132 : vector<8x32xf32>
    %cst_54 = arith.constant 9.99999974E-6 : f32
    %134 = vector.broadcast %cst_54 : f32 to vector<8x1xf32>
    %135 = arith.addf %131, %134 : vector<8x1xf32>
    %136 = math.rsqrt %135 : vector<8x1xf32>
    %137 = vector.broadcast %136 : vector<8x1xf32> to vector<8x32xf32>
    %138 = arith.mulf %133, %137 : vector<8x32xf32>
    %139 = vector.broadcast %115 : vector<1x32xf32> to vector<8x32xf32>
    %140 = arith.mulf %138, %139 : vector<8x32xf32>
    %141 = vector.broadcast %116 : vector<1x32xf32> to vector<8x32xf32>
    %142 = arith.addf %140, %141 : vector<8x32xf32>
    %143 = arith.truncf %142 : vector<8x32xf32> to vector<8x32xbf16>
    %cst_55 = arith.constant dense<0.000000e+00> : vector<8x64xf32>
    %144 = tpu.matmul %143, %117, %cst_55 {dimension_numbers = #tpu.dot_dimension_numbers<[1], [0], [0], [1], [0, 0, 1, 1], [], []>} : vector<8x32xbf16>, vector<32x64xbf16>, vector<8x64xf32> -> vector<8x64xf32>
    %145 = vector.broadcast %118 : vector<1x64xf32> to vector<8x64xf32>
    %146 = arith.addf %144, %145 : vector<8x64xf32>
    %cst_56 = arith.constant 0.000000e+00 : f32
    %147 = vector.broadcast %cst_56 : f32 to vector<8x64xf32>
    %148 = arith.maximumf %146, %147 : vector<8x64xf32>
    %149 = arith.truncf %148 : vector<8x64xf32> to vector<8x64xbf16>
    %cst_57 = arith.constant dense<0.000000e+00> : vector<8x32xf32>
    %150 = tpu.matmul %149, %119, %cst_57 {dimension_numbers = #tpu.dot_dimension_numbers<[1], [0], [0], [1], [0, 0, 1, 1], [], []>} : vector<8x64xbf16>, vector<64x32xbf16>, vector<8x32xf32> -> vector<8x32xf32>
    %151 = vector.broadcast %120 : vector<1x32xf32> to vector<8x32xf32>
    %152 = arith.addf %150, %151 : vector<8x32xf32>
    %153 = vector.extract_strided_slice %0 {offsets = [6, 0], sizes = [1, 32], strides = [1, 1]} : vector<8x32xf32> to vector<1x32xf32>
    %154 = vector.extract_strided_slice %0 {offsets = [7, 0], sizes = [1, 32], strides = [1, 1]} : vector<8x32xf32> to vector<1x32xf32>
    %cst_58 = arith.constant dense<0.000000e+00> : vector<8xf32>
    %155 = vector.multi_reduction <add>, %152, %cst_58 [1] : vector<8x32xf32> to vector<8xf32>
    %156 = vector.shape_cast %155 : vector<8xf32> to vector<8x1xf32>
    %cst_59 = arith.constant 3.200000e+01 : f32
    %157 = vector.broadcast %cst_59 : f32 to vector<8x1xf32>
    %158 = arith.divf %156, %157 : vector<8x1xf32>
    %159 = vector.broadcast %158 : vector<8x1xf32> to vector<8x32xf32>
    %160 = arith.subf %152, %159 : vector<8x32xf32>
    %161 = arith.mulf %160, %160 : vector<8x32xf32>
    %cst_60 = arith.constant dense<0.000000e+00> : vector<8xf32>
    %162 = vector.multi_reduction <add>, %161, %cst_60 [1] : vector<8x32xf32> to vector<8xf32>
    %163 = vector.shape_cast %162 : vector<8xf32> to vector<8x1xf32>
    %cst_61 = arith.constant 3.200000e+01 : f32
    %164 = vector.broadcast %cst_61 : f32 to vector<8x1xf32>
    %165 = arith.divf %163, %164 : vector<8x1xf32>
    %166 = vector.broadcast %158 : vector<8x1xf32> to vector<8x32xf32>
    %167 = arith.subf %152, %166 : vector<8x32xf32>
    %cst_62 = arith.constant 9.99999974E-6 : f32
    %168 = vector.broadcast %cst_62 : f32 to vector<8x1xf32>
    %169 = arith.addf %165, %168 : vector<8x1xf32>
    %170 = math.rsqrt %169 : vector<8x1xf32>
    %171 = vector.broadcast %170 : vector<8x1xf32> to vector<8x32xf32>
    %172 = arith.mulf %167, %171 : vector<8x32xf32>
    %173 = vector.broadcast %153 : vector<1x32xf32> to vector<8x32xf32>
    %174 = arith.mulf %172, %173 : vector<8x32xf32>
    %175 = vector.broadcast %154 : vector<1x32xf32> to vector<8x32xf32>
    %176 = arith.addf %174, %175 : vector<8x32xf32>
    %177 = vector.shape_cast %176 : vector<8x32xf32> to vector<1x8x32xf32>
    %c0_63 = arith.constant 0 : index
    %c0_64 = arith.constant 0 : index
    %c0_65 = arith.constant 0 : index
    %178 = vector.load %arg12[%c0_63, %c0_64, %c0_65] : memref<1x8x32xf32, #tpu.memory_space<vmem>>, vector<1x8x32xf32>
    tpu.vector_store %arg12[%c0_63, %c0_64, %c0_65], %177 {strides = array<i32>} : memref<1x8x32xf32, #tpu.memory_space<vmem>>, vector<1x8x32xf32>,
    return
  }
  func.func @transform_0(%arg0: i32) -> (i32, i32, i32) {
    %c0_i32 = arith.constant 0 : i32
    %c0_i32_0 = arith.constant 0 : i32
    %c0_i32_1 = arith.constant 0 : i32
    return %arg0, %c0_i32, %c0_i32_0 : i32, i32, i32
  }
  func.func @transform_1(%arg0: i32) -> (i32, i32) {
    %c0_i32 = arith.constant 0 : i32
    %c0_i32_0 = arith.constant 0 : i32
    %c0_i32_1 = arith.constant 0 : i32
    return %c0_i32, %c0_i32_0 : i32, i32
  }
  func.func @transform_2(%arg0: i32) -> (i32, i32) {
    %c0_i32 = arith.constant 0 : i32
    %c0_i32_0 = arith.constant 0 : i32
    %c0_i32_1 = arith.constant 0 : i32
    return %c0_i32, %c0_i32_0 : i32, i32
  }
  func.func @transform_3(%arg0: i32) -> (i32, i32) {
    %c0_i32 = arith.constant 0 : i32
    %c0_i32_0 = arith.constant 0 : i32
    %c0_i32_1 = arith.constant 0 : i32
    return %c0_i32, %c0_i32_0 : i32, i32
  }
  func.func @transform_4(%arg0: i32) -> (i32, i32) {
    %c0_i32 = arith.constant 0 : i32
    %c0_i32_0 = arith.constant 0 : i32
    %c0_i32_1 = arith.constant 0 : i32
    return %c0_i32, %c0_i32_0 : i32, i32
  }
  func.func @transform_5(%arg0: i32) -> (i32, i32) {
    %c0_i32 = arith.constant 0 : i32
    %c0_i32_0 = arith.constant 0 : i32
    %c0_i32_1 = arith.constant 0 : i32
    return %c0_i32, %c0_i32_0 : i32, i32
  }
  func.func @transform_6(%arg0: i32) -> (i32, i32) {
    %c0_i32 = arith.constant 0 : i32
    %c0_i32_0 = arith.constant 0 : i32
    %c0_i32_1 = arith.constant 0 : i32
    return %c0_i32, %c0_i32_0 : i32, i32
  }
  func.func @transform_7(%arg0: i32) -> (i32, i32, i32) {
    %c0_i32 = arith.constant 0 : i32
    %c0_i32_0 = arith.constant 0 : i32
    %c0_i32_1 = arith.constant 0 : i32
    %c0_i32_2 = arith.constant 0 : i32
    return %c0_i32, %c0_i32_0, %c0_i32_1 : i32, i32, i32
  }
  func.func @transform_8(%arg0: i32) -> (i32, i32) {
    %c0_i32 = arith.constant 0 : i32
    %c0_i32_0 = arith.constant 0 : i32
    %c0_i32_1 = arith.constant 0 : i32
    return %c0_i32, %c0_i32_0 : i32, i32
  }
  func.func @transform_9(%arg0: i32) -> (i32, i32) {
    %c0_i32 = arith.constant 0 : i32
    %c0_i32_0 = arith.constant 0 : i32
    %c0_i32_1 = arith.constant 0 : i32
    return %c0_i32, %c0_i32_0 : i32, i32
  }
  func.func @transform_10(%arg0: i32) -> (i32, i32) {
    %c0_i32 = arith.constant 0 : i32
    %c0_i32_0 = arith.constant 0 : i32
    %c0_i32_1 = arith.constant 0 : i32
    return %c0_i32, %c0_i32_0 : i32, i32
  }
  func.func @transform_11(%arg0: i32) -> (i32, i32, i32) {
    %c0_i32 = arith.constant 0 : i32
    %c0_i32_0 = arith.constant 0 : i32
    %c0_i32_1 = arith.constant 0 : i32
    return %arg0, %c0_i32, %c0_i32_0 : i32, i32, i32
  }
  func.func @transform_12(%arg0: i32) -> (i32, i32, i32) {
    %c0_i32 = arith.constant 0 : i32
    %c0_i32_0 = arith.constant 0 : i32
    %c0_i32_1 = arith.constant 0 : i32
    return %arg0, %c0_i32, %c0_i32_0 : i32, i32, i32
  }
}

</mosaic_0001>

<llo_original>
// kernel: tpu_custom_call.1
$region0: #{tpu_custom_call.1}
  #allocation0 [shape = 'u32[]', space=smem, size = 0x4, offset = 0x4, fixed_abs, tag = 'smem constant byte address 0x4 - core index']
  #allocation1 [shape = 'u32[144,128]{1,0:T(1,128)}', space=vmem, size = 0x12000, scoped, tag = 'internal scratch']
  %s0 = inlined_call_operand.vmem [shape: f32[2,8,32], index: 0, kind: input, shape index: {}]
  %s1 = inlined_call_operand.hbm [shape: f32[8,32], index: 1, kind: input, shape index: {}]
  %s2 = inlined_call_operand.hbm [shape: f32[3,32], index: 2, kind: input, shape index: {}]
  %s3 = inlined_call_operand.hbm [shape: f32[2,64], index: 3, kind: input, shape index: {}]
  %s4 = inlined_call_operand.hbm [shape: f32[3,32], index: 4, kind: input, shape index: {}]
  %s5 = inlined_call_operand.vmem [shape: bf16[32,64], index: 5, kind: input, shape index: {}]
  %s6 = inlined_call_operand.vmem [shape: bf16[64,32], index: 6, kind: input, shape index: {}]
  %s7 = inlined_call_operand.vmem [shape: bf16[3,32,32], index: 7, kind: input, shape index: {}]
  %s8 = inlined_call_operand.vmem [shape: bf16[32,32], index: 8, kind: input, shape index: {}]
  %s9 = inlined_call_operand.vmem [shape: bf16[32,64], index: 9, kind: input, shape index: {}]
  %s10 = inlined_call_operand.vmem [shape: bf16[64,32], index: 10, kind: input, shape index: {}]
  %s11 = inlined_call_operand.hbm [shape: f32[2,8,32], index: 11, kind: output, shape index: {0}]
  %s12 = inlined_call_operand.hbm [shape: bf16[2,8,8], index: 12, kind: output, shape index: {1}]
  %13 = xla_tuple %s11, %s12
  %s14 = sld [smem:[#allocation0]]
  $region101: #{tpu_custom_call.1} parent=0
    _
  %s16 = ssub.s32 1, %s14
  %s17 = scalar_select 0, %s16, %s14
  $region1: #{tpu_custom_call.1} parent=0
    #allocation2 [shape = 'u8[4096]{0}', space=vmem, size = 0x1000, scoped, tag = 'input window, operand 1, single buffered']
    #allocation3 [shape = 's32[2]{0}', space=sflag, size = 0x8, scoped, tag = 'scoped memory for tpu_custom_call.1']
    #allocation4 [shape = 's32[2]{0}', space=sflag, size = 0x8, scoped, tag = 'scoped memory for tpu_custom_call.1']
    #allocation5 [shape = 'u8[2048]{0}', space=vmem, size = 0x800, scoped, tag = 'input window, operand 2, single buffered']
    #allocation6 [shape = 's32[1]{0}', space=sflag, size = 0x4, scoped, tag = 'scoped memory for tpu_custom_call.1']
    #allocation7 [shape = 'u8[1024]{0}', space=vmem, size = 0x400, scoped, tag = 'input window, operand 3, single buffered']
    #allocation8 [shape = 'u8[2048]{0}', space=vmem, size = 0x800, scoped, tag = 'input window, operand 4, single buffered']
    #allocation9 [shape = 's32[1]{0}', space=sflag, size = 0x4, scoped, tag = 'scoped memory for tpu_custom_call.1']
    #allocation10 [shape = 'u8[8192]{0}', space=vmem, size = 0x2000, scoped, tag = 'output window, operand 0']
    #allocation11 [shape = 'u8[4096]{0}', space=vmem, size = 0x1000, scoped, tag = 'output window, operand 1']
    #allocation12 [shape = 's32[2]{0}', space=sflag, size = 0x8, scoped, tag = 'scoped memory for tpu_custom_call.1']
    %18 = vsyncpa [#allocation3], 0
    %19 = vsyncpa [#allocation6], 0
    %20 = vsyncpa [#allocation9], 0
    %21 = vsyncpa [#allocation4], 0
    %s22 = scalar_lea.sflag [#allocation4], 1
    %23 = vsyncpa %s22, 0
    %24 = vsyncpa [#allocation12], 0
    %s25 = scalar_lea.sflag [#allocation12], 1
    %26 = vsyncpa %s25, 0
    loop: start=0, step=1, limit=4
    $region2: #{tpu_custom_call.1} parent=1 // loop_pre_header
      _
    $region3: #{tpu_custom_call.1} parent=1 // loop_header
      %s28 = sphi 0, %s32
      %p29 = scmp.ge.s32.totalorder %s28, 4
      %s38 = sphi 0, %s40
      %s41 = sphi 0, %s38
      %s42 = sphi 0, %s41
      %s58 = sphi 0, %s42
      %s62 = sphi 0, %s62
      %s64 = sphi 0, %s62
      %s65 = sphi 0, %s64
      %s79 = sphi 0, %s65
      %s83 = sphi 0, %s83
      %s85 = sphi 0, %s83
      %s86 = sphi 0, %s85
      %s100 = sphi 0, %s86
      %s104 = sphi 0, %s104
      %s106 = sphi 0, %s104
      %s107 = sphi 0, %s106
      %s121 = sphi 0, %s107
      %s125 = sphi 0, %s125
      %s127 = sphi 0, %s125
      %s128 = sphi 0, %s127
      %s142 = sphi 0, %s128
      %s146 = sphi 0, %s146
      %s148 = sphi 0, %s146
      %s149 = sphi 0, %s148
      %s163 = sphi 0, %s149
      %s167 = sphi 0, %s167
      %s169 = sphi 0, %s167
      %s170 = sphi 0, %s169
      %s184 = sphi 0, %s170
      %s188 = sphi 0, %s188
      %s190 = sphi 0, %s188
      %s191 = sphi 0, %s190
      %s205 = sphi 0, %s191
      %s209 = sphi 0, %s209
      %s211 = sphi 0, %s209
      %s212 = sphi 0, %s211
      %s226 = sphi 0, %s212
      %s230 = sphi 0, %s230
      %s232 = sphi 0, %s230
      %s233 = sphi 0, %s232
      %s247 = sphi 0, %s233
      %s251 = sphi 0, %s251
      %s253 = sphi 0, %s251
      %s254 = sphi 0, %s253
      %s268 = sphi 0, %s254
      %s274 = sphi 0, %s276
      %s277 = sphi 0, %s274
      %s278 = sphi 0, %s277
      %s294 = sphi 0, %s278
      %s300 = sphi 0, %s302
      %s303 = sphi 0, %s300
      %s304 = sphi 0, %s303
      %s320 = sphi 0, %s304
    $region4: #{tpu_custom_call.1} parent=1 // loop_header_branch
      %31 = sbr.rel (%p29) target = $region8
    $region5: #{tpu_custom_call.1} parent=1 // loop_body
      %s33 = ssub.s32 %s28, 1
      %s34 = ssub.s32 %s28, 2
      %s35 = sadd.s32 %s28, 1
      %s36 = ssub.s32 %s28, %s35
      %p37 = scmp.eq.s32.totalorder %s36, 0
      %s39 = sadd.s32 %s38, 1
      %s40 = scalar_select %p37, %s38, %s39
      %p43 = pneg %p37
      %p44 = scmp.eq.s32.totalorder %s28, 1
      %p45 = por %p43, %p44
      %p46 = scmp.ne.s32.totalorder %s38, %s41
      %p47 = scmp.eq.s32.totalorder %s28, 0
      %p48 = por %p46, %p47
      %p49 = scmp.ne.s32.totalorder %s38, %s41
      %p50 = scmp.eq.s32.totalorder %s33, 1
      %p51 = por %p49, %p50
      %p52 = scmp.ne.s32.totalorder %s41, %s42
      %p53 = scmp.eq.s32.totalorder %s33, 0
      %p54 = por %p52, %p53
      %p55 = scmp.ne.s32.totalorder %s41, %s42
      %p56 = scmp.eq.s32.totalorder %s34, 1
      %p57 = por %p55, %p56
      %p59 = scmp.ne.s32.totalorder %s42, %s58
      %p60 = scmp.eq.s32.totalorder %s34, 0
      %p61 = por %p59, %p60
      %s63 = sadd.s32 %s62, 1
      %p66 = scmp.eq.s32.totalorder %s28, 1
      %p67 = scmp.ne.s32.totalorder %s62, %s64
      %p68 = scmp.eq.s32.totalorder %s28, 0
      %p69 = por %p67, %p68
      %p70 = scmp.ne.s32.totalorder %s62, %s64
      %p71 = scmp.eq.s32.totalorder %s33, 1
      %p72 = por %p70, %p71
      %p73 = scmp.ne.s32.totalorder %s64, %s65
      %p74 = scmp.eq.s32.totalorder %s33, 0
      %p75 = por %p73, %p74
      %p76 = scmp.ne.s32.totalorder %s64, %s65
      %p77 = scmp.eq.s32.totalorder %s34, 1
      %p78 = por %p76, %p77
      %p80 = scmp.ne.s32.totalorder %s65, %s79
      %p81 = scmp.eq.s32.totalorder %s34, 0
      %p82 = por %p80, %p81
      %s84 = sadd.s32 %s83, 1
      %p87 = scmp.eq.s32.totalorder %s28, 1
      %p88 = scmp.ne.s32.totalorder %s83, %s85
      %p89 = scmp.eq.s32.totalorder %s28, 0
      %p90 = por %p88, %p89
      %p91 = scmp.ne.s32.totalorder %s83, %s85
      %p92 = scmp.eq.s32.totalorder %s33, 1
      %p93 = por %p91, %p92
      %p94 = scmp.ne.s32.totalorder %s85, %s86
      %p95 = scmp.eq.s32.totalorder %s33, 0
      %p96 = por %p94, %p95
      %p97 = scmp.ne.s32.totalorder %s85, %s86
      %p98 = scmp.eq.s32.totalorder %s34, 1
      %p99 = por %p97, %p98
      %p101 = scmp.ne.s32.totalorder %s86, %s100
      %p102 = scmp.eq.s32.totalorder %s34, 0
      %p103 = por %p101, %p102
      %s105 = sadd.s32 %s104, 1
      %p108 = scmp.eq.s32.totalorder %s28, 1
      %p109 = scmp.ne.s32.totalorder %s104, %s106
      %p110 = scmp.eq.s32.totalorder %s28, 0
      %p111 = por %p109, %p110
      %p112 = scmp.ne.s32.totalorder %s104, %s106
      %p113 = scmp.eq.s32.totalorder %s33, 1
      %p114 = por %p112, %p113
      %p115 = scmp.ne.s32.totalorder %s106, %s107
      %p116 = scmp.eq.s32.totalorder %s33, 0
      %p117 = por %p115, %p116
      %p118 = scmp.ne.s32.totalorder %s106, %s107
      %p119 = scmp.eq.s32.totalorder %s34, 1
      %p120 = por %p118, %p119
      %p122 = scmp.ne.s32.totalorder %s107, %s121
      %p123 = scmp.eq.s32.totalorder %s34, 0
      %p124 = por %p122, %p123
      %s126 = sadd.s32 %s125, 1
      %p129 = scmp.eq.s32.totalorder %s28, 1
      %p130 = scmp.ne.s32.totalorder %s125, %s127
      %p131 = scmp.eq.s32.totalorder %s28, 0
      %p132 = por %p130, %p131
      %p133 = scmp.ne.s32.totalorder %s125, %s127
      %p134 = scmp.eq.s32.totalorder %s33, 1
      %p135 = por %p133, %p134
      %p136 = scmp.ne.s32.totalorder %s127, %s128
      %p137 = scmp.eq.s32.totalorder %s33, 0
      %p138 = por %p136, %p137
      %p139 = scmp.ne.s32.totalorder %s127, %s128
      %p140 = scmp.eq.s32.totalorder %s34, 1
      %p141 = por %p139, %p140
      %p143 = scmp.ne.s32.totalorder %s128, %s142
      %p144 = scmp.eq.s32.totalorder %s34, 0
      %p145 = por %p143, %p144
      %s147 = sadd.s32 %s146, 1
      %p150 = scmp.eq.s32.totalorder %s28, 1
      %p151 = scmp.ne.s32.totalorder %s146, %s148
      %p152 = scmp.eq.s32.totalorder %s28, 0
      %p153 = por %p151, %p152
      %p154 = scmp.ne.s32.totalorder %s146, %s148
      %p155 = scmp.eq.s32.totalorder %s33, 1
      %p156 = por %p154, %p155
      %p157 = scmp.ne.s32.totalorder %s148, %s149
      %p158 = scmp.eq.s32.totalorder %s33, 0
      %p159 = por %p157, %p158
      %p160 = scmp.ne.s32.totalorder %s148, %s149
      %p161 = scmp.eq.s32.totalorder %s34, 1
      %p162 = por %p160, %p161
      %p164 = scmp.ne.s32.totalorder %s149, %s163
      %p165 = scmp.eq.s32.totalorder %s34, 0
      %p166 = por %p164, %p165
      %s168 = sadd.s32 %s167, 1
      %p171 = scmp.eq.s32.totalorder %s28, 1
      %p172 = scmp.ne.s32.totalorder %s167, %s169
      %p173 = scmp.eq.s32.totalorder %s28, 0
      %p174 = por %p172, %p173
      %p175 = scmp.ne.s32.totalorder %s167, %s169
      %p176 = scmp.eq.s32.totalorder %s33, 1
      %p177 = por %p175, %p176
      %p178 = scmp.ne.s32.totalorder %s169, %s170
      %p179 = scmp.eq.s32.totalorder %s33, 0
      %p180 = por %p178, %p179
      %p181 = scmp.ne.s32.totalorder %s169, %s170
      %p182 = scmp.eq.s32.totalorder %s34, 1
      %p183 = por %p181, %p182
      %p185 = scmp.ne.s32.totalorder %s170, %s184
      %p186 = scmp.eq.s32.totalorder %s34, 0
      %p187 = por %p185, %p186
      %s189 = sadd.s32 %s188, 1
      %p192 = scmp.eq.s32.totalorder %s28, 1
      %p193 = scmp.ne.s32.totalorder %s188, %s190
      %p194 = scmp.eq.s32.totalorder %s28, 0
      %p195 = por %p193, %p194
      %p196 = scmp.ne.s32.totalorder %s188, %s190
      %p197 = scmp.eq.s32.totalorder %s33, 1
      %p198 = por %p196, %p197
      %p199 = scmp.ne.s32.totalorder %s190, %s191
      %p200 = scmp.eq.s32.totalorder %s33, 0
      %p201 = por %p199, %p200
      %p202 = scmp.ne.s32.totalorder %s190, %s191
      %p203 = scmp.eq.s32.totalorder %s34, 1
      %p204 = por %p202, %p203
      %p206 = scmp.ne.s32.totalorder %s191, %s205
      %p207 = scmp.eq.s32.totalorder %s34, 0
      %p208 = por %p206, %p207
      %s210 = sadd.s32 %s209, 1
      %p213 = scmp.eq.s32.totalorder %s28, 1
      %p214 = scmp.ne.s32.totalorder %s209, %s211
      %p215 = scmp.eq.s32.totalorder %s28, 0
      %p216 = por %p214, %p215
      %p217 = scmp.ne.s32.totalorder %s209, %s211
      %p218 = scmp.eq.s32.totalorder %s33, 1
      %p219 = por %p217, %p218
      %p220 = scmp.ne.s32.totalorder %s211, %s212
      %p221 = scmp.eq.s32.totalorder %s33, 0
      %p222 = por %p220, %p221
      %p223 = scmp.ne.s32.totalorder %s211, %s212
      %p224 = scmp.eq.s32.totalorder %s34, 1
      %p225 = por %p223, %p224
      %p227 = scmp.ne.s32.totalorder %s212, %s226
      %p228 = scmp.eq.s32.totalorder %s34, 0
      %p229 = por %p227, %p228
      %s231 = sadd.s32 %s230, 1
      %p234 = scmp.eq.s32.totalorder %s28, 1
      %p235 = scmp.ne.s32.totalorder %s230, %s232
      %p236 = scmp.eq.s32.totalorder %s28, 0
      %p237 = por %p235, %p236
      %p238 = scmp.ne.s32.totalorder %s230, %s232
      %p239 = scmp.eq.s32.totalorder %s33, 1
      %p240 = por %p238, %p239
      %p241 = scmp.ne.s32.totalorder %s232, %s233
      %p242 = scmp.eq.s32.totalorder %s33, 0
      %p243 = por %p241, %p242
      %p244 = scmp.ne.s32.totalorder %s232, %s233
      %p245 = scmp.eq.s32.totalorder %s34, 1
      %p246 = por %p244, %p245
      %p248 = scmp.ne.s32.totalorder %s233, %s247
      %p249 = scmp.eq.s32.totalorder %s34, 0
      %p250 = por %p248, %p249
      %s252 = sadd.s32 %s251, 1
      %p255 = scmp.eq.s32.totalorder %s28, 1
      %p256 = scmp.ne.s32.totalorder %s251, %s253
      %p257 = scmp.eq.s32.totalorder %s28, 0
      %p258 = por %p256, %p257
      %p259 = scmp.ne.s32.totalorder %s251, %s253
      %p260 = scmp.eq.s32.totalorder %s33, 1
      %p261 = por %p259, %p260
      %p262 = scmp.ne.s32.totalorder %s253, %s254
      %p263 = scmp.eq.s32.totalorder %s33, 0
      %p264 = por %p262, %p263
      %p265 = scmp.ne.s32.totalorder %s253, %s254
      %p266 = scmp.eq.s32.totalorder %s34, 1
      %p267 = por %p265, %p266
      %p269 = scmp.ne.s32.totalorder %s254, %s268
      %p270 = scmp.eq.s32.totalorder %s34, 0
      %p271 = por %p269, %p270
      %s272 = ssub.s32 %s28, %s35
      %p273 = scmp.eq.s32.totalorder %s272, 0
      %s275 = sadd.s32 %s274, 1
      %s276 = scalar_select %p273, %s274, %s275
      %p279 = pneg %p273
      %p280 = scmp.eq.s32.totalorder %s28, 1
      %p281 = por %p279, %p280
      %p282 = scmp.ne.s32.totalorder %s274, %s277
      %p283 = scmp.eq.s32.totalorder %s28, 0
      %p284 = por %p282, %p283
      %p285 = scmp.ne.s32.totalorder %s274, %s277
      %p286 = scmp.eq.s32.totalorder %s33, 1
      %p287 = por %p285, %p286
      %p288 = scmp.ne.s32.totalorder %s277, %s278
      %p289 = scmp.eq.s32.totalorder %s33, 0
      %p290 = por %p288, %p289
      %p291 = scmp.ne.s32.totalorder %s277, %s278
      %p292 = scmp.eq.s32.totalorder %s34, 1
      %p293 = por %p291, %p292
      %p295 = scmp.ne.s32.totalorder %s278, %s294
      %p296 = scmp.eq.s32.totalorder %s34, 0
      %p297 = por %p295, %p296
      %s298 = ssub.s32 %s28, %s35
      %p299 = scmp.eq.s32.totalorder %s298, 0
      %s301 = sadd.s32 %s300, 1
      %s302 = scalar_select %p299, %s300, %s301
      %p305 = pneg %p299
      %p306 = scmp.eq.s32.totalorder %s28, 1
      %p307 = por %p305, %p306
      %p308 = scmp.ne.s32.totalorder %s300, %s303
      %p309 = scmp.eq.s32.totalorder %s28, 0
      %p310 = por %p308, %p309
      %p311 = scmp.ne.s32.totalorder %s300, %s303
      %p312 = scmp.eq.s32.totalorder %s33, 1
      %p313 = por %p311, %p312
      %p314 = scmp.ne.s32.totalorder %s303, %s304
      %p315 = scmp.eq.s32.totalorder %s33, 0
      %p316 = por %p314, %p315
      %p317 = scmp.ne.s32.totalorder %s303, %s304
      %p318 = scmp.eq.s32.totalorder %s34, 1
      %p319 = por %p317, %p318
      %p321 = scmp.ne.s32.totalorder %s304, %s320
      %p322 = scmp.eq.s32.totalorder %s34, 0
      %p323 = por %p321, %p322
      %p324 = scmp.le.s32.totalorder 1, %s28
      %p325 = scmp.lt.s32.totalorder %s28, 3
      %p326 = pnand %p324, %p325
      %p327 = pneg %p326
      // Predicated region
      $region9: #{tpu_custom_call.1} parent=5 // pred_check
        _
      $region10: #{tpu_custom_call.1} parent=5 // pred_check_branch
        %329 = sbr.rel (%p326) target = $region12
      $region11: #{tpu_custom_call.1} parent=5 // pred_region
        %s330 = ssub.s32 %s28, 1
        // Predicated region
        $region13: #{tpu_custom_call.1} parent=11 // pred_check
          %p331 = pneg %p75
        $region14: #{tpu_custom_call.1} parent=11 // pred_check_branch
          %333 = sbr.rel (%p331) target = $region16
        $region15: #{tpu_custom_call.1} parent=11 // pred_region
          %s335 = ssub.s32 128, 128
          %336 = vsyncadd [#allocation3], %s335
          %s338 = sshll.u32 [#allocation2], 4
          %s339 = int_to_ptr.vmem [resolvable:$true] %s338
          %341 = dma.hbm_to_vmem [thread:$0]  %s1, 128, %s339, [#allocation3]
        $region16: #{tpu_custom_call.1} parent=11 // pred_fallthru
          _
        // Predicated region
        $region17: #{tpu_custom_call.1} parent=11 // pred_check
          %p342 = pneg %p96
        $region18: #{tpu_custom_call.1} parent=11 // pred_check_branch
          %344 = sbr.rel (%p342) target = $region20
        $region19: #{tpu_custom_call.1} parent=11 // pred_region
          %s346 = ssub.s32 64, 64
          %347 = vsyncadd [#allocation6], %s346
          %s349 = sshll.u32 [#allocation5], 4
          %s350 = int_to_ptr.vmem [resolvable:$true] %s349
          %352 = dma.hbm_to_vmem [thread:$0]  %s2, 64, %s350, [#allocation6]
        $region20: #{tpu_custom_call.1} parent=11 // pred_fallthru
          _
        // Predicated region
        $region21: #{tpu_custom_call.1} parent=11 // pred_check
          %p353 = pneg %p117
        $region22: #{tpu_custom_call.1} parent=11 // pred_check_branch
          %355 = sbr.rel (%p353) target = $region24
        $region23: #{tpu_custom_call.1} parent=11 // pred_region
          %s357 = ssub.s32 32, 32
          %358 = vsyncadd [#allocation6], %s357
          %s360 = sshll.u32 [#allocation7], 4
          %s361 = int_to_ptr.vmem [resolvable:$true] %s360
          %363 = dma.hbm_to_vmem [thread:$0]  %s3, 32, %s361, [#allocation6]
        $region24: #{tpu_custom_call.1} parent=11 // pred_fallthru
          _
        // Predicated region
        $region25: #{tpu_custom_call.1} parent=11 // pred_check
          %p364 = pneg %p138
        $region26: #{tpu_custom_call.1} parent=11 // pred_check_branch
          %366 = sbr.rel (%p364) target = $region28
        $region27: #{tpu_custom_call.1} parent=11 // pred_region
          %s368 = ssub.s32 64, 64
          %369 = vsyncadd [#allocation9], %s368
          %s371 = sshll.u32 [#allocation8], 4
          %s372 = int_to_ptr.vmem [resolvable:$true] %s371
          %374 = dma.hbm_to_vmem [thread:$0]  %s4, 64, %s372, [#allocation9]
        $region28: #{tpu_custom_call.1} parent=11 // pred_fallthru
          _
        // Predicated region
        $region29: #{tpu_custom_call.1} parent=11 // pred_check
          %p375 = pneg %p159
        $region30: #{tpu_custom_call.1} parent=11 // pred_check_branch
          %377 = sbr.rel (%p375) target = $region32
        $region31: #{tpu_custom_call.1} parent=11 // pred_region
          _
        $region32: #{tpu_custom_call.1} parent=11 // pred_fallthru
          _
        // Predicated region
        $region33: #{tpu_custom_call.1} parent=11 // pred_check
          %p378 = pneg %p180
        $region34: #{tpu_custom_call.1} parent=11 // pred_check_branch
          %380 = sbr.rel (%p378) target = $region36
        $region35: #{tpu_custom_call.1} parent=11 // pred_region
          _
        $region36: #{tpu_custom_call.1} parent=11 // pred_fallthru
          _
        // Predicated region
        $region37: #{tpu_custom_call.1} parent=11 // pred_check
          %p381 = pneg %p201
        $region38: #{tpu_custom_call.1} parent=11 // pred_check_branch
          %383 = sbr.rel (%p381) target = $region40
        $region39: #{tpu_custom_call.1} parent=11 // pred_region
          _
        $region40: #{tpu_custom_call.1} parent=11 // pred_fallthru
          _
        // Predicated region
        $region41: #{tpu_custom_call.1} parent=11 // pred_check
          %p384 = pneg %p222
        $region42: #{tpu_custom_call.1} parent=11 // pred_check_branch
          %386 = sbr.rel (%p384) target = $region44
        $region43: #{tpu_custom_call.1} parent=11 // pred_region
          _
        $region44: #{tpu_custom_call.1} parent=11 // pred_fallthru
          _
        // Predicated region
        $region45: #{tpu_custom_call.1} parent=11 // pred_check
          %p387 = pneg %p243
        $region46: #{tpu_custom_call.1} parent=11 // pred_check_branch
          %389 = sbr.rel (%p387) target = $region48
        $region47: #{tpu_custom_call.1} parent=11 // pred_region
          _
        $region48: #{tpu_custom_call.1} parent=11 // pred_fallthru
          _
        // Predicated region
        $region49: #{tpu_custom_call.1} parent=11 // pred_check
          %p390 = pneg %p264
        $region50: #{tpu_custom_call.1} parent=11 // pred_check_branch
          %392 = sbr.rel (%p390) target = $region52
        $region51: #{tpu_custom_call.1} parent=11 // pred_region
          _
        $region52: #{tpu_custom_call.1} parent=11 // pred_fallthru
          _
      $region12: #{tpu_custom_call.1} parent=5 // pred_fallthru
        _
      %p393 = scmp.lt.s32.totalorder %s28, 2
      // Predicated region
      $region53: #{tpu_custom_call.1} parent=5 // pred_check
        %p394 = pneg %p393
      $region54: #{tpu_custom_call.1} parent=5 // pred_check_branch
        %396 = sbr.rel (%p394) target = $region56
      $region55: #{tpu_custom_call.1} parent=5 // pred_region
        // Predicated region
        $region57: #{tpu_custom_call.1} parent=55 // pred_check
          %p397 = pneg %p48
        $region58: #{tpu_custom_call.1} parent=55 // pred_check_branch
          %399 = sbr.rel (%p397) target = $region60
        $region59: #{tpu_custom_call.1} parent=55 // pred_region
          %p400 = scmp.lt.s32.totalorder %s28, 1
          %s401 = scalar_select %p400, %s28, 1
          %s402 = smul.addr %s401, 8
          %s403 = scalar_lea.vmem %s0, %s402
        $region60: #{tpu_custom_call.1} parent=55 // pred_fallthru
          _
      $region56: #{tpu_custom_call.1} parent=5 // pred_fallthru
        _
      %p404 = scmp.le.s32.totalorder 1, %s28
      %p405 = scmp.lt.s32.totalorder %s28, 3
      %p406 = pnand %p404, %p405
      %p407 = pneg %p406
      // Predicated region
      $region61: #{tpu_custom_call.1} parent=5 // pred_check
        _
      $region62: #{tpu_custom_call.1} parent=5 // pred_check_branch
        %409 = sbr.rel (%p406) target = $region64
      $region63: #{tpu_custom_call.1} parent=5 // pred_region
        %s410 = ssub.s32 %s28, 1
        // Predicated region
        $region65: #{tpu_custom_call.1} parent=63 // pred_check
          %p411 = pneg %p75
        $region66: #{tpu_custom_call.1} parent=63 // pred_check_branch
          %413 = sbr.rel (%p411) target = $region68
        $region67: #{tpu_custom_call.1} parent=63 // pred_region
          %414 = dma.done [#allocation3], 128
        $region68: #{tpu_custom_call.1} parent=63 // pred_fallthru
          _
        // Predicated region
        $region69: #{tpu_custom_call.1} parent=63 // pred_check
          %p415 = pneg %p96
        $region70: #{tpu_custom_call.1} parent=63 // pred_check_branch
          %417 = sbr.rel (%p415) target = $region72
        $region71: #{tpu_custom_call.1} parent=63 // pred_region
          %418 = dma.done [#allocation6], 64
        $region72: #{tpu_custom_call.1} parent=63 // pred_fallthru
          _
        // Predicated region
        $region73: #{tpu_custom_call.1} parent=63 // pred_check
          %p419 = pneg %p117
        $region74: #{tpu_custom_call.1} parent=63 // pred_check_branch
          %421 = sbr.rel (%p419) target = $region76
        $region75: #{tpu_custom_call.1} parent=63 // pred_region
          %422 = dma.done [#allocation6], 32
        $region76: #{tpu_custom_call.1} parent=63 // pred_fallthru
          _
        // Predicated region
        $region77: #{tpu_custom_call.1} parent=63 // pred_check
          %p423 = pneg %p138
        $region78: #{tpu_custom_call.1} parent=63 // pred_check_branch
          %425 = sbr.rel (%p423) target = $region80
        $region79: #{tpu_custom_call.1} parent=63 // pred_region
          %426 = dma.done [#allocation9], 64
        $region80: #{tpu_custom_call.1} parent=63 // pred_fallthru
          _
        %p427 = scmp.lt.s32.totalorder %s33, 1
        %s428 = scalar_select %p427, %s33, 1
        %s429 = smul.addr %s428, 8
        %s430 = scalar_lea.vmem %s0, %s429
        %p431 = pneg %p54
        %p432 = pneg %p51
        %p433 = pneg %p75
        %p434 = pneg %p72
        %p435 = pneg %p96
        %p436 = pneg %p93
        %p437 = pneg %p117
        %p438 = pneg %p114
        %p439 = pneg %p138
        %p440 = pneg %p135
        %p441 = pneg %p159
        %p442 = pneg %p156
        %p443 = pneg %p180
        %p444 = pneg %p177
        %p445 = pneg %p201
        %p446 = pneg %p198
        %p447 = pneg %p222
        %p448 = pneg %p219
        %p449 = pneg %p243
        %p450 = pneg %p240
        %p451 = pneg %p264
        %p452 = pneg %p261
        %p453 = pneg %p290
        %p454 = pneg %p287
        %s455 = sand.u32 %s277, 1
        %s456 = scalar_lea.sflag [#allocation4], %s455
        %s457 = sand.u32 %s277, 1
        %s458 = smul.addr %s457, 8
        %s459 = scalar_lea.vmem [#allocation10], %s458
        %p460 = pneg %p316
        %p461 = pneg %p313
        %s462 = sand.u32 %s303, 1
        %s463 = scalar_lea.sflag [#allocation12], %s462
        %s464 = sand.u32 %s303, 1
        %s465 = smul.addr %s464, 4
        %s466 = scalar_lea.vmem [#allocation11], %s465
        %p467 = scmp.lt.s32.totalorder %s33, 1
        %s468 = scalar_select %p467, %s33, 1
        %s469 = smul.addr %s468, 8
        %s470 = scalar_lea.vmem %s0, %s469
        %v472 = vld [vmem:[#allocation2] sm:$0xff]
        %v473 = vld [vmem:[#allocation5] sm:$0x7]
        %v474 = vld [vmem:[#allocation7] sm:$0x3]
        %v475 = vld [vmem:[#allocation8] sm:$0x7]
        %v476 = vld [vmem:[%s470] sm:$0xff]
        %v477 = vld [vmem:[%s5] sm:$0xf]
        %v478 = vld [vmem:[%s5 + $0x4] sm:$0xf]
        %v479 = vld [vmem:[%s5 + $0x8] sm:$0xf]
        %v480 = vld [vmem:[%s5 + $0xc] sm:$0xf]
        %v481 = vld [vmem:[%s6] sm:$0xf]
        %v482 = vld [vmem:[%s6 + $0x4] sm:$0xf]
        %v483 = vld [vmem:[%s6 + $0x8] sm:$0xf]
        %v484 = vld [vmem:[%s6 + $0xc] sm:$0xf]
        %v485 = vld [vmem:[%s6 + $0x10] sm:$0xf]
        %v486 = vld [vmem:[%s6 + $0x14] sm:$0xf]
        %v487 = vld [vmem:[%s6 + $0x18] sm:$0xf]
        %v488 = vld [vmem:[%s6 + $0x1c] sm:$0xf]
        %vm489 = vcmask 261120
        %v490 = vsel %vm489, %v476, 0.0
        %491 = vadd.xlane.f32.xlu0 %v490
        %v492 = vpop.xlane.xlu0 %491
        %v493 = vrcp.pop 32.0
        %v494 = vmul.f32 %v492, %v493
        %v495 = vsub.f32 %v476, %v494
        %v496 = vmul.f32 %v495, %v495
        %v497 = vsel %vm489, %v496, 0.0
        %498 = vadd.xlane.f32.xlu0 %v497
        %v499 = vpop.xlane.xlu0 %498
        %v500 = vmul.f32 %v499, %v493
        %v501 = vadd.f32 %v500, 1e-05
        %v502 = vrsqrt.pop %v501
        %v503 = vmul.f32 %v495, %v502
        %v504 = vlaneseq
        %v505 = vshrl.u32 %v504, 7
        %v506 = vsub.s32 0, %v505
        %v507 = vrot.slane %v472, %v506
        %v508 = vmul.f32 %v503, %v507
        %v509 = vlaneseq
        %v510 = vshrl.u32 %v509, 7
        %v511 = vsub.s32 1, %v510
        %v512 = vrot.slane %v472, %v511
        %v513 = vadd.f32 %v508, %v512
        %v514 = vpack.c.bf16 %v513, %v513
        %v515 = vlaneseq
        %v516 = vshrl.u32 %v515, 7
        %v517 = vsub.s32 0, %v516
        %v518 = vrot.slane %v474, %v517
        %v523 = vunpack.c.l.b16 %v477
        %v524 = vunpack.c.l.b16 %v478
        %v525 = vunpack.c.l.b16 %v479
        %v526 = vunpack.c.l.b16 %v480
        %v527 = vpack.c.b16 %v524, %v523
        %v528 = vpack.c.b16 %v526, %v525
        %v532 = vsel %vm489, %v514, 0
        %534 = vmatprep.subr.bf16.mxu0 0
        %535 = vmatpush1.bf16.msra.mxu0 0
        %536 = vmatprep.subr.bf16.mxu0 0
        %537 = vmatpush1.bf16.msra.mxu0 0
        %538 = vmatprep.subr.bf16.mxu0 0
        %539 = vmatpush1.bf16.msra.mxu0 0
        %540 = vmatprep.subr.bf16.mxu0 0
        %541 = vmatpush1.bf16.msra.mxu0 0
        %542 = vmatprep.subr.bf16.mxu0 0
        %543 = vmatpush1.bf16.msra.mxu0 0
        %544 = vmatprep.subr.bf16.mxu0 0
        %545 = vmatpush1.bf16.msra.mxu0 0
        %546 = vmatprep.subr.bf16.mxu0 0
        %547 = vmatpush1.bf16.msra.mxu0 %v528
        %548 = vmatprep.subr.bf16.mxu0 0
        %549 = vmatpush1.bf16.msra.mxu0 %v527
        %550 = vmatprep.subr.bf16.mxu0 0
        %551 = vmatpush2.bf16.msra.mxu0 0
        %552 = vmatprep.subr.bf16.mxu0 0
        %553 = vmatpush2.bf16.msra.mxu0 0
        %554 = vmatprep.subr.bf16.mxu0 0
        %555 = vmatpush2.bf16.msra.mxu0 0
        %556 = vmatprep.subr.bf16.mxu0 0
        %557 = vmatpush2.bf16.msra.mxu0 0
        %558 = vmatprep.subr.bf16.mxu0 0
        %559 = vmatpush2.bf16.msra.mxu0 0
        %560 = vmatprep.subr.bf16.mxu0 0
        %561 = vmatpush2.bf16.msra.mxu0 0
        %562 = vmatprep.subr.bf16.mxu0 0
        %563 = vmatpush2.bf16.msra.mxu0 0
        %564 = vmatprep.subr.bf16.mxu0 0
        %565 = vmatpush2.bf16.msra.mxu0 0
        %566 = vmatprep.mubr.bf16.mxu0 0
        %567 = vmatmul.mubr.bf16.gmra.mxu0 %v532
        %v568 = vpop.f32.mrf.mxu0
        %v569 = vadd.f32 %v518, %v568
        %v570 = vpop.f32.mrf.mxu0
        %v571 = vpop.f32.mrf.mxu0
        %v572 = vpop.f32.mrf.mxu0
        %573 = vdwg.mxu0
        %v574 = vmax.f32 %v569, 0.0
        %v575 = vpack.c.bf16 %v574, %v574
        %v576 = vlaneseq
        %v577 = vshrl.u32 %v576, 7
        %v578 = vsub.s32 0, %v577
        %v579 = vrot.slane %v473, %v578
        %v588 = vunpack.c.l.b16 %v481
        %v589 = vunpack.c.l.b16 %v482
        %v590 = vunpack.c.l.b16 %v483
        %v591 = vunpack.c.l.b16 %v484
        %v592 = vunpack.c.l.b16 %v485
        %v593 = vunpack.c.l.b16 %v486
        %v594 = vunpack.c.l.b16 %v487
        %v595 = vunpack.c.l.b16 %v488
        %v596 = vpack.c.b16 %v589, %v588
        %v597 = vpack.c.b16 %v591, %v590
        %v598 = vpack.c.b16 %v593, %v592
        %v599 = vpack.c.b16 %v595, %v594
        %vm604 = vcmask 523264
        %v606 = vsel %vm604, %v575, 0
        %608 = vmatprep.subr.bf16.mxu0 0
        %609 = vmatpush1.bf16.msra.mxu0 0
        %610 = vmatprep.subr.bf16.mxu0 0
        %611 = vmatpush1.bf16.msra.mxu0 0
        %612 = vmatprep.subr.bf16.mxu0 0
        %613 = vmatpush1.bf16.msra.mxu0 0
        %614 = vmatprep.subr.bf16.mxu0 0
        %615 = vmatpush1.bf16.msra.mxu0 0
        %616 = vmatprep.subr.bf16.mxu0 0
        %617 = vmatpush1.bf16.msra.mxu0 %v599
        %618 = vmatprep.subr.bf16.mxu0 0
        %619 = vmatpush1.bf16.msra.mxu0 %v598
        %620 = vmatprep.subr.bf16.mxu0 0
        %621 = vmatpush1.bf16.msra.mxu0 %v597
        %622 = vmatprep.subr.bf16.mxu0 0
        %623 = vmatpush1.bf16.msra.mxu0 %v596
        %624 = vmatprep.subr.bf16.mxu0 0
        %625 = vmatpush2.bf16.msra.mxu0 0
        %626 = vmatprep.subr.bf16.mxu0 0
        %627 = vmatpush2.bf16.msra.mxu0 0
        %628 = vmatprep.subr.bf16.mxu0 0
        %629 = vmatpush2.bf16.msra.mxu0 0
        %630 = vmatprep.subr.bf16.mxu0 0
        %631 = vmatpush2.bf16.msra.mxu0 0
        %632 = vmatprep.subr.bf16.mxu0 0
        %633 = vmatpush2.bf16.msra.mxu0 0
        %634 = vmatprep.subr.bf16.mxu0 0
        %635 = vmatpush2.bf16.msra.mxu0 0
        %636 = vmatprep.subr.bf16.mxu0 0
        %637 = vmatpush2.bf16.msra.mxu0 0
        %638 = vmatprep.subr.bf16.mxu0 0
        %639 = vmatpush2.bf16.msra.mxu0 0
        %640 = vmatprep.mubr.bf16.mxu0 0
        %641 = vmatmul.mubr.bf16.gmra.mxu0 %v606
        %v642 = vpop.f32.mrf.mxu0
        %v643 = vadd.f32 %v579, %v642
        %v644 = vpop.f32.mrf.mxu0
        %v645 = vpop.f32.mrf.mxu0
        %v646 = vpop.f32.mrf.mxu0
        %647 = vdwg.mxu0
        %v648 = vsel %vm489, %v643, 0.0
        %649 = vadd.xlane.f32.xlu0 %v648
        %v650 = vpop.xlane.xlu0 %649
        %v651 = vmul.f32 %v650, %v493
        %v652 = vsub.f32 %v643, %v651
        %v653 = vmul.f32 %v652, %v652
        %v654 = vsel %vm489, %v653, 0.0
        %655 = vadd.xlane.f32.xlu0 %v654
        %v656 = vpop.xlane.xlu0 %655
        %v657 = vmul.f32 %v656, %v493
        %v658 = vadd.f32 %v657, 1e-05
        %v659 = vrsqrt.pop %v658
        %v660 = vmul.f32 %v652, %v659
        %v661 = vlaneseq
        %v662 = vshrl.u32 %v661, 7
        %v663 = vsub.s32 2, %v662
        %v664 = vrot.slane %v472, %v663
        %v665 = vmul.f32 %v660, %v664
        %v666 = vlaneseq
        %v667 = vshrl.u32 %v666, 7
        %v668 = vsub.s32 3, %v667
        %v669 = vrot.slane %v472, %v668
        %v670 = vadd.f32 %v665, %v669
        %v671 = vpack.c.bf16 %v670, %v670
        %v672 = vld [vmem:[%s7] sm:$0xf]
        %v673 = vld [vmem:[%s7 + $0x4] sm:$0xf]
        %v674 = vld [vmem:[%s7 + $0x8] sm:$0xf]
        %v675 = vld [vmem:[%s7 + $0xc] sm:$0xf]
        %v676 = vlaneseq
        %v677 = vshrl.u32 %v676, 7
        %v678 = vsub.s32 0, %v677
        %v679 = vrot.slane %v475, %v678
        %v684 = vunpack.c.l.b16 %v672
        %v685 = vunpack.c.l.b16 %v673
        %v686 = vunpack.c.l.b16 %v674
        %v687 = vunpack.c.l.b16 %v675
        %v688 = vpack.c.b16 %v685, %v684
        %v689 = vpack.c.b16 %v687, %v686
        %v693 = vsel %vm489, %v671, 0
        %695 = vmatprep.subr.bf16.mxu0 0
        %696 = vmatpush1.bf16.msra.mxu0 0
        %697 = vmatprep.subr.bf16.mxu0 0
        %698 = vmatpush1.bf16.msra.mxu0 0
        %699 = vmatprep.subr.bf16.mxu0 0
        %700 = vmatpush1.bf16.msra.mxu0 0
        %701 = vmatprep.subr.bf16.mxu0 0
        %702 = vmatpush1.bf16.msra.mxu0 0
        %703 = vmatprep.subr.bf16.mxu0 0
        %704 = vmatpush1.bf16.msra.mxu0 0
        %705 = vmatprep.subr.bf16.mxu0 0
        %706 = vmatpush1.bf16.msra.mxu0 0
        %707 = vmatprep.subr.bf16.mxu0 0
        %708 = vmatpush1.bf16.msra.mxu0 %v689
        %709 = vmatprep.subr.bf16.mxu0 0
        %710 = vmatpush1.bf16.msra.mxu0 %v688
        %711 = vmatprep.subr.bf16.mxu0 0
        %712 = vmatpush2.bf16.msra.mxu0 0
        %713 = vmatprep.subr.bf16.mxu0 0
        %714 = vmatpush2.bf16.msra.mxu0 0
        %715 = vmatprep.subr.bf16.mxu0 0
        %716 = vmatpush2.bf16.msra.mxu0 0
        %717 = vmatprep.subr.bf16.mxu0 0
        %718 = vmatpush2.bf16.msra.mxu0 0
        %719 = vmatprep.subr.bf16.mxu0 0
        %720 = vmatpush2.bf16.msra.mxu0 0
        %721 = vmatprep.subr.bf16.mxu0 0
        %722 = vmatpush2.bf16.msra.mxu0 0
        %723 = vmatprep.subr.bf16.mxu0 0
        %724 = vmatpush2.bf16.msra.mxu0 0
        %725 = vmatprep.subr.bf16.mxu0 0
        %726 = vmatpush2.bf16.msra.mxu0 0
        %727 = vmatprep.mubr.bf16.mxu0 0
        %728 = vmatmul.mubr.bf16.gmra.mxu0 %v693
        %v729 = vpop.f32.mrf.mxu0
        %v730 = vadd.f32 %v679, %v729
        %v731 = vpop.f32.mrf.mxu0
        %v732 = vpop.f32.mrf.mxu0
        %v733 = vpop.f32.mrf.mxu0
        %734 = vdwg.mxu0
        %s735 = scalar_lea.vmem %s7, 16
        %v736 = vld [vmem:[%s735] sm:$0xf]
        %v737 = vld [vmem:[%s735 + $0x4] sm:$0xf]
        %v738 = vld [vmem:[%s735 + $0x8] sm:$0xf]
        %v739 = vld [vmem:[%s735 + $0xc] sm:$0xf]
        %v740 = vlaneseq
        %v741 = vshrl.u32 %v740, 7
        %v742 = vsub.s32 1, %v741
        %v743 = vrot.slane %v475, %v742
        %v748 = vunpack.c.l.b16 %v736
        %v749 = vunpack.c.l.b16 %v737
        %v750 = vunpack.c.l.b16 %v738
        %v751 = vunpack.c.l.b16 %v739
        %v752 = vpack.c.b16 %v749, %v748
        %v753 = vpack.c.b16 %v751, %v750
        %756 = vmatprep.subr.bf16.mxu0 0
        %757 = vmatpush1.bf16.msra.mxu0 0
        %758 = vmatprep.subr.bf16.mxu0 0
        %759 = vmatpush1.bf16.msra.mxu0 0
        %760 = vmatprep.subr.bf16.mxu0 0
        %761 = vmatpush1.bf16.msra.mxu0 0
        %762 = vmatprep.subr.bf16.mxu0 0
        %763 = vmatpush1.bf16.msra.mxu0 0
        %764 = vmatprep.subr.bf16.mxu0 0
        %765 = vmatpush1.bf16.msra.mxu0 0
        %766 = vmatprep.subr.bf16.mxu0 0
        %767 = vmatpush1.bf16.msra.mxu0 0
        %768 = vmatprep.subr.bf16.mxu0 0
        %769 = vmatpush1.bf16.msra.mxu0 %v753
        %770 = vmatprep.subr.bf16.mxu0 0
        %771 = vmatpush1.bf16.msra.mxu0 %v752
        %772 = vmatprep.subr.bf16.mxu0 0
        %773 = vmatpush2.bf16.msra.mxu0 0
        %774 = vmatprep.subr.bf16.mxu0 0
        %775 = vmatpush2.bf16.msra.mxu0 0
        %776 = vmatprep.subr.bf16.mxu0 0
        %777 = vmatpush2.bf16.msra.mxu0 0
        %778 = vmatprep.subr.bf16.mxu0 0
        %779 = vmatpush2.bf16.msra.mxu0 0
        %780 = vmatprep.subr.bf16.mxu0 0
        %781 = vmatpush2.bf16.msra.mxu0 0
        %782 = vmatprep.subr.bf16.mxu0 0
        %783 = vmatpush2.bf16.msra.mxu0 0
        %784 = vmatprep.subr.bf16.mxu0 0
        %785 = vmatpush2.bf16.msra.mxu0 0
        %786 = vmatprep.subr.bf16.mxu0 0
        %787 = vmatpush2.bf16.msra.mxu0 0
        %788 = vmatprep.mubr.bf16.mxu0 0
        %789 = vmatmul.mubr.bf16.gmra.mxu0 %v693
        %v790 = vpop.f32.mrf.mxu0
        %v791 = vadd.f32 %v743, %v790
        %v792 = vpop.f32.mrf.mxu0
        %v793 = vpop.f32.mrf.mxu0
        %v794 = vpop.f32.mrf.mxu0
        %795 = vdwg.mxu0
        %s796 = scalar_lea.vmem %s7, 32
        %v797 = vld [vmem:[%s796] sm:$0xf]
        %v798 = vld [vmem:[%s796 + $0x4] sm:$0xf]
        %v799 = vld [vmem:[%s796 + $0x8] sm:$0xf]
        %v800 = vld [vmem:[%s796 + $0xc] sm:$0xf]
        %v801 = vlaneseq
        %v802 = vshrl.u32 %v801, 7
        %v803 = vsub.s32 2, %v802
        %v804 = vrot.slane %v475, %v803
        %v809 = vunpack.c.l.b16 %v797
        %v810 = vunpack.c.l.b16 %v798
        %v811 = vunpack.c.l.b16 %v799
        %v812 = vunpack.c.l.b16 %v800
        %v813 = vpack.c.b16 %v810, %v809
        %v814 = vpack.c.b16 %v812, %v811
        %817 = vmatprep.subr.bf16.mxu0 0
        %818 = vmatpush1.bf16.msra.mxu0 0
        %819 = vmatprep.subr.bf16.mxu0 0
        %820 = vmatpush1.bf16.msra.mxu0 0
        %821 = vmatprep.subr.bf16.mxu0 0
        %822 = vmatpush1.bf16.msra.mxu0 0
        %823 = vmatprep.subr.bf16.mxu0 0
        %824 = vmatpush1.bf16.msra.mxu0 0
        %825 = vmatprep.subr.bf16.mxu0 0
        %826 = vmatpush1.bf16.msra.mxu0 0
        %827 = vmatprep.subr.bf16.mxu0 0
        %828 = vmatpush1.bf16.msra.mxu0 0
        %829 = vmatprep.subr.bf16.mxu0 0
        %830 = vmatpush1.bf16.msra.mxu0 %v814
        %831 = vmatprep.subr.bf16.mxu0 0
        %832 = vmatpush1.bf16.msra.mxu0 %v813
        %833 = vmatprep.subr.bf16.mxu0 0
        %834 = vmatpush2.bf16.msra.mxu0 0
        %835 = vmatprep.subr.bf16.mxu0 0
        %836 = vmatpush2.bf16.msra.mxu0 0
        %837 = vmatprep.subr.bf16.mxu0 0
        %838 = vmatpush2.bf16.msra.mxu0 0
        %839 = vmatprep.subr.bf16.mxu0 0
        %840 = vmatpush2.bf16.msra.mxu0 0
        %841 = vmatprep.subr.bf16.mxu0 0
        %842 = vmatpush2.bf16.msra.mxu0 0
        %843 = vmatprep.subr.bf16.mxu0 0
        %844 = vmatpush2.bf16.msra.mxu0 0
        %845 = vmatprep.subr.bf16.mxu0 0
        %846 = vmatpush2.bf16.msra.mxu0 0
        %847 = vmatprep.subr.bf16.mxu0 0
        %848 = vmatpush2.bf16.msra.mxu0 0
        %849 = vmatprep.mubr.bf16.mxu0 0
        %850 = vmatmul.mubr.bf16.gmra.mxu0 %v693
        %v851 = vpop.f32.mrf.mxu0
        %v852 = vadd.f32 %v804, %v851
        %v853 = vpop.f32.mrf.mxu0
        %v854 = vpop.f32.mrf.mxu0
        %v855 = vpop.f32.mrf.mxu0
        %856 = vdwg.mxu0
        %v857 = vpack.c.bf16 %v730, %v730
        %v858 = vpack.c.bf16 %v791, %v791
        %v860 = vsel %vm489, %v857, 0
        %v863 = vsel %vm489, %v858, 0
        %865 = vmatprep.subr.bf16.mxu0 0
        %866 = vmatpush1.bf16.xpose.msra.mxu0 0
        %867 = vmatprep.subr.bf16.mxu0 0
        %868 = vmatpush1.bf16.xpose.msra.mxu0 0
        %869 = vmatprep.subr.bf16.mxu0 0
        %870 = vmatpush1.bf16.xpose.msra.mxu0 0
        %871 = vmatprep.subr.bf16.mxu0 0
        %872 = vmatpush1.bf16.xpose.msra.mxu0 0
        %873 = vmatprep.subr.bf16.mxu0 0
        %874 = vmatpush1.bf16.xpose.msra.mxu0 0
        %875 = vmatprep.subr.bf16.mxu0 0
        %876 = vmatpush1.bf16.xpose.msra.mxu0 0
        %877 = vmatprep.subr.bf16.mxu0 0
        %878 = vmatpush1.bf16.xpose.msra.mxu0 0
        %879 = vmatprep.subr.bf16.mxu0 0
        %880 = vmatpush1.bf16.xpose.msra.mxu0 %v863
        %881 = vmatprep.subr.bf16.mxu0 0
        %882 = vmatpush2.bf16.xpose.msra.mxu0 0
        %883 = vmatprep.subr.bf16.mxu0 0
        %884 = vmatpush2.bf16.xpose.msra.mxu0 0
        %885 = vmatprep.subr.bf16.mxu0 0
        %886 = vmatpush2.bf16.xpose.msra.mxu0 0
        %887 = vmatprep.subr.bf16.mxu0 0
        %888 = vmatpush2.bf16.xpose.msra.mxu0 0
        %889 = vmatprep.subr.bf16.mxu0 0
        %890 = vmatpush2.bf16.xpose.msra.mxu0 0
        %891 = vmatprep.subr.bf16.mxu0 0
        %892 = vmatpush2.bf16.xpose.msra.mxu0 0
        %893 = vmatprep.subr.bf16.mxu0 0
        %894 = vmatpush2.bf16.xpose.msra.mxu0 0
        %895 = vmatprep.subr.bf16.mxu0 0
        %896 = vmatpush2.bf16.xpose.msra.mxu0 0
        %897 = vmatprep.mubr.bf16.mxu0 0
        %898 = vmatmul.mubr.bf16.gmra.mxu0 %v860
        %v899 = vpop.f32.mrf.mxu0
        %v900 = vadd.f32 0.0, %v899
        %v901 = vpop.f32.mrf.mxu0
        %v902 = vpop.f32.mrf.mxu0
        %v903 = vpop.f32.mrf.mxu0
        %904 = vdwg.mxu0
        %vm905 = vcmask 64512
        %v906 = vsel %vm905, %v900, -inf
        %907 = vmax.xlane.f32.xlu0 %v906
        %v908 = vpop.xlane.xlu0 %907
        %v909 = vsub.f32 %v900, %v908
        %v910 = vmul.f32 %v909, 1.442695
        %v911 = vpow.pop %v910
        %v912 = vsel %vm905, %v911, 0.0
        %913 = vadd.xlane.f32.xlu0 %v912
        %v914 = vpop.xlane.xlu0 %913
        %v915 = vrcp.pop %v914
        %v916 = vmul.f32 %v911, %v915
        %v917 = vpack.c.bf16 %v916, %v916
        %vm918 = vcmask 60416
        %919 = vst.msk [vmem:[%s466] sm:$0xf] %vm918, %v917
        %v920 = vpack.c.bf16 %v852, %v852
        %v922 = vsel %vm905, %v917, 0
        %vm924 = vcmask 1043456
        %v926 = vsel %vm924, %v920, 0
        %928 = vmatprep.subr.bf16.mxu0 0
        %929 = vmatpush1.bf16.msra.mxu0 0
        %930 = vmatprep.subr.bf16.mxu0 0
        %931 = vmatpush1.bf16.msra.mxu0 0
        %932 = vmatprep.subr.bf16.mxu0 0
        %933 = vmatpush1.bf16.msra.mxu0 0
        %934 = vmatprep.subr.bf16.mxu0 0
        %935 = vmatpush1.bf16.msra.mxu0 0
        %936 = vmatprep.subr.bf16.mxu0 0
        %937 = vmatpush1.bf16.msra.mxu0 0
        %938 = vmatprep.subr.bf16.mxu0 0
        %939 = vmatpush1.bf16.msra.mxu0 0
        %940 = vmatprep.subr.bf16.mxu0 0
        %941 = vmatpush1.bf16.msra.mxu0 0
        %942 = vmatprep.subr.bf16.mxu0 0
        %943 = vmatpush1.bf16.msra.mxu0 %v926
        %944 = vmatprep.subr.bf16.mxu0 0
        %945 = vmatpush2.bf16.msra.mxu0 0
        %946 = vmatprep.subr.bf16.mxu0 0
        %947 = vmatpush2.bf16.msra.mxu0 0
        %948 = vmatprep.subr.bf16.mxu0 0
        %949 = vmatpush2.bf16.msra.mxu0 0
        %950 = vmatprep.subr.bf16.mxu0 0
        %951 = vmatpush2.bf16.msra.mxu0 0
        %952 = vmatprep.subr.bf16.mxu0 0
        %953 = vmatpush2.bf16.msra.mxu0 0
        %954 = vmatprep.subr.bf16.mxu0 0
        %955 = vmatpush2.bf16.msra.mxu0 0
        %956 = vmatprep.subr.bf16.mxu0 0
        %957 = vmatpush2.bf16.msra.mxu0 0
        %958 = vmatprep.subr.bf16.mxu0 0
        %959 = vmatpush2.bf16.msra.mxu0 0
        %960 = vmatprep.mubr.bf16.mxu0 0
        %961 = vmatmul.mubr.bf16.gmra.mxu0 %v922
        %v962 = vpop.f32.mrf.mxu0
        %v963 = vadd.f32 0.0, %v962
        %v964 = vpop.f32.mrf.mxu0
        %v965 = vpop.f32.mrf.mxu0
        %v966 = vpop.f32.mrf.mxu0
        %967 = vdwg.mxu0
        %v968 = vpack.c.bf16 %v963, %v963
        %v969 = vld [vmem:[%s8] sm:$0xf]
        %v970 = vld [vmem:[%s8 + $0x4] sm:$0xf]
        %v971 = vld [vmem:[%s8 + $0x8] sm:$0xf]
        %v972 = vld [vmem:[%s8 + $0xc] sm:$0xf]
        %v973 = vlaneseq
        %v974 = vshrl.u32 %v973, 7
        %v975 = vsub.s32 1, %v974
        %v976 = vrot.slane %v473, %v975
        %v981 = vunpack.c.l.b16 %v969
        %v982 = vunpack.c.l.b16 %v970
        %v983 = vunpack.c.l.b16 %v971
        %v984 = vunpack.c.l.b16 %v972
        %v985 = vpack.c.b16 %v982, %v981
        %v986 = vpack.c.b16 %v984, %v983
        %v990 = vsel %vm489, %v968, 0
        %992 = vmatprep.subr.bf16.mxu0 0
        %993 = vmatpush1.bf16.msra.mxu0 0
        %994 = vmatprep.subr.bf16.mxu0 0
        %995 = vmatpush1.bf16.msra.mxu0 0
        %996 = vmatprep.subr.bf16.mxu0 0
        %997 = vmatpush1.bf16.msra.mxu0 0
        %998 = vmatprep.subr.bf16.mxu0 0
        %999 = vmatpush1.bf16.msra.mxu0 0
        %1000 = vmatprep.subr.bf16.mxu0 0
        %1001 = vmatpush1.bf16.msra.mxu0 0
        %1002 = vmatprep.subr.bf16.mxu0 0
        %1003 = vmatpush1.bf16.msra.mxu0 0
        %1004 = vmatprep.subr.bf16.mxu0 0
        %1005 = vmatpush1.bf16.msra.mxu0 %v986
        %1006 = vmatprep.subr.bf16.mxu0 0
        %1007 = vmatpush1.bf16.msra.mxu0 %v985
        %1008 = vmatprep.subr.bf16.mxu0 0
        %1009 = vmatpush2.bf16.msra.mxu0 0
        %1010 = vmatprep.subr.bf16.mxu0 0
        %1011 = vmatpush2.bf16.msra.mxu0 0
        %1012 = vmatprep.subr.bf16.mxu0 0
        %1013 = vmatpush2.bf16.msra.mxu0 0
        %1014 = vmatprep.subr.bf16.mxu0 0
        %1015 = vmatpush2.bf16.msra.mxu0 0
        %1016 = vmatprep.subr.bf16.mxu0 0
        %1017 = vmatpush2.bf16.msra.mxu0 0
        %1018 = vmatprep.subr.bf16.mxu0 0
        %1019 = vmatpush2.bf16.msra.mxu0 0
        %1020 = vmatprep.subr.bf16.mxu0 0
        %1021 = vmatpush2.bf16.msra.mxu0 0
        %1022 = vmatprep.subr.bf16.mxu0 0
        %1023 = vmatpush2.bf16.msra.mxu0 0
        %1024 = vmatprep.mubr.bf16.mxu0 0
        %1025 = vmatmul.mubr.bf16.gmra.mxu0 %v990
        %v1026 = vpop.f32.mrf.mxu0
        %v1027 = vadd.f32 %v976, %v1026
        %v1028 = vpop.f32.mrf.mxu0
        %v1029 = vpop.f32.mrf.mxu0
        %v1030 = vpop.f32.mrf.mxu0
        %1031 = vdwg.mxu0
        %v1032 = vld [vmem:[%s9] sm:$0xf]
        %v1033 = vld [vmem:[%s9 + $0x4] sm:$0xf]
        %v1034 = vld [vmem:[%s9 + $0x8] sm:$0xf]
        %v1035 = vld [vmem:[%s9 + $0xc] sm:$0xf]
        %v1036 = vld [vmem:[%s10] sm:$0xf]
        %v1037 = vld [vmem:[%s10 + $0x4] sm:$0xf]
        %v1038 = vld [vmem:[%s10 + $0x8] sm:$0xf]
        %v1039 = vld [vmem:[%s10 + $0xc] sm:$0xf]
        %v1040 = vld [vmem:[%s10 + $0x10] sm:$0xf]
        %v1041 = vld [vmem:[%s10 + $0x14] sm:$0xf]
        %v1042 = vld [vmem:[%s10 + $0x18] sm:$0xf]
        %v1043 = vld [vmem:[%s10 + $0x1c] sm:$0xf]
        %v1044 = vsel %vm489, %v1027, 0.0
        %1045 = vadd.xlane.f32.xlu0 %v1044
        %v1046 = vpop.xlane.xlu0 %1045
        %v1047 = vmul.f32 %v1046, %v493
        %v1048 = vsub.f32 %v1027, %v1047
        %v1049 = vmul.f32 %v1048, %v1048
        %v1050 = vsel %vm489, %v1049, 0.0
        %1051 = vadd.xlane.f32.xlu0 %v1050
        %v1052 = vpop.xlane.xlu0 %1051
        %v1053 = vmul.f32 %v1052, %v493
        %v1054 = vadd.f32 %v1053, 1e-05
        %v1055 = vrsqrt.pop %v1054
        %v1056 = vmul.f32 %v1048, %v1055
        %v1057 = vlaneseq
        %v1058 = vshrl.u32 %v1057, 7
        %v1059 = vsub.s32 4, %v1058
        %v1060 = vrot.slane %v472, %v1059
        %v1061 = vmul.f32 %v1056, %v1060
        %v1062 = vlaneseq
        %v1063 = vshrl.u32 %v1062, 7
        %v1064 = vsub.s32 5, %v1063
        %v1065 = vrot.slane %v472, %v1064
        %v1066 = vadd.f32 %v1061, %v1065
        %v1067 = vpack.c.bf16 %v1066, %v1066
        %v1068 = vlaneseq
        %v1069 = vshrl.u32 %v1068, 7
        %v1070 = vsub.s32 1, %v1069
        %v1071 = vrot.slane %v474, %v1070
        %v1076 = vunpack.c.l.b16 %v1032
        %v1077 = vunpack.c.l.b16 %v1033
        %v1078 = vunpack.c.l.b16 %v1034
        %v1079 = vunpack.c.l.b16 %v1035
        %v1080 = vpack.c.b16 %v1077, %v1076
        %v1081 = vpack.c.b16 %v1079, %v1078
        %v1085 = vsel %vm489, %v1067, 0
        %1087 = vmatprep.subr.bf16.mxu0 0
        %1088 = vmatpush1.bf16.msra.mxu0 0
        %1089 = vmatprep.subr.bf16.mxu0 0
        %1090 = vmatpush1.bf16.msra.mxu0 0
        %1091 = vmatprep.subr.bf16.mxu0 0
        %1092 = vmatpush1.bf16.msra.mxu0 0
        %1093 = vmatprep.subr.bf16.mxu0 0
        %1094 = vmatpush1.bf16.msra.mxu0 0
        %1095 = vmatprep.subr.bf16.mxu0 0
        %1096 = vmatpush1.bf16.msra.mxu0 0
        %1097 = vmatprep.subr.bf16.mxu0 0
        %1098 = vmatpush1.bf16.msra.mxu0 0
        %1099 = vmatprep.subr.bf16.mxu0 0
        %1100 = vmatpush1.bf16.msra.mxu0 %v1081
        %1101 = vmatprep.subr.bf16.mxu0 0
        %1102 = vmatpush1.bf16.msra.mxu0 %v1080
        %1103 = vmatprep.subr.bf16.mxu0 0
        %1104 = vmatpush2.bf16.msra.mxu0 0
        %1105 = vmatprep.subr.bf16.mxu0 0
        %1106 = vmatpush2.bf16.msra.mxu0 0
        %1107 = vmatprep.subr.bf16.mxu0 0
        %1108 = vmatpush2.bf16.msra.mxu0 0
        %1109 = vmatprep.subr.bf16.mxu0 0
        %1110 = vmatpush2.bf16.msra.mxu0 0
        %1111 = vmatprep.subr.bf16.mxu0 0
        %1112 = vmatpush2.bf16.msra.mxu0 0
        %1113 = vmatprep.subr.bf16.mxu0 0
        %1114 = vmatpush2.bf16.msra.mxu0 0
        %1115 = vmatprep.subr.bf16.mxu0 0
        %1116 = vmatpush2.bf16.msra.mxu0 0
        %1117 = vmatprep.subr.bf16.mxu0 0
        %1118 = vmatpush2.bf16.msra.mxu0 0
        %1119 = vmatprep.mubr.bf16.mxu0 0
        %1120 = vmatmul.mubr.bf16.gmra.mxu0 %v1085
        %v1121 = vpop.f32.mrf.mxu0
        %v1122 = vadd.f32 %v1071, %v1121
        %v1123 = vpop.f32.mrf.mxu0
        %v1124 = vpop.f32.mrf.mxu0
        %v1125 = vpop.f32.mrf.mxu0
        %1126 = vdwg.mxu0
        %v1127 = vmax.f32 %v1122, 0.0
        %v1128 = vpack.c.bf16 %v1127, %v1127
        %v1129 = vlaneseq
        %v1130 = vshrl.u32 %v1129, 7
        %v1131 = vsub.s32 2, %v1130
        %v1132 = vrot.slane %v473, %v1131
        %v1141 = vunpack.c.l.b16 %v1036
        %v1142 = vunpack.c.l.b16 %v1037
        %v1143 = vunpack.c.l.b16 %v1038
        %v1144 = vunpack.c.l.b16 %v1039
        %v1145 = vunpack.c.l.b16 %v1040
        %v1146 = vunpack.c.l.b16 %v1041
        %v1147 = vunpack.c.l.b16 %v1042
        %v1148 = vunpack.c.l.b16 %v1043
        %v1149 = vpack.c.b16 %v1142, %v1141
        %v1150 = vpack.c.b16 %v1144, %v1143
        %v1151 = vpack.c.b16 %v1146, %v1145
        %v1152 = vpack.c.b16 %v1148, %v1147
        %v1158 = vsel %vm604, %v1128, 0
        %1160 = vmatprep.subr.bf16.mxu0 0
        %1161 = vmatpush1.bf16.msra.mxu0 0
        %1162 = vmatprep.subr.bf16.mxu0 0
        %1163 = vmatpush1.bf16.msra.mxu0 0
        %1164 = vmatprep.subr.bf16.mxu0 0
        %1165 = vmatpush1.bf16.msra.mxu0 0
        %1166 = vmatprep.subr.bf16.mxu0 0
        %1167 = vmatpush1.bf16.msra.mxu0 0
        %1168 = vmatprep.subr.bf16.mxu0 0
        %1169 = vmatpush1.bf16.msra.mxu0 %v1152
        %1170 = vmatprep.subr.bf16.mxu0 0
        %1171 = vmatpush1.bf16.msra.mxu0 %v1151
        %1172 = vmatprep.subr.bf16.mxu0 0
        %1173 = vmatpush1.bf16.msra.mxu0 %v1150
        %1174 = vmatprep.subr.bf16.mxu0 0
        %1175 = vmatpush1.bf16.msra.mxu0 %v1149
        %1176 = vmatprep.subr.bf16.mxu0 0
        %1177 = vmatpush2.bf16.msra.mxu0 0
        %1178 = vmatprep.subr.bf16.mxu0 0
        %1179 = vmatpush2.bf16.msra.mxu0 0
        %1180 = vmatprep.subr.bf16.mxu0 0
        %1181 = vmatpush2.bf16.msra.mxu0 0
        %1182 = vmatprep.subr.bf16.mxu0 0
        %1183 = vmatpush2.bf16.msra.mxu0 0
        %1184 = vmatprep.subr.bf16.mxu0 0
        %1185 = vmatpush2.bf16.msra.mxu0 0
        %1186 = vmatprep.subr.bf16.mxu0 0
        %1187 = vmatpush2.bf16.msra.mxu0 0
        %1188 = vmatprep.subr.bf16.mxu0 0
        %1189 = vmatpush2.bf16.msra.mxu0 0
        %1190 = vmatprep.subr.bf16.mxu0 0
        %1191 = vmatpush2.bf16.msra.mxu0 0
        %1192 = vmatprep.mubr.bf16.mxu0 0
        %1193 = vmatmul.mubr.bf16.gmra.mxu0 %v1158
        %v1194 = vpop.f32.mrf.mxu0
        %v1195 = vadd.f32 %v1132, %v1194
        %v1196 = vpop.f32.mrf.mxu0
        %v1197 = vpop.f32.mrf.mxu0
        %v1198 = vpop.f32.mrf.mxu0
        %1199 = vdwg.mxu0
        %v1200 = vsel %vm489, %v1195, 0.0
        %1201 = vadd.xlane.f32.xlu0 %v1200
        %v1202 = vpop.xlane.xlu0 %1201
        %v1203 = vmul.f32 %v1202, %v493
        %v1204 = vsub.f32 %v1195, %v1203
        %v1205 = vmul.f32 %v1204, %v1204
        %v1206 = vsel %vm489, %v1205, 0.0
        %1207 = vadd.xlane.f32.xlu0 %v1206
        %v1208 = vpop.xlane.xlu0 %1207
        %v1209 = vmul.f32 %v1208, %v493
        %v1210 = vadd.f32 %v1209, 1e-05
        %v1211 = vrsqrt.pop %v1210
        %v1212 = vmul.f32 %v1204, %v1211
        %v1213 = vlaneseq
        %v1214 = vshrl.u32 %v1213, 7
        %v1215 = vsub.s32 6, %v1214
        %v1216 = vrot.slane %v472, %v1215
        %v1217 = vmul.f32 %v1212, %v1216
        %v1218 = vlaneseq
        %v1219 = vshrl.u32 %v1218, 7
        %v1220 = vsub.s32 7, %v1219
        %v1221 = vrot.slane %v472, %v1220
        %v1222 = vadd.f32 %v1217, %v1221
        %1223 = vst.msk [vmem:[%s459] sm:$0xff] %vm489, %v1222
        %s1224 = sand.u32 %s277, 1
        %s1225 = scalar_lea.sflag [#allocation4], %s1224
        %s1226 = sand.u32 %s277, 1
        %s1227 = smul.addr %s1226, 8
        %s1228 = scalar_lea.vmem [#allocation10], %s1227
        %s1229 = sand.u32 %s303, 1
        %s1230 = scalar_lea.sflag [#allocation12], %s1229
        %s1231 = sand.u32 %s303, 1
        %s1232 = smul.addr %s1231, 4
        %s1233 = scalar_lea.vmem [#allocation11], %s1232
        // Predicated region
        $region81: #{tpu_custom_call.1} parent=63 // pred_check
          %p1234 = pneg %p287
        $region82: #{tpu_custom_call.1} parent=63 // pred_check_branch
          %1236 = sbr.rel (%p1234) target = $region84
        $region83: #{tpu_custom_call.1} parent=63 // pred_region
          %s1238 = ssub.s32 128, 128
          %1239 = vsyncadd %s1225, %s1238
          %s1240 = smul.addr %s33, 128
          %s1241 = scalar_lea.hbm %s11, %s1240
          %s1243 = sshll.u32 %s1228, 4
          %s1244 = int_to_ptr.vmem [resolvable:$true] %s1243
          %1246 = dma.vmem_to_hbm [thread:$0]  %s1244, 128, %s1241, %s1225
        $region84: #{tpu_custom_call.1} parent=63 // pred_fallthru
          _
        // Predicated region
        $region85: #{tpu_custom_call.1} parent=63 // pred_check
          %p1247 = pneg %p313
        $region86: #{tpu_custom_call.1} parent=63 // pred_check_branch
          %1249 = sbr.rel (%p1247) target = $region88
        $region87: #{tpu_custom_call.1} parent=63 // pred_region
          %s1251 = ssub.s32 64, 64
          %1252 = vsyncadd %s1230, %s1251
          %s1253 = smul.addr %s33, 64
          %s1254 = scalar_lea.hbm %s12, %s1253
          %s1256 = sshll.u32 %s1233, 4
          %s1257 = int_to_ptr.vmem [resolvable:$true] %s1256
          %1259 = dma.vmem_to_hbm [thread:$0]  %s1257, 64, %s1254, %s1230
        $region88: #{tpu_custom_call.1} parent=63 // pred_fallthru
          _
      $region64: #{tpu_custom_call.1} parent=5 // pred_fallthru
        _
      %p1260 = scmp.le.s32.totalorder 2, %s28
      // Predicated region
      $region89: #{tpu_custom_call.1} parent=5 // pred_check
        %p1261 = pneg %p1260
      $region90: #{tpu_custom_call.1} parent=5 // pred_check_branch
        %1263 = sbr.rel (%p1261) target = $region92
      $region91: #{tpu_custom_call.1} parent=5 // pred_region
        %s1264 = ssub.s32 %s28, 2
        // Predicated region
        $region93: #{tpu_custom_call.1} parent=91 // pred_check
          %p1265 = pneg %p293
        $region94: #{tpu_custom_call.1} parent=91 // pred_check_branch
          %1267 = sbr.rel (%p1265) target = $region96
        $region95: #{tpu_custom_call.1} parent=91 // pred_region
          %s1268 = sand.u32 %s278, 1
          %s1269 = scalar_lea.sflag [#allocation4], %s1268
          %s1270 = sand.u32 %s278, 1
          %s1271 = smul.addr %s1270, 8
          %s1272 = scalar_lea.vmem [#allocation10], %s1271
          %1273 = dma.done %s1269, 128
        $region96: #{tpu_custom_call.1} parent=91 // pred_fallthru
          _
        // Predicated region
        $region97: #{tpu_custom_call.1} parent=91 // pred_check
          %p1274 = pneg %p319
        $region98: #{tpu_custom_call.1} parent=91 // pred_check_branch
          %1276 = sbr.rel (%p1274) target = $region100
        $region99: #{tpu_custom_call.1} parent=91 // pred_region
          %s1277 = sand.u32 %s304, 1
          %s1278 = scalar_lea.sflag [#allocation12], %s1277
          %s1279 = sand.u32 %s304, 1
          %s1280 = smul.addr %s1279, 4
          %s1281 = scalar_lea.vmem [#allocation11], %s1280
          %1282 = dma.done %s1278, 64
        $region100: #{tpu_custom_call.1} parent=91 // pred_fallthru
          _
      $region92: #{tpu_custom_call.1} parent=5 // pred_fallthru
        _
    $region6: #{tpu_custom_call.1} parent=1 // loop_footer
      %s32 = sadd.s32 1, %s28
    $region7: #{tpu_custom_call.1} parent=1 // loop_footer_branch
      %27 = sbr.rel target = $region3
    $region8: #{tpu_custom_call.1} parent=1 // loop_exit
      _
    %1283 = vsyncpa [#allocation3], 1
    %s1284 = scalar_lea.sflag [#allocation3], 1
    %1285 = vsyncpa %s1284, 1
    %1286 = vsyncpa [#allocation6], 1
    %1287 = vsyncpa [#allocation9], 1
    %1288 = vsyncpa [#allocation4], 1
    %s1289 = scalar_lea.sflag [#allocation4], 1
    %1290 = vsyncpa %s1289, 1
    %1291 = vsyncpa [#allocation12], 1
    %s1292 = scalar_lea.sflag [#allocation12], 1
    %1293 = vsyncpa %s1292, 1

// kernel: tpu_custom_call.1
$region0: #{tpu_custom_call.1}
  #allocation0 [shape = 'u32[]', space=smem, size = 0x4, offset = 0x4, fixed_abs, tag = 'smem constant byte address 0x4 - core index']
  #allocation1 [shape = 'u32[144,128]{1,0:T(1,128)}', space=vmem, size = 0x12000, scoped, tag = 'internal scratch']
  %s0 = inlined_call_operand.vmem [shape: f32[2,8,32], index: 0, kind: input, shape index: {}]
  %s1 = inlined_call_operand.hbm [shape: f32[8,32], index: 1, kind: input, shape index: {}]
  %s2 = inlined_call_operand.hbm [shape: f32[3,32], index: 2, kind: input, shape index: {}]
  %s3 = inlined_call_operand.hbm [shape: f32[2,64], index: 3, kind: input, shape index: {}]
  %s4 = inlined_call_operand.hbm [shape: f32[3,32], index: 4, kind: input, shape index: {}]
  %s5 = inlined_call_operand.vmem [shape: bf16[32,64], index: 5, kind: input, shape index: {}]
  %s6 = inlined_call_operand.vmem [shape: bf16[64,32], index: 6, kind: input, shape index: {}]
  %s7 = inlined_call_operand.vmem [shape: bf16[3,32,32], index: 7, kind: input, shape index: {}]
  %s8 = inlined_call_operand.vmem [shape: bf16[32,32], index: 8, kind: input, shape index: {}]
  %s9 = inlined_call_operand.vmem [shape: bf16[32,64], index: 9, kind: input, shape index: {}]
  %s10 = inlined_call_operand.vmem [shape: bf16[64,32], index: 10, kind: input, shape index: {}]
  %s11 = inlined_call_operand.hbm [shape: f32[2,8,32], index: 11, kind: output, shape index: {0}]
  %s12 = inlined_call_operand.hbm [shape: bf16[2,8,8], index: 12, kind: output, shape index: {1}]
  %13 = xla_tuple %s11, %s12
  %s14 = sld [smem:[#allocation0]]
  $region101: #{tpu_custom_call.1} parent=0
    _
  %s16 = ssub.s32 1, %s14
  %s17 = scalar_select 0, %s16, %s14
  $region1: #{tpu_custom_call.1} parent=0
    #allocation2 [shape = 'u8[4096]{0}', space=vmem, size = 0x1000, scoped, tag = 'input window, operand 1, single buffered']
    #allocation3 [shape = 's32[2]{0}', space=sflag, size = 0x8, scoped, tag = 'scoped memory for tpu_custom_call.1']
    #allocation4 [shape = 's32[2]{0}', space=sflag, size = 0x8, scoped, tag = 'scoped memory for tpu_custom_call.1']
    #allocation5 [shape = 'u8[2048]{0}', space=vmem, size = 0x800, scoped, tag = 'input window, operand 2, single buffered']
    #allocation6 [shape = 's32[1]{0}', space=sflag, size = 0x4, scoped, tag = 'scoped memory for tpu_custom_call.1']
    #allocation7 [shape = 'u8[1024]{0}', space=vmem, size = 0x400, scoped, tag = 'input window, operand 3, single buffered']
    #allocation8 [shape = 'u8[2048]{0}', space=vmem, size = 0x800, scoped, tag = 'input window, operand 4, single buffered']
    #allocation9 [shape = 's32[1]{0}', space=sflag, size = 0x4, scoped, tag = 'scoped memory for tpu_custom_call.1']
    #allocation10 [shape = 'u8[8192]{0}', space=vmem, size = 0x2000, scoped, tag = 'output window, operand 0']
    #allocation11 [shape = 'u8[4096]{0}', space=vmem, size = 0x1000, scoped, tag = 'output window, operand 1']
    #allocation12 [shape = 's32[2]{0}', space=sflag, size = 0x8, scoped, tag = 'scoped memory for tpu_custom_call.1']
    %18 = vsyncpa [#allocation3], 0
    %19 = vsyncpa [#allocation6], 0
    %20 = vsyncpa [#allocation9], 0
    %21 = vsyncpa [#allocation4], 0
    %s22 = scalar_lea.sflag [#allocation4], 1
    %23 = vsyncpa %s22, 0
    %24 = vsyncpa [#allocation12], 0
    %s25 = scalar_lea.sflag [#allocation12], 1
    %26 = vsyncpa %s25, 0
    loop: start=0, step=1, limit=4
    $region2: #{tpu_custom_call.1} parent=1 // loop_pre_header
      _
    $region3: #{tpu_custom_call.1} parent=1 // loop_header
      %s28 = sphi 0, %s32
      %p29 = scmp.ge.s32.totalorder %s28, 4
      %s38 = sphi 0, %s40
      %s41 = sphi 0, %s38
      %s42 = sphi 0, %s41
      %s58 = sphi 0, %s42
      %s62 = sphi 0, %s62
      %s64 = sphi 0, %s62
      %s65 = sphi 0, %s64
      %s79 = sphi 0, %s65
      %s83 = sphi 0, %s83
      %s85 = sphi 0, %s83
      %s86 = sphi 0, %s85
      %s100 = sphi 0, %s86
      %s104 = sphi 0, %s104
      %s106 = sphi 0, %s104
      %s107 = sphi 0, %s106
      %s121 = sphi 0, %s107
      %s125 = sphi 0, %s125
      %s127 = sphi 0, %s125
      %s128 = sphi 0, %s127
      %s142 = sphi 0, %s128
      %s146 = sphi 0, %s146
      %s148 = sphi 0, %s146
      %s149 = sphi 0, %s148
      %s163 = sphi 0, %s149
      %s167 = sphi 0, %s167
      %s169 = sphi 0, %s167
      %s170 = sphi 0, %s169
      %s184 = sphi 0, %s170
      %s188 = sphi 0, %s188
      %s190 = sphi 0, %s188
      %s191 = sphi 0, %s190
      %s205 = sphi 0, %s191
      %s209 = sphi 0, %s209
      %s211 = sphi 0, %s209
      %s212 = sphi 0, %s211
      %s226 = sphi 0, %s212
      %s230 = sphi 0, %s230
      %s232 = sphi 0, %s230
      %s233 = sphi 0, %s232
      %s247 = sphi 0, %s233
      %s251 = sphi 0, %s251
      %s253 = sphi 0, %s251
      %s254 = sphi 0, %s253
      %s268 = sphi 0, %s254
      %s274 = sphi 0, %s276
      %s277 = sphi 0, %s274
      %s278 = sphi 0, %s277
      %s294 = sphi 0, %s278
      %s300 = sphi 0, %s302
      %s303 = sphi 0, %s300
      %s304 = sphi 0, %s303
      %s320 = sphi 0, %s304
    $region4: #{tpu_custom_call.1} parent=1 // loop_header_branch
      %31 = sbr.rel (%p29) target = $region8
    $region5: #{tpu_custom_call.1} parent=1 // loop_body
      %s33 = ssub.s32 %s28, 1
      %s34 = ssub.s32 %s28, 2
      %s35 = sadd.s32 %s28, 1
      %s36 = ssub.s32 %s28, %s35
      %p37 = scmp.eq.s32.totalorder %s36, 0
      %s39 = sadd.s32 %s38, 1
      %s40 = scalar_select %p37, %s38, %s39
      %p43 = pneg %p37
      %p44 = scmp.eq.s32.totalorder %s28, 1
      %p45 = por %p43, %p44
      %p46 = scmp.ne.s32.totalorder %s38, %s41
      %p47 = scmp.eq.s32.totalorder %s28, 0
      %p48 = por %p46, %p47
      %p49 = scmp.ne.s32.totalorder %s38, %s41
      %p50 = scmp.eq.s32.totalorder %s33, 1
      %p51 = por %p49, %p50
      %p52 = scmp.ne.s32.totalorder %s41, %s42
      %p53 = scmp.eq.s32.totalorder %s33, 0
      %p54 = por %p52, %p53
      %p55 = scmp.ne.s32.totalorder %s41, %s42
      %p56 = scmp.eq.s32.totalorder %s34, 1
      %p57 = por %p55, %p56
      %p59 = scmp.ne.s32.totalorder %s42, %s58
      %p60 = scmp.eq.s32.totalorder %s34, 0
      %p61 = por %p59, %p60
      %s63 = sadd.s32 %s62, 1
      %p66 = scmp.eq.s32.totalorder %s28, 1
      %p67 = scmp.ne.s32.totalorder %s62, %s64
      %p68 = scmp.eq.s32.totalorder %s28, 0
      %p69 = por %p67, %p68
      %p70 = scmp.ne.s32.totalorder %s62, %s64
      %p71 = scmp.eq.s32.totalorder %s33, 1
      %p72 = por %p70, %p71
      %p73 = scmp.ne.s32.totalorder %s64, %s65
      %p74 = scmp.eq.s32.totalorder %s33, 0
      %p75 = por %p73, %p74
      %p76 = scmp.ne.s32.totalorder %s64, %s65
      %p77 = scmp.eq.s32.totalorder %s34, 1
      %p78 = por %p76, %p77
      %p80 = scmp.ne.s32.totalorder %s65, %s79
      %p81 = scmp.eq.s32.totalorder %s34, 0
      %p82 = por %p80, %p81
      %s84 = sadd.s32 %s83, 1
      %p87 = scmp.eq.s32.totalorder %s28, 1
      %p88 = scmp.ne.s32.totalorder %s83, %s85
      %p89 = scmp.eq.s32.totalorder %s28, 0
      %p90 = por %p88, %p89
      %p91 = scmp.ne.s32.totalorder %s83, %s85
      %p92 = scmp.eq.s32.totalorder %s33, 1
      %p93 = por %p91, %p92
      %p94 = scmp.ne.s32.totalorder %s85, %s86
      %p95 = scmp.eq.s32.totalorder %s33, 0
      %p96 = por %p94, %p95
      %p97 = scmp.ne.s32.totalorder %s85, %s86
      %p98 = scmp.eq.s32.totalorder %s34, 1
      %p99 = por %p97, %p98
      %p101 = scmp.ne.s32.totalorder %s86, %s100
      %p102 = scmp.eq.s32.totalorder %s34, 0
      %p103 = por %p101, %p102
      %s105 = sadd.s32 %s104, 1
      %p108 = scmp.eq.s32.totalorder %s28, 1
      %p109 = scmp.ne.s32.totalorder %s104, %s106
      %p110 = scmp.eq.s32.totalorder %s28, 0
      %p111 = por %p109, %p110
      %p112 = scmp.ne.s32.totalorder %s104, %s106
      %p113 = scmp.eq.s32.totalorder %s33, 1
      %p114 = por %p112, %p113
      %p115 = scmp.ne.s32.totalorder %s106, %s107
      %p116 = scmp.eq.s32.totalorder %s33, 0
      %p117 = por %p115, %p116
      %p118 = scmp.ne.s32.totalorder %s106, %s107
      %p119 = scmp.eq.s32.totalorder %s34, 1
      %p120 = por %p118, %p119
      %p122 = scmp.ne.s32.totalorder %s107, %s121
      %p123 = scmp.eq.s32.totalorder %s34, 0
      %p124 = por %p122, %p123
      %s126 = sadd.s32 %s125, 1
      %p129 = scmp.eq.s32.totalorder %s28, 1
      %p130 = scmp.ne.s32.totalorder %s125, %s127
      %p131 = scmp.eq.s32.totalorder %s28, 0
      %p132 = por %p130, %p131
      %p133 = scmp.ne.s32.totalorder %s125, %s127
      %p134 = scmp.eq.s32.totalorder %s33, 1
      %p135 = por %p133, %p134
      %p136 = scmp.ne.s32.totalorder %s127, %s128
      %p137 = scmp.eq.s32.totalorder %s33, 0
      %p138 = por %p136, %p137
      %p139 = scmp.ne.s32.totalorder %s127, %s128
      %p140 = scmp.eq.s32.totalorder %s34, 1
      %p141 = por %p139, %p140
      %p143 = scmp.ne.s32.totalorder %s128, %s142
      %p144 = scmp.eq.s32.totalorder %s34, 0
      %p145 = por %p143, %p144
      %s147 = sadd.s32 %s146, 1
      %p150 = scmp.eq.s32.totalorder %s28, 1
      %p151 = scmp.ne.s32.totalorder %s146, %s148
      %p152 = scmp.eq.s32.totalorder %s28, 0
      %p153 = por %p151, %p152
      %p154 = scmp.ne.s32.totalorder %s146, %s148
      %p155 = scmp.eq.s32.totalorder %s33, 1
      %p156 = por %p154, %p155
      %p157 = scmp.ne.s32.totalorder %s148, %s149
      %p158 = scmp.eq.s32.totalorder %s33, 0
      %p159 = por %p157, %p158
      %p160 = scmp.ne.s32.totalorder %s148, %s149
      %p161 = scmp.eq.s32.totalorder %s34, 1
      %p162 = por %p160, %p161
      %p164 = scmp.ne.s32.totalorder %s149, %s163
      %p165 = scmp.eq.s32.totalorder %s34, 0
      %p166 = por %p164, %p165
      %s168 = sadd.s32 %s167, 1
      %p171 = scmp.eq.s32.totalorder %s28, 1
      %p172 = scmp.ne.s32.totalorder %s167, %s169
      %p173 = scmp.eq.s32.totalorder %s28, 0
      %p174 = por %p172, %p173
      %p175 = scmp.ne.s32.totalorder %s167, %s169
      %p176 = scmp.eq.s32.totalorder %s33, 1
      %p177 = por %p175, %p176
      %p178 = scmp.ne.s32.totalorder %s169, %s170
      %p179 = scmp.eq.s32.totalorder %s33, 0
      %p180 = por %p178, %p179
      %p181 = scmp.ne.s32.totalorder %s169, %s170
      %p182 = scmp.eq.s32.totalorder %s34, 1
      %p183 = por %p181, %p182
      %p185 = scmp.ne.s32.totalorder %s170, %s184
      %p186 = scmp.eq.s32.totalorder %s34, 0
      %p187 = por %p185, %p186
      %s189 = sadd.s32 %s188, 1
      %p192 = scmp.eq.s32.totalorder %s28, 1
      %p193 = scmp.ne.s32.totalorder %s188, %s190
      %p194 = scmp.eq.s32.totalorder %s28, 0
      %p195 = por %p193, %p194
      %p196 = scmp.ne.s32.totalorder %s188, %s190
      %p197 = scmp.eq.s32.totalorder %s33, 1
      %p198 = por %p196, %p197
      %p199 = scmp.ne.s32.totalorder %s190, %s191
      %p200 = scmp.eq.s32.totalorder %s33, 0
      %p201 = por %p199, %p200
      %p202 = scmp.ne.s32.totalorder %s190, %s191
      %p203 = scmp.eq.s32.totalorder %s34, 1
      %p204 = por %p202, %p203
      %p206 = scmp.ne.s32.totalorder %s191, %s205
      %p207 = scmp.eq.s32.totalorder %s34, 0
      %p208 = por %p206, %p207
      %s210 = sadd.s32 %s209, 1
      %p213 = scmp.eq.s32.totalorder %s28, 1
      %p214 = scmp.ne.s32.totalorder %s209, %s211
      %p215 = scmp.eq.s32.totalorder %s28, 0
      %p216 = por %p214, %p215
      %p217 = scmp.ne.s32.totalorder %s209, %s211
      %p218 = scmp.eq.s32.totalorder %s33, 1
      %p219 = por %p217, %p218
      %p220 = scmp.ne.s32.totalorder %s211, %s212
      %p221 = scmp.eq.s32.totalorder %s33, 0
      %p222 = por %p220, %p221
      %p223 = scmp.ne.s32.totalorder %s211, %s212
      %p224 = scmp.eq.s32.totalorder %s34, 1
      %p225 = por %p223, %p224
      %p227 = scmp.ne.s32.totalorder %s212, %s226
      %p228 = scmp.eq.s32.totalorder %s34, 0
      %p229 = por %p227, %p228
      %s231 = sadd.s32 %s230, 1
      %p234 = scmp.eq.s32.totalorder %s28, 1
      %p235 = scmp.ne.s32.totalorder %s230, %s232
      %p236 = scmp.eq.s32.totalorder %s28, 0
      %p237 = por %p235, %p236
      %p238 = scmp.ne.s32.totalorder %s230, %s232
      %p239 = scmp.eq.s32.totalorder %s33, 1
      %p240 = por %p238, %p239
      %p241 = scmp.ne.s32.totalorder %s232, %s233
      %p242 = scmp.eq.s32.totalorder %s33, 0
      %p243 = por %p241, %p242
      %p244 = scmp.ne.s32.totalorder %s232, %s233
      %p245 = scmp.eq.s32.totalorder %s34, 1
      %p246 = por %p244, %p245
      %p248 = scmp.ne.s32.totalorder %s233, %s247
      %p249 = scmp.eq.s32.totalorder %s34, 0
      %p250 = por %p248, %p249
      %s252 = sadd.s32 %s251, 1
      %p255 = scmp.eq.s32.totalorder %s28, 1
      %p256 = scmp.ne.s32.totalorder %s251, %s253
      %p257 = scmp.eq.s32.totalorder %s28, 0
      %p258 = por %p256, %p257
      %p259 = scmp.ne.s32.totalorder %s251, %s253
      %p260 = scmp.eq.s32.totalorder %s33, 1
      %p261 = por %p259, %p260
      %p262 = scmp.ne.s32.totalorder %s253, %s254
      %p263 = scmp.eq.s32.totalorder %s33, 0
      %p264 = por %p262, %p263
      %p265 = scmp.ne.s32.totalorder %s253, %s254
      %p266 = scmp.eq.s32.totalorder %s34, 1
      %p267 = por %p265, %p266
      %p269 = scmp.ne.s32.totalorder %s254, %s268
      %p270 = scmp.eq.s32.totalorder %s34, 0
      %p271 = por %p269, %p270
      %s272 = ssub.s32 %s28, %s35
      %p273 = scmp.eq.s32.totalorder %s272, 0
      %s275 = sadd.s32 %s274, 1
      %s276 = scalar_select %p273, %s274, %s275
      %p279 = pneg %p273
      %p280 = scmp.eq.s32.totalorder %s28, 1
      %p281 = por %p279, %p280
      %p282 = scmp.ne.s32.totalorder %s274, %s277
      %p283 = scmp.eq.s32.totalorder %s28, 0
      %p284 = por %p282, %p283
      %p285 = scmp.ne.s32.totalorder %s274, %s277
      %p286 = scmp.eq.s32.totalorder %s33, 1
      %p287 = por %p285, %p286
      %p288 = scmp.ne.s32.totalorder %s277, %s278
      %p289 = scmp.eq.s32.totalorder %s33, 0
      %p290 = por %p288, %p289
      %p291 = scmp.ne.s32.totalorder %s277, %s278
      %p292 = scmp.eq.s32.totalorder %s34, 1
      %p293 = por %p291, %p292
      %p295 = scmp.ne.s32.totalorder %s278, %s294
      %p296 = scmp.eq.s32.totalorder %s34, 0
      %p297 = por %p295, %p296
      %s298 = ssub.s32 %s28, %s35
      %p299 = scmp.eq.s32.totalorder %s298, 0
      %s301 = sadd.s32 %s300, 1
      %s302 = scalar_select %p299, %s300, %s301
      %p305 = pneg %p299
      %p306 = scmp.eq.s32.totalorder %s28, 1
      %p307 = por %p305, %p306
      %p308 = scmp.ne.s32.totalorder %s300, %s303
      %p309 = scmp.eq.s32.totalorder %s28, 0
      %p310 = por %p308, %p309
      %p311 = scmp.ne.s32.totalorder %s300, %s303
      %p312 = scmp.eq.s32.totalorder %s33, 1
      %p313 = por %p311, %p312
      %p314 = scmp.ne.s32.totalorder %s303, %s304
      %p315 = scmp.eq.s32.totalorder %s33, 0
      %p316 = por %p314, %p315
      %p317 = scmp.ne.s32.totalorder %s303, %s304
      %p318 = scmp.eq.s32.totalorder %s34, 1
      %p319 = por %p317, %p318
      %p321 = scmp.ne.s32.totalorder %s304, %s320
      %p322 = scmp.eq.s32.totalorder %s34, 0
      %p323 = por %p321, %p322
      %p324 = scmp.le.s32.totalorder 1, %s28
      %p325 = scmp.lt.s32.totalorder %s28, 3
      %p326 = pnand %p324, %p325
      %p327 = pneg %p326
      // Predicated region
      $region9: #{tpu_custom_call.1} parent=5 // pred_check
        _
      $region10: #{tpu_custom_call.1} parent=5 // pred_check_branch
        %329 = sbr.rel (%p326) target = $region12
      $region11: #{tpu_custom_call.1} parent=5 // pred_region
        %s330 = ssub.s32 %s28, 1
        // Predicated region
        $region13: #{tpu_custom_call.1} parent=11 // pred_check
          %p331 = pneg %p75
        $region14: #{tpu_custom_call.1} parent=11 // pred_check_branch
          %333 = sbr.rel (%p331) target = $region16
        $region15: #{tpu_custom_call.1} parent=11 // pred_region
          %s335 = ssub.s32 128, 128
          %336 = vsyncadd [#allocation3], %s335
          %s338 = sshll.u32 [#allocation2], 4
          %s339 = int_to_ptr.vmem [resolvable:$true] %s338
          %341 = dma.hbm_to_vmem [thread:$0]  %s1, 128, %s339, [#allocation3]
        $region16: #{tpu_custom_call.1} parent=11 // pred_fallthru
          _
        // Predicated region
        $region17: #{tpu_custom_call.1} parent=11 // pred_check
          %p342 = pneg %p96
        $region18: #{tpu_custom_call.1} parent=11 // pred_check_branch
          %344 = sbr.rel (%p342) target = $region20
        $region19: #{tpu_custom_call.1} parent=11 // pred_region
          %s346 = ssub.s32 64, 64
          %347 = vsyncadd [#allocation6], %s346
          %s349 = sshll.u32 [#allocation5], 4
          %s350 = int_to_ptr.vmem [resolvable:$true] %s349
          %352 = dma.hbm_to_vmem [thread:$0]  %s2, 64, %s350, [#allocation6]
        $region20: #{tpu_custom_call.1} parent=11 // pred_fallthru
          _
        // Predicated region
        $region21: #{tpu_custom_call.1} parent=11 // pred_check
          %p353 = pneg %p117
        $region22: #{tpu_custom_call.1} parent=11 // pred_check_branch
          %355 = sbr.rel (%p353) target = $region24
        $region23: #{tpu_custom_call.1} parent=11 // pred_region
          %s357 = ssub.s32 32, 32
          %358 = vsyncadd [#allocation6], %s357
          %s360 = sshll.u32 [#allocation7], 4
          %s361 = int_to_ptr.vmem [resolvable:$true] %s360
          %363 = dma.hbm_to_vmem [thread:$0]  %s3, 32, %s361, [#allocation6]
        $region24: #{tpu_custom_call.1} parent=11 // pred_fallthru
          _
        // Predicated region
        $region25: #{tpu_custom_call.1} parent=11 // pred_check
          %p364 = pneg %p138
        $region26: #{tpu_custom_call.1} parent=11 // pred_check_branch
          %366 = sbr.rel (%p364) target = $region28
        $region27: #{tpu_custom_call.1} parent=11 // pred_region
          %s368 = ssub.s32 64, 64
          %369 = vsyncadd [#allocation9], %s368
          %s371 = sshll.u32 [#allocation8], 4
          %s372 = int_to_ptr.vmem [resolvable:$true] %s371
          %374 = dma.hbm_to_vmem [thread:$0]  %s4, 64, %s372, [#allocation9]
        $region28: #{tpu_custom_call.1} parent=11 // pred_fallthru
          _
        // Predicated region
        $region29: #{tpu_custom_call.1} parent=11 // pred_check
          %p375 = pneg %p159
        $region30: #{tpu_custom_call.1} parent=11 // pred_check_branch
          %377 = sbr.rel (%p375) target = $region32
        $region31: #{tpu_custom_call.1} parent=11 // pred_region
          _
        $region32: #{tpu_custom_call.1} parent=11 // pred_fallthru
          _
        // Predicated region
        $region33: #{tpu_custom_call.1} parent=11 // pred_check
          %p378 = pneg %p180
        $region34: #{tpu_custom_call.1} parent=11 // pred_check_branch
          %380 = sbr.rel (%p378) target = $region36
        $region35: #{tpu_custom_call.1} parent=11 // pred_region
          _
        $region36: #{tpu_custom_call.1} parent=11 // pred_fallthru
          _
        // Predicated region
        $region37: #{tpu_custom_call.1} parent=11 // pred_check
          %p381 = pneg %p201
        $region38: #{tpu_custom_call.1} parent=11 // pred_check_branch
          %383 = sbr.rel (%p381) target = $region40
        $region39: #{tpu_custom_call.1} parent=11 // pred_region
          _
        $region40: #{tpu_custom_call.1} parent=11 // pred_fallthru
          _
        // Predicated region
        $region41: #{tpu_custom_call.1} parent=11 // pred_check
          %p384 = pneg %p222
        $region42: #{tpu_custom_call.1} parent=11 // pred_check_branch
          %386 = sbr.rel (%p384) target = $region44
        $region43: #{tpu_custom_call.1} parent=11 // pred_region
          _
        $region44: #{tpu_custom_call.1} parent=11 // pred_fallthru
          _
        // Predicated region
        $region45: #{tpu_custom_call.1} parent=11 // pred_check
          %p387 = pneg %p243
        $region46: #{tpu_custom_call.1} parent=11 // pred_check_branch
          %389 = sbr.rel (%p387) target = $region48
        $region47: #{tpu_custom_call.1} parent=11 // pred_region
          _
        $region48: #{tpu_custom_call.1} parent=11 // pred_fallthru
          _
        // Predicated region
        $region49: #{tpu_custom_call.1} parent=11 // pred_check
          %p390 = pneg %p264
        $region50: #{tpu_custom_call.1} parent=11 // pred_check_branch
          %392 = sbr.rel (%p390) target = $region52
        $region51: #{tpu_custom_call.1} parent=11 // pred_region
          _
        $region52: #{tpu_custom_call.1} parent=11 // pred_fallthru
          _
      $region12: #{tpu_custom_call.1} parent=5 // pred_fallthru
        _
      %p393 = scmp.lt.s32.totalorder %s28, 2
      // Predicated region
      $region53: #{tpu_custom_call.1} parent=5 // pred_check
        %p394 = pneg %p393
      $region54: #{tpu_custom_call.1} parent=5 // pred_check_branch
        %396 = sbr.rel (%p394) target = $region56
      $region55: #{tpu_custom_call.1} parent=5 // pred_region
        // Predicated region
        $region57: #{tpu_custom_call.1} parent=55 // pred_check
          %p397 = pneg %p48
        $region58: #{tpu_custom_call.1} parent=55 // pred_check_branch
          %399 = sbr.rel (%p397) target = $region60
        $region59: #{tpu_custom_call.1} parent=55 // pred_region
          %p400 = scmp.lt.s32.totalorder %s28, 1
          %s401 = scalar_select %p400, %s28, 1
          %s402 = smul.addr %s401, 8
          %s403 = scalar_lea.vmem %s0, %s402
        $region60: #{tpu_custom_call.1} parent=55 // pred_fallthru
          _
      $region56: #{tpu_custom_call.1} parent=5 // pred_fallthru
        _
      %p404 = scmp.le.s32.totalorder 1, %s28
      %p405 = scmp.lt.s32.totalorder %s28, 3
      %p406 = pnand %p404, %p405
      %p407 = pneg %p406
      // Predicated region
      $region61: #{tpu_custom_call.1} parent=5 // pred_check
        _
      $region62: #{tpu_custom_call.1} parent=5 // pred_check_branch
        %409 = sbr.rel (%p406) target = $region64
      $region63: #{tpu_custom_call.1} parent=5 // pred_region
        %s410 = ssub.s32 %s28, 1
        // Predicated region
        $region65: #{tpu_custom_call.1} parent=63 // pred_check
          %p411 = pneg %p75
        $region66: #{tpu_custom_call.1} parent=63 // pred_check_branch
          %413 = sbr.rel (%p411) target = $region68
        $region67: #{tpu_custom_call.1} parent=63 // pred_region
          %414 = dma.done [#allocation3], 128
        $region68: #{tpu_custom_call.1} parent=63 // pred_fallthru
          _
        // Predicated region
        $region69: #{tpu_custom_call.1} parent=63 // pred_check
          %p415 = pneg %p96
        $region70: #{tpu_custom_call.1} parent=63 // pred_check_branch
          %417 = sbr.rel (%p415) target = $region72
        $region71: #{tpu_custom_call.1} parent=63 // pred_region
          %418 = dma.done [#allocation6], 64
        $region72: #{tpu_custom_call.1} parent=63 // pred_fallthru
          _
        // Predicated region
        $region73: #{tpu_custom_call.1} parent=63 // pred_check
          %p419 = pneg %p117
        $region74: #{tpu_custom_call.1} parent=63 // pred_check_branch
          %421 = sbr.rel (%p419) target = $region76
        $region75: #{tpu_custom_call.1} parent=63 // pred_region
          %422 = dma.done [#allocation6], 32
        $region76: #{tpu_custom_call.1} parent=63 // pred_fallthru
          _
        // Predicated region
        $region77: #{tpu_custom_call.1} parent=63 // pred_check
          %p423 = pneg %p138
        $region78: #{tpu_custom_call.1} parent=63 // pred_check_branch
          %425 = sbr.rel (%p423) target = $region80
        $region79: #{tpu_custom_call.1} parent=63 // pred_region
          %426 = dma.done [#allocation9], 64
        $region80: #{tpu_custom_call.1} parent=63 // pred_fallthru
          _
        %p427 = scmp.lt.s32.totalorder %s33, 1
        %s428 = scalar_select %p427, %s33, 1
        %s429 = smul.addr %s428, 8
        %s430 = scalar_lea.vmem %s0, %s429
        %p431 = pneg %p54
        %p432 = pneg %p51
        %p433 = pneg %p75
        %p434 = pneg %p72
        %p435 = pneg %p96
        %p436 = pneg %p93
        %p437 = pneg %p117
        %p438 = pneg %p114
        %p439 = pneg %p138
        %p440 = pneg %p135
        %p441 = pneg %p159
        %p442 = pneg %p156
        %p443 = pneg %p180
        %p444 = pneg %p177
        %p445 = pneg %p201
        %p446 = pneg %p198
        %p447 = pneg %p222
        %p448 = pneg %p219
        %p449 = pneg %p243
        %p450 = pneg %p240
        %p451 = pneg %p264
        %p452 = pneg %p261
        %p453 = pneg %p290
        %p454 = pneg %p287
        %s455 = sand.u32 %s277, 1
        %s456 = scalar_lea.sflag [#allocation4], %s455
        %s457 = sand.u32 %s277, 1
        %s458 = smul.addr %s457, 8
        %s459 = scalar_lea.vmem [#allocation10], %s458
        %p460 = pneg %p316
        %p461 = pneg %p313
        %s462 = sand.u32 %s303, 1
        %s463 = scalar_lea.sflag [#allocation12], %s462
        %s464 = sand.u32 %s303, 1
        %s465 = smul.addr %s464, 4
        %s466 = scalar_lea.vmem [#allocation11], %s465
        %p467 = scmp.lt.s32.totalorder %s33, 1
        %s468 = scalar_select %p467, %s33, 1
        %s469 = smul.addr %s468, 8
        %s470 = scalar_lea.vmem %s0, %s469
        %v472 = vld [vmem:[#allocation2] sm:$0xff]
        %v473 = vld [vmem:[#allocation5] sm:$0x7]
        %v474 = vld [vmem:[#allocation7] sm:$0x3]
        %v475 = vld [vmem:[#allocation8] sm:$0x7]
        %v476 = vld [vmem:[%s470] sm:$0xff]
        %v477 = vld [vmem:[%s5] sm:$0xf]
        %v478 = vld [vmem:[%s5 + $0x4] sm:$0xf]
        %v479 = vld [vmem:[%s5 + $0x8] sm:$0xf]
        %v480 = vld [vmem:[%s5 + $0xc] sm:$0xf]
        %v481 = vld [vmem:[%s6] sm:$0xf]
        %v482 = vld [vmem:[%s6 + $0x4] sm:$0xf]
        %v483 = vld [vmem:[%s6 + $0x8] sm:$0xf]
        %v484 = vld [vmem:[%s6 + $0xc] sm:$0xf]
        %v485 = vld [vmem:[%s6 + $0x10] sm:$0xf]
        %v486 = vld [vmem:[%s6 + $0x14] sm:$0xf]
        %v487 = vld [vmem:[%s6 + $0x18] sm:$0xf]
        %v488 = vld [vmem:[%s6 + $0x1c] sm:$0xf]
        %vm489 = vcmask 261120
        %v490 = vsel %vm489, %v476, 0.0
        %491 = vadd.xlane.f32.xlu0 %v490
        %v492 = vpop.xlane.xlu0 %491
        %v493 = vrcp.pop 32.0
        %v494 = vmul.f32 %v492, %v493
        %v495 = vsub.f32 %v476, %v494
        %v496 = vmul.f32 %v495, %v495
        %v497 = vsel %vm489, %v496, 0.0
        %498 = vadd.xlane.f32.xlu0 %v497
        %v499 = vpop.xlane.xlu0 %498
        %v500 = vmul.f32 %v499, %v493
        %v501 = vadd.f32 %v500, 1e-05
        %v502 = vrsqrt.pop %v501
        %v503 = vmul.f32 %v495, %v502
        %v504 = vlaneseq
        %v505 = vshrl.u32 %v504, 7
        %v506 = vsub.s32 0, %v505
        %v507 = vrot.slane %v472, %v506
        %v508 = vmul.f32 %v503, %v507
        %v509 = vlaneseq
        %v510 = vshrl.u32 %v509, 7
        %v511 = vsub.s32 1, %v510
        %v512 = vrot.slane %v472, %v511
        %v513 = vadd.f32 %v508, %v512
        %v514 = vpack.c.bf16 %v513, %v513
        %v515 = vlaneseq
        %v516 = vshrl.u32 %v515, 7
        %v517 = vsub.s32 0, %v516
        %v518 = vrot.slane %v474, %v517
        %v523 = vunpack.c.l.b16 %v477
        %v524 = vunpack.c.l.b16 %v478
        %v525 = vunpack.c.l.b16 %v479
        %v526 = vunpack.c.l.b16 %v480
        %v527 = vpack.c.b16 %v524, %v523
        %v528 = vpack.c.b16 %v526, %v525
        %v532 = vsel %vm489, %v514, 0
        %534 = vmatprep.subr.bf16.mxu0 0
        %535 = vmatpush1.bf16.msra.mxu0 0
        %536 = vmatprep.subr.bf16.mxu0 0
        %537 = vmatpush1.bf16.msra.mxu0 0
        %538 = vmatprep.subr.bf16.mxu0 0
        %539 = vmatpush1.bf16.msra.mxu0 0
        %540 = vmatprep.subr.bf16.mxu0 0
        %541 = vmatpush1.bf16.msra.mxu0 0
        %542 = vmatprep.subr.bf16.mxu0 0
        %543 = vmatpush1.bf16.msra.mxu0 0
        %544 = vmatprep.subr.bf16.mxu0 0
        %545 = vmatpush1.bf16.msra.mxu0 0
        %546 = vmatprep.subr.bf16.mxu0 0
        %547 = vmatpush1.bf16.msra.mxu0 %v528
        %548 = vmatprep.subr.bf16.mxu0 0
        %549 = vmatpush1.bf16.msra.mxu0 %v527
        %550 = vmatprep.subr.bf16.mxu0 0
        %551 = vmatpush2.bf16.msra.mxu0 0
        %552 = vmatprep.subr.bf16.mxu0 0
        %553 = vmatpush2.bf16.msra.mxu0 0
        %554 = vmatprep.subr.bf16.mxu0 0
        %555 = vmatpush2.bf16.msra.mxu0 0
        %556 = vmatprep.subr.bf16.mxu0 0
        %557 = vmatpush2.bf16.msra.mxu0 0
        %558 = vmatprep.subr.bf16.mxu0 0
        %559 = vmatpush2.bf16.msra.mxu0 0
        %560 = vmatprep.subr.bf16.mxu0 0
        %561 = vmatpush2.bf16.msra.mxu0 0
        %562 = vmatprep.subr.bf16.mxu0 0
        %563 = vmatpush2.bf16.msra.mxu0 0
        %564 = vmatprep.subr.bf16.mxu0 0
        %565 = vmatpush2.bf16.msra.mxu0 0
        %566 = vmatprep.mubr.bf16.mxu0 0
        %567 = vmatmul.mubr.bf16.gmra.mxu0 %v532
        %v568 = vpop.f32.mrf.mxu0
        %v569 = vadd.f32 %v518, %v568
        %v570 = vpop.f32.mrf.mxu0
        %v571 = vpop.f32.mrf.mxu0
        %v572 = vpop.f32.mrf.mxu0
        %573 = vdwg.mxu0
        %v574 = vmax.f32 %v569, 0.0
        %v575 = vpack.c.bf16 %v574, %v574
        %v576 = vlaneseq
        %v577 = vshrl.u32 %v576, 7
        %v578 = vsub.s32 0, %v577
        %v579 = vrot.slane %v473, %v578
        %v588 = vunpack.c.l.b16 %v481
        %v589 = vunpack.c.l.b16 %v482
        %v590 = vunpack.c.l.b16 %v483
        %v591 = vunpack.c.l.b16 %v484
        %v592 = vunpack.c.l.b16 %v485
        %v593 = vunpack.c.l.b16 %v486
        %v594 = vunpack.c.l.b16 %v487
        %v595 = vunpack.c.l.b16 %v488
        %v596 = vpack.c.b16 %v589, %v588
        %v597 = vpack.c.b16 %v591, %v590
        %v598 = vpack.c.b16 %v593, %v592
        %v599 = vpack.c.b16 %v595, %v594
        %vm604 = vcmask 523264
        %v606 = vsel %vm604, %v575, 0
        %608 = vmatprep.subr.bf16.mxu0 0
        %609 = vmatpush1.bf16.msra.mxu0 0
        %610 = vmatprep.subr.bf16.mxu0 0
        %611 = vmatpush1.bf16.msra.mxu0 0
        %612 = vmatprep.subr.bf16.mxu0 0
        %613 = vmatpush1.bf16.msra.mxu0 0
        %614 = vmatprep.subr.bf16.mxu0 0
        %615 = vmatpush1.bf16.msra.mxu0 0
        %616 = vmatprep.subr.bf16.mxu0 0
        %617 = vmatpush1.bf16.msra.mxu0 %v599
        %618 = vmatprep.subr.bf16.mxu0 0
        %619 = vmatpush1.bf16.msra.mxu0 %v598
        %620 = vmatprep.subr.bf16.mxu0 0
        %621 = vmatpush1.bf16.msra.mxu0 %v597
        %622 = vmatprep.subr.bf16.mxu0 0
        %623 = vmatpush1.bf16.msra.mxu0 %v596
        %624 = vmatprep.subr.bf16.mxu0 0
        %625 = vmatpush2.bf16.msra.mxu0 0
        %626 = vmatprep.subr.bf16.mxu0 0
        %627 = vmatpush2.bf16.msra.mxu0 0
        %628 = vmatprep.subr.bf16.mxu0 0
        %629 = vmatpush2.bf16.msra.mxu0 0
        %630 = vmatprep.subr.bf16.mxu0 0
        %631 = vmatpush2.bf16.msra.mxu0 0
        %632 = vmatprep.subr.bf16.mxu0 0
        %633 = vmatpush2.bf16.msra.mxu0 0
        %634 = vmatprep.subr.bf16.mxu0 0
        %635 = vmatpush2.bf16.msra.mxu0 0
        %636 = vmatprep.subr.bf16.mxu0 0
        %637 = vmatpush2.bf16.msra.mxu0 0
        %638 = vmatprep.subr.bf16.mxu0 0
        %639 = vmatpush2.bf16.msra.mxu0 0
        %640 = vmatprep.mubr.bf16.mxu0 0
        %641 = vmatmul.mubr.bf16.gmra.mxu0 %v606
        %v642 = vpop.f32.mrf.mxu0
        %v643 = vadd.f32 %v579, %v642
        %v644 = vpop.f32.mrf.mxu0
        %v645 = vpop.f32.mrf.mxu0
        %v646 = vpop.f32.mrf.mxu0
        %647 = vdwg.mxu0
        %v648 = vsel %vm489, %v643, 0.0
        %649 = vadd.xlane.f32.xlu0 %v648
        %v650 = vpop.xlane.xlu0 %649
        %v651 = vmul.f32 %v650, %v493
        %v652 = vsub.f32 %v643, %v651
        %v653 = vmul.f32 %v652, %v652
        %v654 = vsel %vm489, %v653, 0.0
        %655 = vadd.xlane.f32.xlu0 %v654
        %v656 = vpop.xlane.xlu0 %655
        %v657 = vmul.f32 %v656, %v493
        %v658 = vadd.f32 %v657, 1e-05
        %v659 = vrsqrt.pop %v658
        %v660 = vmul.f32 %v652, %v659
        %v661 = vlaneseq
        %v662 = vshrl.u32 %v661, 7
        %v663 = vsub.s32 2, %v662
        %v664 = vrot.slane %v472, %v663
        %v665 = vmul.f32 %v660, %v664
        %v666 = vlaneseq
        %v667 = vshrl.u32 %v666, 7
        %v668 = vsub.s32 3, %v667
        %v669 = vrot.slane %v472, %v668
        %v670 = vadd.f32 %v665, %v669
        %v671 = vpack.c.bf16 %v670, %v670
        %v672 = vld [vmem:[%s7] sm:$0xf]
        %v673 = vld [vmem:[%s7 + $0x4] sm:$0xf]
        %v674 = vld [vmem:[%s7 + $0x8] sm:$0xf]
        %v675 = vld [vmem:[%s7 + $0xc] sm:$0xf]
        %v676 = vlaneseq
        %v677 = vshrl.u32 %v676, 7
        %v678 = vsub.s32 0, %v677
        %v679 = vrot.slane %v475, %v678
        %v684 = vunpack.c.l.b16 %v672
        %v685 = vunpack.c.l.b16 %v673
        %v686 = vunpack.c.l.b16 %v674
        %v687 = vunpack.c.l.b16 %v675
        %v688 = vpack.c.b16 %v685, %v684
        %v689 = vpack.c.b16 %v687, %v686
        %v693 = vsel %vm489, %v671, 0
        %695 = vmatprep.subr.bf16.mxu0 0
        %696 = vmatpush1.bf16.msra.mxu0 0
        %697 = vmatprep.subr.bf16.mxu0 0
        %698 = vmatpush1.bf16.msra.mxu0 0
        %699 = vmatprep.subr.bf16.mxu0 0
        %700 = vmatpush1.bf16.msra.mxu0 0
        %701 = vmatprep.subr.bf16.mxu0 0
        %702 = vmatpush1.bf16.msra.mxu0 0
        %703 = vmatprep.subr.bf16.mxu0 0
        %704 = vmatpush1.bf16.msra.mxu0 0
        %705 = vmatprep.subr.bf16.mxu0 0
        %706 = vmatpush1.bf16.msra.mxu0 0
        %707 = vmatprep.subr.bf16.mxu0 0
        %708 = vmatpush1.bf16.msra.mxu0 %v689
        %709 = vmatprep.subr.bf16.mxu0 0
        %710 = vmatpush1.bf16.msra.mxu0 %v688
        %711 = vmatprep.subr.bf16.mxu0 0
        %712 = vmatpush2.bf16.msra.mxu0 0
        %713 = vmatprep.subr.bf16.mxu0 0
        %714 = vmatpush2.bf16.msra.mxu0 0
        %715 = vmatprep.subr.bf16.mxu0 0
        %716 = vmatpush2.bf16.msra.mxu0 0
        %717 = vmatprep.subr.bf16.mxu0 0
        %718 = vmatpush2.bf16.msra.mxu0 0
        %719 = vmatprep.subr.bf16.mxu0 0
        %720 = vmatpush2.bf16.msra.mxu0 0
        %721 = vmatprep.subr.bf16.mxu0 0
        %722 = vmatpush2.bf16.msra.mxu0 0
        %723 = vmatprep.subr.bf16.mxu0 0
        %724 = vmatpush2.bf16.msra.mxu0 0
        %725 = vmatprep.subr.bf16.mxu0 0
        %726 = vmatpush2.bf16.msra.mxu0 0
        %727 = vmatprep.mubr.bf16.mxu0 0
        %728 = vmatmul.mubr.bf16.gmra.mxu0 %v693
        %v729 = vpop.f32.mrf.mxu0
        %v730 = vadd.f32 %v679, %v729
        %v731 = vpop.f32.mrf.mxu0
        %v732 = vpop.f32.mrf.mxu0
        %v733 = vpop.f32.mrf.mxu0
        %734 = vdwg.mxu0
        %s735 = scalar_lea.vmem %s7, 16
        %v736 = vld [vmem:[%s735] sm:$0xf]
        %v737 = vld [vmem:[%s735 + $0x4] sm:$0xf]
        %v738 = vld [vmem:[%s735 + $0x8] sm:$0xf]
        %v739 = vld [vmem:[%s735 + $0xc] sm:$0xf]
        %v740 = vlaneseq
        %v741 = vshrl.u32 %v740, 7
        %v742 = vsub.s32 1, %v741
        %v743 = vrot.slane %v475, %v742
        %v748 = vunpack.c.l.b16 %v736
        %v749 = vunpack.c.l.b16 %v737
        %v750 = vunpack.c.l.b16 %v738
        %v751 = vunpack.c.l.b16 %v739
        %v752 = vpack.c.b16 %v749, %v748
        %v753 = vpack.c.b16 %v751, %v750
        %756 = vmatprep.subr.bf16.mxu0 0
        %757 = vmatpush1.bf16.msra.mxu0 0
        %758 = vmatprep.subr.bf16.mxu0 0
        %759 = vmatpush1.bf16.msra.mxu0 0
        %760 = vmatprep.subr.bf16.mxu0 0
        %761 = vmatpush1.bf16.msra.mxu0 0
        %762 = vmatprep.subr.bf16.mxu0 0
        %763 = vmatpush1.bf16.msra.mxu0 0
        %764 = vmatprep.subr.bf16.mxu0 0
        %765 = vmatpush1.bf16.msra.mxu0 0
        %766 = vmatprep.subr.bf16.mxu0 0
        %767 = vmatpush1.bf16.msra.mxu0 0
        %768 = vmatprep.subr.bf16.mxu0 0
        %769 = vmatpush1.bf16.msra.mxu0 %v753
        %770 = vmatprep.subr.bf16.mxu0 0
        %771 = vmatpush1.bf16.msra.mxu0 %v752
        %772 = vmatprep.subr.bf16.mxu0 0
        %773 = vmatpush2.bf16.msra.mxu0 0
        %774 = vmatprep.subr.bf16.mxu0 0
        %775 = vmatpush2.bf16.msra.mxu0 0
        %776 = vmatprep.subr.bf16.mxu0 0
        %777 = vmatpush2.bf16.msra.mxu0 0
        %778 = vmatprep.subr.bf16.mxu0 0
        %779 = vmatpush2.bf16.msra.mxu0 0
        %780 = vmatprep.subr.bf16.mxu0 0
        %781 = vmatpush2.bf16.msra.mxu0 0
        %782 = vmatprep.subr.bf16.mxu0 0
        %783 = vmatpush2.bf16.msra.mxu0 0
        %784 = vmatprep.subr.bf16.mxu0 0
        %785 = vmatpush2.bf16.msra.mxu0 0
        %786 = vmatprep.subr.bf16.mxu0 0
        %787 = vmatpush2.bf16.msra.mxu0 0
        %788 = vmatprep.mubr.bf16.mxu0 0
        %789 = vmatmul.mubr.bf16.gmra.mxu0 %v693
        %v790 = vpop.f32.mrf.mxu0
        %v791 = vadd.f32 %v743, %v790
        %v792 = vpop.f32.mrf.mxu0
        %v793 = vpop.f32.mrf.mxu0
        %v794 = vpop.f32.mrf.mxu0
        %795 = vdwg.mxu0
        %s796 = scalar_lea.vmem %s7, 32
        %v797 = vld [vmem:[%s796] sm:$0xf]
        %v798 = vld [vmem:[%s796 + $0x4] sm:$0xf]
        %v799 = vld [vmem:[%s796 + $0x8] sm:$0xf]
        %v800 = vld [vmem:[%s796 + $0xc] sm:$0xf]
        %v801 = vlaneseq
        %v802 = vshrl.u32 %v801, 7
        %v803 = vsub.s32 2, %v802
        %v804 = vrot.slane %v475, %v803
        %v809 = vunpack.c.l.b16 %v797
        %v810 = vunpack.c.l.b16 %v798
        %v811 = vunpack.c.l.b16 %v799
        %v812 = vunpack.c.l.b16 %v800
        %v813 = vpack.c.b16 %v810, %v809
        %v814 = vpack.c.b16 %v812, %v811
        %817 = vmatprep.subr.bf16.mxu0 0
        %818 = vmatpush1.bf16.msra.mxu0 0
        %819 = vmatprep.subr.bf16.mxu0 0
        %820 = vmatpush1.bf16.msra.mxu0 0
        %821 = vmatprep.subr.bf16.mxu0 0
        %822 = vmatpush1.bf16.msra.mxu0 0
        %823 = vmatprep.subr.bf16.mxu0 0
        %824 = vmatpush1.bf16.msra.mxu0 0
        %825 = vmatprep.subr.bf16.mxu0 0
        %826 = vmatpush1.bf16.msra.mxu0 0
        %827 = vmatprep.subr.bf16.mxu0 0
        %828 = vmatpush1.bf16.msra.mxu0 0
        %829 = vmatprep.subr.bf16.mxu0 0
        %830 = vmatpush1.bf16.msra.mxu0 %v814
        %831 = vmatprep.subr.bf16.mxu0 0
        %832 = vmatpush1.bf16.msra.mxu0 %v813
        %833 = vmatprep.subr.bf16.mxu0 0
        %834 = vmatpush2.bf16.msra.mxu0 0
        %835 = vmatprep.subr.bf16.mxu0 0
        %836 = vmatpush2.bf16.msra.mxu0 0
        %837 = vmatprep.subr.bf16.mxu0 0
        %838 = vmatpush2.bf16.msra.mxu0 0
        %839 = vmatprep.subr.bf16.mxu0 0
        %840 = vmatpush2.bf16.msra.mxu0 0
        %841 = vmatprep.subr.bf16.mxu0 0
        %842 = vmatpush2.bf16.msra.mxu0 0
        %843 = vmatprep.subr.bf16.mxu0 0
        %844 = vmatpush2.bf16.msra.mxu0 0
        %845 = vmatprep.subr.bf16.mxu0 0
        %846 = vmatpush2.bf16.msra.mxu0 0
        %847 = vmatprep.subr.bf16.mxu0 0
        %848 = vmatpush2.bf16.msra.mxu0 0
        %849 = vmatprep.mubr.bf16.mxu0 0
        %850 = vmatmul.mubr.bf16.gmra.mxu0 %v693
        %v851 = vpop.f32.mrf.mxu0
        %v852 = vadd.f32 %v804, %v851
        %v853 = vpop.f32.mrf.mxu0
        %v854 = vpop.f32.mrf.mxu0
        %v855 = vpop.f32.mrf.mxu0
        %856 = vdwg.mxu0
        %v857 = vpack.c.bf16 %v730, %v730
        %v858 = vpack.c.bf16 %v791, %v791
        %v860 = vsel %vm489, %v857, 0
        %v863 = vsel %vm489, %v858, 0
        %865 = vmatprep.subr.bf16.mxu0 0
        %866 = vmatpush1.bf16.xpose.msra.mxu0 0
        %867 = vmatprep.subr.bf16.mxu0 0
        %868 = vmatpush1.bf16.xpose.msra.mxu0 0
        %869 = vmatprep.subr.bf16.mxu0 0
        %870 = vmatpush1.bf16.xpose.msra.mxu0 0
        %871 = vmatprep.subr.bf16.mxu0 0
        %872 = vmatpush1.bf16.xpose.msra.mxu0 0
        %873 = vmatprep.subr.bf16.mxu0 0
        %874 = vmatpush1.bf16.xpose.msra.mxu0 0
        %875 = vmatprep.subr.bf16.mxu0 0
        %876 = vmatpush1.bf16.xpose.msra.mxu0 0
        %877 = vmatprep.subr.bf16.mxu0 0
        %878 = vmatpush1.bf16.xpose.msra.mxu0 0
        %879 = vmatprep.subr.bf16.mxu0 0
        %880 = vmatpush1.bf16.xpose.msra.mxu0 %v863
        %881 = vmatprep.subr.bf16.mxu0 0
        %882 = vmatpush2.bf16.xpose.msra.mxu0 0
        %883 = vmatprep.subr.bf16.mxu0 0
        %884 = vmatpush2.bf16.xpose.msra.mxu0 0
        %885 = vmatprep.subr.bf16.mxu0 0
        %886 = vmatpush2.bf16.xpose.msra.mxu0 0
        %887 = vmatprep.subr.bf16.mxu0 0
        %888 = vmatpush2.bf16.xpose.msra.mxu0 0
        %889 = vmatprep.subr.bf16.mxu0 0
        %890 = vmatpush2.bf16.xpose.msra.mxu0 0
        %891 = vmatprep.subr.bf16.mxu0 0
        %892 = vmatpush2.bf16.xpose.msra.mxu0 0
        %893 = vmatprep.subr.bf16.mxu0 0
        %894 = vmatpush2.bf16.xpose.msra.mxu0 0
        %895 = vmatprep.subr.bf16.mxu0 0
        %896 = vmatpush2.bf16.xpose.msra.mxu0 0
        %897 = vmatprep.mubr.bf16.mxu0 0
        %898 = vmatmul.mubr.bf16.gmra.mxu0 %v860
        %v899 = vpop.f32.mrf.mxu0
        %v900 = vadd.f32 0.0, %v899
        %v901 = vpop.f32.mrf.mxu0
        %v902 = vpop.f32.mrf.mxu0
        %v903 = vpop.f32.mrf.mxu0
        %904 = vdwg.mxu0
        %vm905 = vcmask 64512
        %v906 = vsel %vm905, %v900, -inf
        %907 = vmax.xlane.f32.xlu0 %v906
        %v908 = vpop.xlane.xlu0 %907
        %v909 = vsub.f32 %v900, %v908
        %v910 = vmul.f32 %v909, 1.442695
        %v911 = vpow.pop %v910
        %v912 = vsel %vm905, %v911, 0.0
        %913 = vadd.xlane.f32.xlu0 %v912
        %v914 = vpop.xlane.xlu0 %913
        %v915 = vrcp.pop %v914
        %v916 = vmul.f32 %v911, %v915
        %v917 = vpack.c.bf16 %v916, %v916
        %vm918 = vcmask 60416
        %919 = vst.msk [vmem:[%s466] sm:$0xf] %vm918, %v917
        %v920 = vpack.c.bf16 %v852, %v852
        %v922 = vsel %vm905, %v917, 0
        %vm924 = vcmask 1043456
        %v926 = vsel %vm924, %v920, 0
        %928 = vmatprep.subr.bf16.mxu0 0
        %929 = vmatpush1.bf16.msra.mxu0 0
        %930 = vmatprep.subr.bf16.mxu0 0
        %931 = vmatpush1.bf16.msra.mxu0 0
        %932 = vmatprep.subr.bf16.mxu0 0
        %933 = vmatpush1.bf16.msra.mxu0 0
        %934 = vmatprep.subr.bf16.mxu0 0
        %935 = vmatpush1.bf16.msra.mxu0 0
        %936 = vmatprep.subr.bf16.mxu0 0
        %937 = vmatpush1.bf16.msra.mxu0 0
        %938 = vmatprep.subr.bf16.mxu0 0
        %939 = vmatpush1.bf16.msra.mxu0 0
        %940 = vmatprep.subr.bf16.mxu0 0
        %941 = vmatpush1.bf16.msra.mxu0 0
        %942 = vmatprep.subr.bf16.mxu0 0
        %943 = vmatpush1.bf16.msra.mxu0 %v926
        %944 = vmatprep.subr.bf16.mxu0 0
        %945 = vmatpush2.bf16.msra.mxu0 0
        %946 = vmatprep.subr.bf16.mxu0 0
        %947 = vmatpush2.bf16.msra.mxu0 0
        %948 = vmatprep.subr.bf16.mxu0 0
        %949 = vmatpush2.bf16.msra.mxu0 0
        %950 = vmatprep.subr.bf16.mxu0 0
        %951 = vmatpush2.bf16.msra.mxu0 0
        %952 = vmatprep.subr.bf16.mxu0 0
        %953 = vmatpush2.bf16.msra.mxu0 0
        %954 = vmatprep.subr.bf16.mxu0 0
        %955 = vmatpush2.bf16.msra.mxu0 0
        %956 = vmatprep.subr.bf16.mxu0 0
        %957 = vmatpush2.bf16.msra.mxu0 0
        %958 = vmatprep.subr.bf16.mxu0 0
        %959 = vmatpush2.bf16.msra.mxu0 0
        %960 = vmatprep.mubr.bf16.mxu0 0
        %961 = vmatmul.mubr.bf16.gmra.mxu0 %v922
        %v962 = vpop.f32.mrf.mxu0
        %v963 = vadd.f32 0.0, %v962
        %v964 = vpop.f32.mrf.mxu0
        %v965 = vpop.f32.mrf.mxu0
        %v966 = vpop.f32.mrf.mxu0
        %967 = vdwg.mxu0
        %v968 = vpack.c.bf16 %v963, %v963
        %v969 = vld [vmem:[%s8] sm:$0xf]
        %v970 = vld [vmem:[%s8 + $0x4] sm:$0xf]
        %v971 = vld [vmem:[%s8 + $0x8] sm:$0xf]
        %v972 = vld [vmem:[%s8 + $0xc] sm:$0xf]
        %v973 = vlaneseq
        %v974 = vshrl.u32 %v973, 7
        %v975 = vsub.s32 1, %v974
        %v976 = vrot.slane %v473, %v975
        %v981 = vunpack.c.l.b16 %v969
        %v982 = vunpack.c.l.b16 %v970
        %v983 = vunpack.c.l.b16 %v971
        %v984 = vunpack.c.l.b16 %v972
        %v985 = vpack.c.b16 %v982, %v981
        %v986 = vpack.c.b16 %v984, %v983
        %v990 = vsel %vm489, %v968, 0
        %992 = vmatprep.subr.bf16.mxu0 0
        %993 = vmatpush1.bf16.msra.mxu0 0
        %994 = vmatprep.subr.bf16.mxu0 0
        %995 = vmatpush1.bf16.msra.mxu0 0
        %996 = vmatprep.subr.bf16.mxu0 0
        %997 = vmatpush1.bf16.msra.mxu0 0
        %998 = vmatprep.subr.bf16.mxu0 0
        %999 = vmatpush1.bf16.msra.mxu0 0
        %1000 = vmatprep.subr.bf16.mxu0 0
        %1001 = vmatpush1.bf16.msra.mxu0 0
        %1002 = vmatprep.subr.bf16.mxu0 0
        %1003 = vmatpush1.bf16.msra.mxu0 0
        %1004 = vmatprep.subr.bf16.mxu0 0
        %1005 = vmatpush1.bf16.msra.mxu0 %v986
        %1006 = vmatprep.subr.bf16.mxu0 0
        %1007 = vmatpush1.bf16.msra.mxu0 %v985
        %1008 = vmatprep.subr.bf16.mxu0 0
        %1009 = vmatpush2.bf16.msra.mxu0 0
        %1010 = vmatprep.subr.bf16.mxu0 0
        %1011 = vmatpush2.bf16.msra.mxu0 0
        %1012 = vmatprep.subr.bf16.mxu0 0
        %1013 = vmatpush2.bf16.msra.mxu0 0
        %1014 = vmatprep.subr.bf16.mxu0 0
        %1015 = vmatpush2.bf16.msra.mxu0 0
        %1016 = vmatprep.subr.bf16.mxu0 0
        %1017 = vmatpush2.bf16.msra.mxu0 0
        %1018 = vmatprep.subr.bf16.mxu0 0
        %1019 = vmatpush2.bf16.msra.mxu0 0
        %1020 = vmatprep.subr.bf16.mxu0 0
        %1021 = vmatpush2.bf16.msra.mxu0 0
        %1022 = vmatprep.subr.bf16.mxu0 0
        %1023 = vmatpush2.bf16.msra.mxu0 0
        %1024 = vmatprep.mubr.bf16.mxu0 0
        %1025 = vmatmul.mubr.bf16.gmra.mxu0 %v990
        %v1026 = vpop.f32.mrf.mxu0
        %v1027 = vadd.f32 %v976, %v1026
        %v1028 = vpop.f32.mrf.mxu0
        %v1029 = vpop.f32.mrf.mxu0
        %v1030 = vpop.f32.mrf.mxu0
        %1031 = vdwg.mxu0
        %v1032 = vld [vmem:[%s9] sm:$0xf]
        %v1033 = vld [vmem:[%s9 + $0x4] sm:$0xf]
        %v1034 = vld [vmem:[%s9 + $0x8] sm:$0xf]
        %v1035 = vld [vmem:[%s9 + $0xc] sm:$0xf]
        %v1036 = vld [vmem:[%s10] sm:$0xf]
        %v1037 = vld [vmem:[%s10 + $0x4] sm:$0xf]
        %v1038 = vld [vmem:[%s10 + $0x8] sm:$0xf]
        %v1039 = vld [vmem:[%s10 + $0xc] sm:$0xf]
        %v1040 = vld [vmem:[%s10 + $0x10] sm:$0xf]
        %v1041 = vld [vmem:[%s10 + $0x14] sm:$0xf]
        %v1042 = vld [vmem:[%s10 + $0x18] sm:$0xf]
        %v1043 = vld [vmem:[%s10 + $0x1c] sm:$0xf]
        %v1044 = vsel %vm489, %v1027, 0.0
        %1045 = vadd.xlane.f32.xlu0 %v1044
        %v1046 = vpop.xlane.xlu0 %1045
        %v1047 = vmul.f32 %v1046, %v493
        %v1048 = vsub.f32 %v1027, %v1047
        %v1049 = vmul.f32 %v1048, %v1048
        %v1050 = vsel %vm489, %v1049, 0.0
        %1051 = vadd.xlane.f32.xlu0 %v1050
        %v1052 = vpop.xlane.xlu0 %1051
        %v1053 = vmul.f32 %v1052, %v493
        %v1054 = vadd.f32 %v1053, 1e-05
        %v1055 = vrsqrt.pop %v1054
        %v1056 = vmul.f32 %v1048, %v1055
        %v1057 = vlaneseq
        %v1058 = vshrl.u32 %v1057, 7
        %v1059 = vsub.s32 4, %v1058
        %v1060 = vrot.slane %v472, %v1059
        %v1061 = vmul.f32 %v1056, %v1060
        %v1062 = vlaneseq
        %v1063 = vshrl.u32 %v1062, 7
        %v1064 = vsub.s32 5, %v1063
        %v1065 = vrot.slane %v472, %v1064
        %v1066 = vadd.f32 %v1061, %v1065
        %v1067 = vpack.c.bf16 %v1066, %v1066
        %v1068 = vlaneseq
        %v1069 = vshrl.u32 %v1068, 7
        %v1070 = vsub.s32 1, %v1069
        %v1071 = vrot.slane %v474, %v1070
        %v1076 = vunpack.c.l.b16 %v1032
        %v1077 = vunpack.c.l.b16 %v1033
        %v1078 = vunpack.c.l.b16 %v1034
        %v1079 = vunpack.c.l.b16 %v1035
        %v1080 = vpack.c.b16 %v1077, %v1076
        %v1081 = vpack.c.b16 %v1079, %v1078
        %v1085 = vsel %vm489, %v1067, 0
        %1087 = vmatprep.subr.bf16.mxu0 0
        %1088 = vmatpush1.bf16.msra.mxu0 0
        %1089 = vmatprep.subr.bf16.mxu0 0
        %1090 = vmatpush1.bf16.msra.mxu0 0
        %1091 = vmatprep.subr.bf16.mxu0 0
        %1092 = vmatpush1.bf16.msra.mxu0 0
        %1093 = vmatprep.subr.bf16.mxu0 0
        %1094 = vmatpush1.bf16.msra.mxu0 0
        %1095 = vmatprep.subr.bf16.mxu0 0
        %1096 = vmatpush1.bf16.msra.mxu0 0
        %1097 = vmatprep.subr.bf16.mxu0 0
        %1098 = vmatpush1.bf16.msra.mxu0 0
        %1099 = vmatprep.subr.bf16.mxu0 0
        %1100 = vmatpush1.bf16.msra.mxu0 %v1081
        %1101 = vmatprep.subr.bf16.mxu0 0
        %1102 = vmatpush1.bf16.msra.mxu0 %v1080
        %1103 = vmatprep.subr.bf16.mxu0 0
        %1104 = vmatpush2.bf16.msra.mxu0 0
        %1105 = vmatprep.subr.bf16.mxu0 0
        %1106 = vmatpush2.bf16.msra.mxu0 0
        %1107 = vmatprep.subr.bf16.mxu0 0
        %1108 = vmatpush2.bf16.msra.mxu0 0
        %1109 = vmatprep.subr.bf16.mxu0 0
        %1110 = vmatpush2.bf16.msra.mxu0 0
        %1111 = vmatprep.subr.bf16.mxu0 0
        %1112 = vmatpush2.bf16.msra.mxu0 0
        %1113 = vmatprep.subr.bf16.mxu0 0
        %1114 = vmatpush2.bf16.msra.mxu0 0
        %1115 = vmatprep.subr.bf16.mxu0 0
        %1116 = vmatpush2.bf16.msra.mxu0 0
        %1117 = vmatprep.subr.bf16.mxu0 0
        %1118 = vmatpush2.bf16.msra.mxu0 0
        %1119 = vmatprep.mubr.bf16.mxu0 0
        %1120 = vmatmul.mubr.bf16.gmra.mxu0 %v1085
        %v1121 = vpop.f32.mrf.mxu0
        %v1122 = vadd.f32 %v1071, %v1121
        %v1123 = vpop.f32.mrf.mxu0
        %v1124 = vpop.f32.mrf.mxu0
        %v1125 = vpop.f32.mrf.mxu0
        %1126 = vdwg.mxu0
        %v1127 = vmax.f32 %v1122, 0.0
        %v1128 = vpack.c.bf16 %v1127, %v1127
        %v1129 = vlaneseq
        %v1130 = vshrl.u32 %v1129, 7
        %v1131 = vsub.s32 2, %v1130
        %v1132 = vrot.slane %v473, %v1131
        %v1141 = vunpack.c.l.b16 %v1036
        %v1142 = vunpack.c.l.b16 %v1037
        %v1143 = vunpack.c.l.b16 %v1038
        %v1144 = vunpack.c.l.b16 %v1039
        %v1145 = vunpack.c.l.b16 %v1040
        %v1146 = vunpack.c.l.b16 %v1041
        %v1147 = vunpack.c.l.b16 %v1042
        %v1148 = vunpack.c.l.b16 %v1043
        %v1149 = vpack.c.b16 %v1142, %v1141
        %v1150 = vpack.c.b16 %v1144, %v1143
        %v1151 = vpack.c.b16 %v1146, %v1145
        %v1152 = vpack.c.b16 %v1148, %v1147
        %v1158 = vsel %vm604, %v1128, 0
        %1160 = vmatprep.subr.bf16.mxu0 0
        %1161 = vmatpush1.bf16.msra.mxu0 0
        %1162 = vmatprep.subr.bf16.mxu0 0
        %1163 = vmatpush1.bf16.msra.mxu0 0
        %1164 = vmatprep.subr.bf16.mxu0 0
        %1165 = vmatpush1.bf16.msra.mxu0 0
        %1166 = vmatprep.subr.bf16.mxu0 0
        %1167 = vmatpush1.bf16.msra.mxu0 0
        %1168 = vmatprep.subr.bf16.mxu0 0
        %1169 = vmatpush1.bf16.msra.mxu0 %v1152
        %1170 = vmatprep.subr.bf16.mxu0 0
        %1171 = vmatpush1.bf16.msra.mxu0 %v1151
        %1172 = vmatprep.subr.bf16.mxu0 0
        %1173 = vmatpush1.bf16.msra.mxu0 %v1150
        %1174 = vmatprep.subr.bf16.mxu0 0
        %1175 = vmatpush1.bf16.msra.mxu0 %v1149
        %1176 = vmatprep.subr.bf16.mxu0 0
        %1177 = vmatpush2.bf16.msra.mxu0 0
        %1178 = vmatprep.subr.bf16.mxu0 0
        %1179 = vmatpush2.bf16.msra.mxu0 0
        %1180 = vmatprep.subr.bf16.mxu0 0
        %1181 = vmatpush2.bf16.msra.mxu0 0
        %1182 = vmatprep.subr.bf16.mxu0 0
        %1183 = vmatpush2.bf16.msra.mxu0 0
        %1184 = vmatprep.subr.bf16.mxu0 0
        %1185 = vmatpush2.bf16.msra.mxu0 0
        %1186 = vmatprep.subr.bf16.mxu0 0
        %1187 = vmatpush2.bf16.msra.mxu0 0
        %1188 = vmatprep.subr.bf16.mxu0 0
        %1189 = vmatpush2.bf16.msra.mxu0 0
        %1190 = vmatprep.subr.bf16.mxu0 0
        %1191 = vmatpush2.bf16.msra.mxu0 0
        %1192 = vmatprep.mubr.bf16.mxu0 0
        %1193 = vmatmul.mubr.bf16.gmra.mxu0 %v1158
        %v1194 = vpop.f32.mrf.mxu0
        %v1195 = vadd.f32 %v1132, %v1194
        %v1196 = vpop.f32.mrf.mxu0
        %v1197 = vpop.f32.mrf.mxu0
        %v1198 = vpop.f32.mrf.mxu0
        %1199 = vdwg.mxu0
        %v1200 = vsel %vm489, %v1195, 0.0
        %1201 = vadd.xlane.f32.xlu0 %v1200
        %v1202 = vpop.xlane.xlu0 %1201
        %v1203 = vmul.f32 %v1202, %v493
        %v1204 = vsub.f32 %v1195, %v1203
        %v1205 = vmul.f32 %v1204, %v1204
        %v1206 = vsel %vm489, %v1205, 0.0
        %1207 = vadd.xlane.f32.xlu0 %v1206
        %v1208 = vpop.xlane.xlu0 %1207
        %v1209 = vmul.f32 %v1208, %v493
        %v1210 = vadd.f32 %v1209, 1e-05
        %v1211 = vrsqrt.pop %v1210
        %v1212 = vmul.f32 %v1204, %v1211
        %v1213 = vlaneseq
        %v1214 = vshrl.u32 %v1213, 7
        %v1215 = vsub.s32 6, %v1214
        %v1216 = vrot.slane %v472, %v1215
        %v1217 = vmul.f32 %v1212, %v1216
        %v1218 = vlaneseq
        %v1219 = vshrl.u32 %v1218, 7
        %v1220 = vsub.s32 7, %v1219
        %v1221 = vrot.slane %v472, %v1220
        %v1222 = vadd.f32 %v1217, %v1221
        %1223 = vst.msk [vmem:[%s459] sm:$0xff] %vm489, %v1222
        %s1224 = sand.u32 %s277, 1
        %s1225 = scalar_lea.sflag [#allocation4], %s1224
        %s1226 = sand.u32 %s277, 1
        %s1227 = smul.addr %s1226, 8
        %s1228 = scalar_lea.vmem [#allocation10], %s1227
        %s1229 = sand.u32 %s303, 1
        %s1230 = scalar_lea.sflag [#allocation12], %s1229
        %s1231 = sand.u32 %s303, 1
        %s1232 = smul.addr %s1231, 4
        %s1233 = scalar_lea.vmem [#allocation11], %s1232
        // Predicated region
        $region81: #{tpu_custom_call.1} parent=63 // pred_check
          %p1234 = pneg %p287
        $region82: #{tpu_custom_call.1} parent=63 // pred_check_branch
          %1236 = sbr.rel (%p1234) target = $region84
        $region83: #{tpu_custom_call.1} parent=63 // pred_region
          %s1238 = ssub.s32 128, 128
          %1239 = vsyncadd %s1225, %s1238
          %s1240 = smul.addr %s33, 128
          %s1241 = scalar_lea.hbm %s11, %s1240
          %s1243 = sshll.u32 %s1228, 4
          %s1244 = int_to_ptr.vmem [resolvable:$true] %s1243
          %1246 = dma.vmem_to_hbm [thread:$0]  %s1244, 128, %s1241, %s1225
        $region84: #{tpu_custom_call.1} parent=63 // pred_fallthru
          _
        // Predicated region
        $region85: #{tpu_custom_call.1} parent=63 // pred_check
          %p1247 = pneg %p313
        $region86: #{tpu_custom_call.1} parent=63 // pred_check_branch
          %1249 = sbr.rel (%p1247) target = $region88
        $region87: #{tpu_custom_call.1} parent=63 // pred_region
          %s1251 = ssub.s32 64, 64
          %1252 = vsyncadd %s1230, %s1251
          %s1253 = smul.addr %s33, 64
          %s1254 = scalar_lea.hbm %s12, %s1253
          %s1256 = sshll.u32 %s1233, 4
          %s1257 = int_to_ptr.vmem [resolvable:$true] %s1256
          %1259 = dma.vmem_to_hbm [thread:$0]  %s1257, 64, %s1254, %s1230
        $region88: #{tpu_custom_call.1} parent=63 // pred_fallthru
          _
      $region64: #{tpu_custom_call.1} parent=5 // pred_fallthru
        _
      %p1260 = scmp.le.s32.totalorder 2, %s28
      // Predicated region
      $region89: #{tpu_custom_call.1} parent=5 // pred_check
        %p1261 = pneg %p1260
      $region90: #{tpu_custom_call.1} parent=5 // pred_check_branch
        %1263 = sbr.rel (%p1261) target = $region92
      $region91: #{tpu_custom_call.1} parent=5 // pred_region
        %s1264 = ssub.s32 %s28, 2
        // Predicated region
        $region93: #{tpu_custom_call.1} parent=91 // pred_check
          %p1265 = pneg %p293
        $region94: #{tpu_custom_call.1} parent=91 // pred_check_branch
          %1267 = sbr.rel (%p1265) target = $region96
        $region95: #{tpu_custom_call.1} parent=91 // pred_region
          %s1268 = sand.u32 %s278, 1
          %s1269 = scalar_lea.sflag [#allocation4], %s1268
          %s1270 = sand.u32 %s278, 1
          %s1271 = smul.addr %s1270, 8
          %s1272 = scalar_lea.vmem [#allocation10], %s1271
          %1273 = dma.done %s1269, 128
        $region96: #{tpu_custom_call.1} parent=91 // pred_fallthru
          _
        // Predicated region
        $region97: #{tpu_custom_call.1} parent=91 // pred_check
          %p1274 = pneg %p319
        $region98: #{tpu_custom_call.1} parent=91 // pred_check_branch
          %1276 = sbr.rel (%p1274) target = $region100
        $region99: #{tpu_custom_call.1} parent=91 // pred_region
          %s1277 = sand.u32 %s304, 1
          %s1278 = scalar_lea.sflag [#allocation12], %s1277
          %s1279 = sand.u32 %s304, 1
          %s1280 = smul.addr %s1279, 4
          %s1281 = scalar_lea.vmem [#allocation11], %s1280
          %1282 = dma.done %s1278, 64
        $region100: #{tpu_custom_call.1} parent=91 // pred_fallthru
          _
      $region92: #{tpu_custom_call.1} parent=5 // pred_fallthru
        _
    $region6: #{tpu_custom_call.1} parent=1 // loop_footer
      %s32 = sadd.s32 1, %s28
    $region7: #{tpu_custom_call.1} parent=1 // loop_footer_branch
      %27 = sbr.rel target = $region3
    $region8: #{tpu_custom_call.1} parent=1 // loop_exit
      _
    %1283 = vsyncpa [#allocation3], 1
    %s1284 = scalar_lea.sflag [#allocation3], 1
    %1285 = vsyncpa %s1284, 1
    %1286 = vsyncpa [#allocation6], 1
    %1287 = vsyncpa [#allocation9], 1
    %1288 = vsyncpa [#allocation4], 1
    %s1289 = scalar_lea.sflag [#allocation4], 1
    %1290 = vsyncpa %s1289, 1
    %1291 = vsyncpa [#allocation12], 1
    %s1292 = scalar_lea.sflag [#allocation12], 1
    %1293 = vsyncpa %s1292, 1

</llo_original>
